<compile_context>
chip_gen: v7x
topology: tpu7x:2x2x1
jax: 0.10.0
libtpu: 0.0.40
codegen_flags: <defaults>
</compile_context>

<pallas_src>
import functools

import jax
import jax.numpy as jnp
from jax.experimental import pallas as pl
from jax.experimental.pallas import tpu as pltpu


def _ceil_div(a, b):
    return -((-a) // b)


def _round_up(x, mult):
    return ((x + mult - 1) // mult) * mult


# ---------------------------------------------------------------------------
# wrapper-side weight preprocessing (exact: each matrix entry is one weight)
# ---------------------------------------------------------------------------
def _conv_row_gemm_weights(w, win, pad):
    """w: (Cout, Cin, kh, kw) -> (kh, Win*Cin, Wout*Cout) banded matrices.

    Wmat[dy][(xin*Cin + ci), (xout*Cout + co)] = w[co, ci, dy, xin - xout + pad]
    (zero where the tap falls outside the kernel support / input width).
    """
    cout, cin, kh, kw = w.shape
    wout = win + 2 * pad - kw + 1
    mats = []
    for dy in range(kh):
        acc = jnp.zeros((win, cin, wout, cout), jnp.float32)
        for dxk in range(kw):
            off = dxk - pad                                    # xin - xout
            band = jnp.eye(win, wout, k=-off, dtype=jnp.float32)
            wsub = w[:, :, dy, dxk].T.astype(jnp.float32)      # (Cin, Cout)
            acc = acc + band[:, None, :, None] * wsub[None, :, None, :]
        mats.append(acc.reshape(win * cin, wout * cout))
    return jnp.stack(mats, axis=0), wout


def _deconv_taps(k, stride, pad, r):
    """ConvTranspose taps for output residue r: (d, kidx) with
    input index = u + d and kernel index kidx = r + pad - stride*d."""
    d_min = _ceil_div(r + pad - (k - 1), stride)
    d_max = (r + pad) // stride
    return [(d, r + pad - stride * d) for d in range(d_min, d_max + 1)]


def _deconv_grouped_weights(w_t, b_t, k, stride, pad, win):
    """Group the stride^2 sub-pixel phases of ConvTranspose2d by the input
    ROW shift d (review item: ~5 wide matmuls instead of 18 narrow ones).

    Returns
      w_d : (num_d, Win*Cin, Ncolp)  one column-mixing matrix per row shift d
      b_d : (1, Ncolp)               bias row
    Column order is [ry][v][rx][co], zero-padded to a multiple of 128 lanes,
    so per-image output rows reshape directly to (Hout, Wout, Cout).
    """
    cin, cout = w_t.shape[0], w_t.shape[1]
    wout = (win - 1) * stride - 2 * pad + k + 1        # output_padding = 1
    assert wout % stride == 0
    wop = wout // stride
    ncol = stride * wop * stride * cout
    ncolp = _round_up(ncol, 128)

    by_d = {}
    for ry in range(stride):
        for d, ky in _deconv_taps(k, stride, pad, ry):
            by_d.setdefault(d, []).append((ry, ky))
    d_values = sorted(by_d)
    col_taps = [list(_deconv_taps(k, stride, pad, rx)) for rx in range(stride)]

    mats = []
    for d in d_values:
        acc = jnp.zeros((win, cin, stride, wop, stride, cout), jnp.float32)
        for ry, ky in by_d[d]:
            for rx in range(stride):
                for dx, kx in col_taps[rx]:
                    band = jnp.eye(win, wop, k=-dx, dtype=jnp.float32)  # xin=v+dx
                    wsub = w_t[:, :, ky, kx].astype(jnp.float32)        # (Cin,Cout)
                    upd = band[:, None, :, None] * wsub[None, :, None, :]
                    acc = acc.at[:, :, ry, :, rx, :].add(upd)
        mat = acc.reshape(win * cin, ncol)
        mats.append(jnp.pad(mat, ((0, 0), (0, ncolp - ncol))))
    w_d = jnp.stack(mats, axis=0)
    b_d = jnp.pad(jnp.tile(b_t.astype(jnp.float32), stride * wop * stride),
                  (0, ncolp - ncol))[None, :]
    return w_d, b_d, d_values, wop, ncol, ncolp


# ---------------------------------------------------------------------------
# the fused Pallas kernel (whole network, `bb` images per grid step)
# ---------------------------------------------------------------------------
def _make_kernel(conv_meta, dmeta, lay, compute_dtype):
    bb, R, off = lay["bb"], lay["R"], lay["off"]
    zt, zb, h_mid = lay["pad_top"], lay["pad_bot"], lay["h_mid"]

    def kernel(x_ref, *refs):
        act = refs[-1]                   # (bb*R, SC) VMEM scratch
        out_ref = refs[-2]               # (bb, hop, Ncolp)
        sc = act.shape[1]

        # place the input images (channels-last rows: col = x*Cin + ci)
        lm0 = conv_meta[0]
        for b in range(bb):
            act[off + b * R:off + b * R + lm0["hin"], 0:lm0["ncin"]] = x_ref[b]

        ridx = 0
        for li, lm in enumerate(conv_meta):
            w_ref, bp_ref = refs[ridx], refs[ridx + 1]
            ridx += 2
            m_stack = (bb - 1) * R + lm["hout"]
            base = off - lm["pad"]
            # row-GEMM: acc[y] = sum_dy act[base + y + dy] @ W[dy]; rows
            # b*R..b*R+hout-1 are image b's outputs, in-between rows garbage.
            acc = jnp.dot(act[base:base + m_stack, 0:lm["ncin"]], w_ref[0],
                          preferred_element_type=jnp.float32)
            for dy in range(1, lm["kh"]):
                acc = acc + jnp.dot(
                    act[base + dy:base + dy + m_stack, 0:lm["ncin"]],
                    w_ref[dy], preferred_element_type=jnp.float32)
            acc = acc + bp_ref[0:1, :]                             # bias
            a = jnp.where(acc >= 0.0, acc, bp_ref[1:2, :] * acc)   # PReLU
            a = a.astype(compute_dtype)

            if li == 0:
                # one-shot zeroing of the pad border rows: every later layer
                # only writes rows [off, off + h_mid), so they stay zero.
                for b in range(bb):
                    if zt > 0:
                        act[off + b * R - zt:off + b * R, :] = jnp.zeros(
                            (zt, sc), compute_dtype)
                    if zb > 0:
                        act[off + b * R + h_mid:
                            off + b * R + h_mid + zb, :] = jnp.zeros(
                            (zb, sc), compute_dtype)

            for b in range(bb):          # place as the next layer's input
                act[off + b * R:off + b * R + lm["hout"], 0:lm["ncout"]] = (
                    a[b * R:b * R + lm["hout"], :])

        # ConvTranspose2d: sub-pixel phases grouped by input row shift d.
        wd_ref, bd_ref = refs[ridx], refs[ridx + 1]
        hop, ncin = dmeta["hop"], dmeta["ncin"]
        m_stack = (bb - 1) * R + hop
        starts = dmeta["starts"]         # absolute LHS start rows (off + d)
        acc = jnp.dot(act[starts[0]:starts[0] + m_stack, 0:ncin], wd_ref[0],
                      preferred_element_type=jnp.float32)
        for t in range(1, len(starts)):
            acc = acc + jnp.dot(act[starts[t]:starts[t] + m_stack, 0:ncin],
                                wd_ref[t], preferred_element_type=jnp.float32)
        acc = acc + bd_ref[...]
        for b in range(bb):              # one dense (hop, Ncolp) store/image
            out_ref[b] = acc[b * R:b * R + hop, :].astype(out_ref.dtype)

    return kernel


# ---------------------------------------------------------------------------
# Net_new4 forward (NCHW in / NCHW out)
# ---------------------------------------------------------------------------
def net_new4_forward(x, params, m, scale_factor, *, batch_block=8,
                     compute_dtype=jnp.float32):
    n, c0, h0, w0 = x.shape
    bb = max(1, min(batch_block, n))
    n_pad = _round_up(n, bb)

    conv_defs = [
        (params["w_first"], params["b_first"], params["a_first"], 0),
        (params["w_mid0"], params["b_mid0"], params["a_mid0"], 0),
    ]
    for i in range(m):
        conv_defs.append((params[f"w_mid{i + 1}"], params[f"b_mid{i + 1}"],
                          params[f"a_mid{i + 1}"], 1))
    conv_defs.append((params["w_mid_last"], params["b_mid_last"],
                      params["a_mid_last"], 0))

    inputs, in_specs, conv_meta = [], [], []
    hin, win, cin = h0, w0, c0
    for (w, b, alpha, pad) in conv_defs:
        cout, cin_w, kh, kw = w.shape
        assert cin_w == cin
        hout = hin + 2 * pad - kh + 1
        wmat, wout = _conv_row_gemm_weights(w, win, pad)
        brow = jnp.tile(b.astype(jnp.float32), wout)
        avec = jnp.asarray(alpha, jnp.float32).reshape(-1)
        if avec.shape[0] == 1:                      # scalar PReLU
            avec = jnp.broadcast_to(avec, (cout,))
        assert avec.shape[0] == cout                # per-channel PReLU ok too
        arow = jnp.tile(avec, wout)
        bp = jnp.stack([brow, arow], axis=0)        # (2, Wout*Cout)
        conv_meta.append(dict(kh=kh, pad=pad, hin=hin, hout=hout,
                              ncin=win * cin, ncout=wout * cout))
        inputs += [wmat.astype(compute_dtype), bp]
        in_specs += [pl.BlockSpec(wmat.shape, lambda i: (0, 0, 0)),
                     pl.BlockSpec(bp.shape, lambda i: (0, 0))]
        hin, win, cin = hout, wout, cout

    # layout assumptions of the one-shot pad-row zeroing (true for Net_new4:
    # 5x5 valid first conv, then height-preserving mid layers).
    assert conv_meta[0]["pad"] == 0
    h_mid = conv_meta[0]["hout"]
    for lm in conv_meta[1:]:
        assert lm["hin"] == h_mid and lm["hout"] == h_mid

    # ConvTranspose2d(d, num_channels, 9, scale_factor, 3, output_padding=1)
    w_t, b_t = params["w_last"], params["b_last"]
    cin_t, cout_t, k, _ = w_t.shape
    assert cin_t == cin and hin == h_mid
    stride, tpad = scale_factor, 3
    hout_t = (hin - 1) * stride - 2 * tpad + k + 1
    assert hout_t % stride == 0
    hop = hout_t // stride

    w_d, b_d, d_values, wop, ncol, ncolp = _deconv_grouped_weights(
        w_t, b_t, k, stride, tpad, win)
    wout_t = wop * stride
    inputs += [w_d.astype(compute_dtype), b_d]
    in_specs += [pl.BlockSpec(w_d.shape, lambda i: (0, 0, 0)),
                 pl.BlockSpec(b_d.shape, lambda i: (0, 0))]

    # per-image row-block layout inside the VMEM activation scratch
    pad_top = max([lm["pad"] for lm in conv_meta] + [max(0, -min(d_values))])
    pad_bot = max([lm["pad"] for lm in conv_meta[1:]] + [0] +
                  [max(0, hop - 1 + max(d_values) - (hin - 1))])
    off = pad_top
    R = _round_up(max(off + conv_meta[0]["hin"], off + h_mid + pad_bot), 8)
    SR = bb * R
    SC = _round_up(max([max(lm["ncin"], lm["ncout"]) for lm in conv_meta] +
                       [win * cin]), 128)

    lay = dict(bb=bb, R=R, off=off, pad_top=pad_top, pad_bot=pad_bot,
               h_mid=h_mid)
    dmeta = dict(hop=hop, ncin=win * cin, starts=[off + d for d in d_values])

    # channels-last flattened rows at the network boundary only
    x_cl = x.transpose(0, 2, 3, 1).reshape(n, h0, w0 * c0)
    if n_pad != n:
        x_cl = jnp.concatenate(
            [x_cl, jnp.zeros((n_pad - n, h0, w0 * c0), x_cl.dtype)], axis=0)
    x_cl = x_cl.astype(compute_dtype)

    out_rows = pl.pallas_call(
        _make_kernel(conv_meta, dmeta, lay, compute_dtype),
        out_shape=jax.ShapeDtypeStruct((n_pad, hop, ncolp), jnp.float32),
        grid=(n_pad // bb,),
        in_specs=[pl.BlockSpec((bb, h0, w0 * c0), lambda i: (i, 0, 0))]
                 + in_specs,
        out_specs=pl.BlockSpec((bb, hop, ncolp), lambda i: (i, 0, 0)),
        scratch_shapes=[pltpu.VMEM((SR, SC), compute_dtype)],
        compiler_params=pltpu.CompilerParams(
            dimension_semantics=("parallel",)),
    )(x_cl, *inputs)

    # columns are [ry][v][rx][co] -> pixel shuffle is a pure reshape; the
    # trailing NHWC->NCHW transpose is free when cout == 1.
    out = out_rows[:n, :, :ncol].reshape(n, hop * stride, wout_t, cout_t)
    return out.transpose(0, 3, 1, 2)


# ---------------------------------------------------------------------------
# pure-JAX reference (for self-check)
# ---------------------------------------------------------------------------
def ref_forward(x, params, m, scale_factor):
    hp = jax.lax.Precision.HIGHEST

    def prelu(y, a):
        return jnp.where(y >= 0, y, a * y)

    def conv(xx, w, b, stride, pad):
        o = jax.lax.conv_general_dilated(
            xx, w, (stride, stride), [(pad, pad), (pad, pad)],
            dimension_numbers=("NCHW", "OIHW", "NCHW"), precision=hp)
        return o + b[None, :, None, None]

    out = prelu(conv(x, params["w_first"], params["b_first"], 1, 0),
                params["a_first"])
    out = prelu(conv(out, params["w_mid0"], params["b_mid0"], 1, 0),
                params["a_mid0"])
    for i in range(m):
        out = prelu(conv(out, params[f"w_mid{i + 1}"], params[f"b_mid{i + 1}"],
                         1, 1), params[f"a_mid{i + 1}"])
    out = prelu(conv(out, params["w_mid_last"], params["b_mid_last"], 1, 0),
                params["a_mid_last"])
    wt = params["w_last"]
    w_conv = jnp.flip(wt, axis=(2, 3)).transpose(1, 0, 2, 3)
    k, p, op = 9, 3, 1
    out = jax.lax.conv_general_dilated(
        out, w_conv, (1, 1),
        [(k - 1 - p, k - 1 - p + op), (k - 1 - p, k - 1 - p + op)],
        lhs_dilation=(scale_factor, scale_factor),
        dimension_numbers=("NCHW", "OIHW", "NCHW"), precision=hp)
    return out + params["b_last"][None, :, None, None]


# ---------------------------------------------------------------------------
if __name__ == "__main__":
    num_channels, scale_factor, d, s, m = 1, 2, 16, 8, 2
    B, H, W = 4, 16, 16          # batch 4, batch_block 2 -> grid=(2,), even

    key = jax.random.PRNGKey(0)
    keys = jax.random.split(key, 16)

    def nrm(k_, shape, std=0.05):
        return (std * jax.random.normal(k_, shape)).astype(jnp.float32)

    params = {
        "w_first": nrm(keys[0], (d, num_channels, 5, 5)),
        "b_first": nrm(keys[1], (d,), 0.01),
        "a_first": jnp.float32(0.25),
        "w_mid0": nrm(keys[2], (s, d, 1, 1)),
        "b_mid0": nrm(keys[3], (s,), 0.01),
        "a_mid0": jnp.float32(0.25),
        "w_mid_last": nrm(keys[4], (d, s, 1, 1)),
        "b_mid_last": nrm(keys[5], (d,), 0.01),
        "a_mid_last": jnp.float32(0.25),
        # ConvTranspose2d weight layout: (in_channels, out_channels, kH, kW)
        "w_last": nrm(keys[6], (d, num_channels, 9, 9), 0.02),
        "b_last": nrm(keys[7], (num_channels,), 0.01),
    }
    for i in range(m):
        params[f"w_mid{i + 1}"] = nrm(keys[8 + 2 * i], (s, s, 3, 3))
        params[f"b_mid{i + 1}"] = nrm(keys[9 + 2 * i], (s,), 0.01)
        params[f"a_mid{i + 1}"] = jnp.float32(0.25)

    x = jax.random.normal(keys[15], (B, num_channels, H, W), dtype=jnp.float32)

    ref = jax.block_until_ready(ref_forward(x, params, m, scale_factor))
    h_out = (H - 4 - 1) * scale_factor + 4
    assert ref.shape == (B, num_channels, h_out, h_out), ref.shape

    # 1) f32 matmul operands: validates the batched row-GEMM / grouped-deconv
    #    structure at tight tolerance.
    fwd32 = jax.jit(functools.partial(net_new4_forward, m=m,
                                      scale_factor=scale_factor,
                                      batch_block=2,
                                      compute_dtype=jnp.float32))
    out32 = jax.block_until_ready(fwd32(x, params))
    assert out32.shape == ref.shape, out32.shape
    assert jnp.allclose(out32, ref, rtol=1e-3, atol=2e-4), (
        float(jnp.max(jnp.abs(out32 - ref))))

    # 2) bf16 matmul operands (perf path, f32 accumulation): looser tolerance.
    fwd16 = jax.jit(functools.partial(net_new4_forward, m=m,
                                      scale_factor=scale_factor,
                                      batch_block=2,
                                      compute_dtype=jnp.bfloat16))
    out16 = jax.block_until_ready(fwd16(x, params))
    assert out16.shape == ref.shape, out16.shape
    assert jnp.allclose(out16, ref, rtol=2e-2, atol=2e-3), (
        float(jnp.max(jnp.abs(out16 - ref))))

    print("KERNEL_OK")
</pallas_src>

<mosaic_0001>
module attributes {stable_mosaic.version = 11 : i64} {
  func.func @kernel(%arg0: i32, %arg1: memref<2x16x16xf32, #tpu.memory_space<vmem>>, %arg2: memref<5x16x192xf32, #tpu.memory_space<vmem>>, %arg3: memref<2x192xf32, #tpu.memory_space<vmem>>, %arg4: memref<1x192x96xf32, #tpu.memory_space<vmem>>, %arg5: memref<2x96xf32, #tpu.memory_space<vmem>>, %arg6: memref<3x96x96xf32, #tpu.memory_space<vmem>>, %arg7: memref<2x96xf32, #tpu.memory_space<vmem>>, %arg8: memref<3x96x96xf32, #tpu.memory_space<vmem>>, %arg9: memref<2x96xf32, #tpu.memory_space<vmem>>, %arg10: memref<1x96x192xf32, #tpu.memory_space<vmem>>, %arg11: memref<2x192xf32, #tpu.memory_space<vmem>>, %arg12: memref<5x192x128xf32, #tpu.memory_space<vmem>>, %arg13: memref<1x128xf32, #tpu.memory_space<vmem>>, %arg14: memref<2x13x128xf32, #tpu.memory_space<vmem>>, %arg15: memref<48x256xf32, #tpu.memory_space<vmem>>) attributes {dimension_semantics = [#tpu.dimension_semantics<parallel>], iteration_bounds = array<i64: 2>, scalar_prefetch = 0 : i64, scratch_operands = 1 : i64, tpu.core_type = #tpu.core_type<tc>, window_params = [{transform_indices = @transform_0, window_bounds = array<i64: 2, 16, 16>}, {pipeline_mode = #tpu.pipeline_mode<synchronous>, transform_indices = @transform_1, window_bounds = array<i64: 5, 16, 192>}, {pipeline_mode = #tpu.pipeline_mode<synchronous>, transform_indices = @transform_2, window_bounds = array<i64: 2, 192>}, {pipeline_mode = #tpu.pipeline_mode<synchronous>, transform_indices = @transform_3, window_bounds = array<i64: 1, 192, 96>}, {pipeline_mode = #tpu.pipeline_mode<synchronous>, transform_indices = @transform_4, window_bounds = array<i64: 2, 96>}, {pipeline_mode = #tpu.pipeline_mode<synchronous>, transform_indices = @transform_5, window_bounds = array<i64: 3, 96, 96>}, {pipeline_mode = #tpu.pipeline_mode<synchronous>, transform_indices = @transform_6, window_bounds = array<i64: 2, 96>}, {pipeline_mode = #tpu.pipeline_mode<synchronous>, transform_indices = @transform_7, window_bounds = array<i64: 3, 96, 96>}, {pipeline_mode = #tpu.pipeline_mode<synchronous>, transform_indices = @transform_8, window_bounds = array<i64: 2, 96>}, {pipeline_mode = #tpu.pipeline_mode<synchronous>, transform_indices = @transform_9, window_bounds = array<i64: 1, 96, 192>}, {pipeline_mode = #tpu.pipeline_mode<synchronous>, transform_indices = @transform_10, window_bounds = array<i64: 2, 192>}, {pipeline_mode = #tpu.pipeline_mode<synchronous>, transform_indices = @transform_11, window_bounds = array<i64: 5, 192, 128>}, {pipeline_mode = #tpu.pipeline_mode<synchronous>, transform_indices = @transform_12, window_bounds = array<i64: 1, 128>}, {transform_indices = @transform_13, window_bounds = array<i64: 2, 13, 128>}]} {
    %c0 = arith.constant 0 : index
    %c0_0 = arith.constant 0 : index
    %c0_1 = arith.constant 0 : index
    %0 = vector.load %arg1[%c0, %c0_0, %c0_1] : memref<2x16x16xf32, #tpu.memory_space<vmem>>, vector<1x16x16xf32>
    %1 = vector.shape_cast %0 : vector<1x16x16xf32> to vector<16x16xf32>
    %c2 = arith.constant 2 : index
    %c0_2 = arith.constant 0 : index
    %2 = vector.load %arg15[%c2, %c0_2] : memref<48x256xf32, #tpu.memory_space<vmem>>, vector<16x16xf32>
    tpu.vector_store %arg15[%c2, %c0_2], %1 {strides = array<i32>} : memref<48x256xf32, #tpu.memory_space<vmem>>, vector<16x16xf32>,
    %c1 = arith.constant 1 : index
    %c0_3 = arith.constant 0 : index
    %c0_4 = arith.constant 0 : index
    %3 = vector.load %arg1[%c1, %c0_3, %c0_4] : memref<2x16x16xf32, #tpu.memory_space<vmem>>, vector<1x16x16xf32>
    %4 = vector.shape_cast %3 : vector<1x16x16xf32> to vector<16x16xf32>
    %c26 = arith.constant 26 : index
    %c0_5 = arith.constant 0 : index
    %5 = vector.load %arg15[%c26, %c0_5] : memref<48x256xf32, #tpu.memory_space<vmem>>, vector<16x16xf32>
    tpu.vector_store %arg15[%c26, %c0_5], %4 {strides = array<i32>} : memref<48x256xf32, #tpu.memory_space<vmem>>, vector<16x16xf32>,
    %c2_6 = arith.constant 2 : index
    %c0_7 = arith.constant 0 : index
    %6 = vector.load %arg15[%c2_6, %c0_7] : memref<48x256xf32, #tpu.memory_space<vmem>>, vector<36x16xf32>
    %c0_8 = arith.constant 0 : index
    %c0_9 = arith.constant 0 : index
    %c0_10 = arith.constant 0 : index
    %7 = vector.load %arg2[%c0_8, %c0_9, %c0_10] : memref<5x16x192xf32, #tpu.memory_space<vmem>>, vector<1x16x192xf32>
    %8 = vector.shape_cast %7 : vector<1x16x192xf32> to vector<16x192xf32>
    %cst = arith.constant dense<0.000000e+00> : vector<36x192xf32>
    %9 = tpu.matmul %6, %8, %cst {dimension_numbers = #tpu.dot_dimension_numbers<[1], [0], [0], [1], [0, 0, 1, 1], [], []>} : vector<36x16xf32>, vector<16x192xf32>, vector<36x192xf32> -> vector<36x192xf32>
    %c3 = arith.constant 3 : index
    %c0_11 = arith.constant 0 : index
    %10 = vector.load %arg15[%c3, %c0_11] : memref<48x256xf32, #tpu.memory_space<vmem>>, vector<36x16xf32>
    %c1_12 = arith.constant 1 : index
    %c0_13 = arith.constant 0 : index
    %c0_14 = arith.constant 0 : index
    %11 = vector.load %arg2[%c1_12, %c0_13, %c0_14] : memref<5x16x192xf32, #tpu.memory_space<vmem>>, vector<1x16x192xf32>
    %12 = vector.shape_cast %11 : vector<1x16x192xf32> to vector<16x192xf32>
    %cst_15 = arith.constant dense<0.000000e+00> : vector<36x192xf32>
    %13 = tpu.matmul %10, %12, %cst_15 {dimension_numbers = #tpu.dot_dimension_numbers<[1], [0], [0], [1], [0, 0, 1, 1], [], []>} : vector<36x16xf32>, vector<16x192xf32>, vector<36x192xf32> -> vector<36x192xf32>
    %14 = arith.addf %9, %13 : vector<36x192xf32>
    %c4 = arith.constant 4 : index
    %c0_16 = arith.constant 0 : index
    %15 = vector.load %arg15[%c4, %c0_16] : memref<48x256xf32, #tpu.memory_space<vmem>>, vector<36x16xf32>
    %c2_17 = arith.constant 2 : index
    %c0_18 = arith.constant 0 : index
    %c0_19 = arith.constant 0 : index
    %16 = vector.load %arg2[%c2_17, %c0_18, %c0_19] : memref<5x16x192xf32, #tpu.memory_space<vmem>>, vector<1x16x192xf32>
    %17 = vector.shape_cast %16 : vector<1x16x192xf32> to vector<16x192xf32>
    %cst_20 = arith.constant dense<0.000000e+00> : vector<36x192xf32>
    %18 = tpu.matmul %15, %17, %cst_20 {dimension_numbers = #tpu.dot_dimension_numbers<[1], [0], [0], [1], [0, 0, 1, 1], [], []>} : vector<36x16xf32>, vector<16x192xf32>, vector<36x192xf32> -> vector<36x192xf32>
    %19 = arith.addf %14, %18 : vector<36x192xf32>
    %c5 = arith.constant 5 : index
    %c0_21 = arith.constant 0 : index
    %20 = vector.load %arg15[%c5, %c0_21] : memref<48x256xf32, #tpu.memory_space<vmem>>, vector<36x16xf32>
    %c3_22 = arith.constant 3 : index
    %c0_23 = arith.constant 0 : index
    %c0_24 = arith.constant 0 : index
    %21 = vector.load %arg2[%c3_22, %c0_23, %c0_24] : memref<5x16x192xf32, #tpu.memory_space<vmem>>, vector<1x16x192xf32>
    %22 = vector.shape_cast %21 : vector<1x16x192xf32> to vector<16x192xf32>
    %cst_25 = arith.constant dense<0.000000e+00> : vector<36x192xf32>
    %23 = tpu.matmul %20, %22, %cst_25 {dimension_numbers = #tpu.dot_dimension_numbers<[1], [0], [0], [1], [0, 0, 1, 1], [], []>} : vector<36x16xf32>, vector<16x192xf32>, vector<36x192xf32> -> vector<36x192xf32>
    %24 = arith.addf %19, %23 : vector<36x192xf32>
    %c6 = arith.constant 6 : index
    %c0_26 = arith.constant 0 : index
    %25 = vector.load %arg15[%c6, %c0_26] : memref<48x256xf32, #tpu.memory_space<vmem>>, vector<36x16xf32>
    %c4_27 = arith.constant 4 : index
    %c0_28 = arith.constant 0 : index
    %c0_29 = arith.constant 0 : index
    %26 = vector.load %arg2[%c4_27, %c0_28, %c0_29] : memref<5x16x192xf32, #tpu.memory_space<vmem>>, vector<1x16x192xf32>
    %27 = vector.shape_cast %26 : vector<1x16x192xf32> to vector<16x192xf32>
    %cst_30 = arith.constant dense<0.000000e+00> : vector<36x192xf32>
    %28 = tpu.matmul %25, %27, %cst_30 {dimension_numbers = #tpu.dot_dimension_numbers<[1], [0], [0], [1], [0, 0, 1, 1], [], []>} : vector<36x16xf32>, vector<16x192xf32>, vector<36x192xf32> -> vector<36x192xf32>
    %29 = arith.addf %24, %28 : vector<36x192xf32>
    %c0_31 = arith.constant 0 : index
    %c0_32 = arith.constant 0 : index
    %30 = vector.load %arg3[%c0_31, %c0_32] : memref<2x192xf32, #tpu.memory_space<vmem>>, vector<1x192xf32>
    %31 = vector.broadcast %30 : vector<1x192xf32> to vector<36x192xf32>
    %32 = arith.addf %29, %31 : vector<36x192xf32>
    %cst_33 = arith.constant 0.000000e+00 : f32
    %33 = vector.broadcast %cst_33 : f32 to vector<36x192xf32>
    %34 = arith.cmpf oge, %32, %33 : vector<36x192xf32>
    %c1_34 = arith.constant 1 : index
    %c0_35 = arith.constant 0 : index
    %35 = vector.load %arg3[%c1_34, %c0_35] : memref<2x192xf32, #tpu.memory_space<vmem>>, vector<1x192xf32>
    %36 = vector.broadcast %35 : vector<1x192xf32> to vector<36x192xf32>
    %37 = arith.mulf %36, %32 : vector<36x192xf32>
    %38 = arith.select %34, %32, %37 : vector<36x192xi1>, vector<36x192xf32>
    %cst_36 = arith.constant 0.000000e+00 : f32
    %39 = vector.broadcast %cst_36 : f32 to vector<2x256xf32>
    %c0_37 = arith.constant 0 : index
    %c0_38 = arith.constant 0 : index
    %40 = vector.load %arg15[%c0_37, %c0_38] : memref<48x256xf32, #tpu.memory_space<vmem>>, vector<2x256xf32>
    tpu.vector_store %arg15[%c0_37, %c0_38], %39 {strides = array<i32>} : memref<48x256xf32, #tpu.memory_space<vmem>>, vector<2x256xf32>,
    %cst_39 = arith.constant 0.000000e+00 : f32
    %41 = vector.broadcast %cst_39 : f32 to vector<3x256xf32>
    %c14 = arith.constant 14 : index
    %c0_40 = arith.constant 0 : index
    %42 = vector.load %arg15[%c14, %c0_40] : memref<48x256xf32, #tpu.memory_space<vmem>>, vector<3x256xf32>
    tpu.vector_store %arg15[%c14, %c0_40], %41 {strides = array<i32>} : memref<48x256xf32, #tpu.memory_space<vmem>>, vector<3x256xf32>,
    %cst_41 = arith.constant 0.000000e+00 : f32
    %43 = vector.broadcast %cst_41 : f32 to vector<2x256xf32>
    %c24 = arith.constant 24 : index
    %c0_42 = arith.constant 0 : index
    %44 = vector.load %arg15[%c24, %c0_42] : memref<48x256xf32, #tpu.memory_space<vmem>>, vector<2x256xf32>
    tpu.vector_store %arg15[%c24, %c0_42], %43 {strides = array<i32>} : memref<48x256xf32, #tpu.memory_space<vmem>>, vector<2x256xf32>,
    %cst_43 = arith.constant 0.000000e+00 : f32
    %45 = vector.broadcast %cst_43 : f32 to vector<3x256xf32>
    %c38 = arith.constant 38 : index
    %c0_44 = arith.constant 0 : index
    %46 = vector.load %arg15[%c38, %c0_44] : memref<48x256xf32, #tpu.memory_space<vmem>>, vector<3x256xf32>
    tpu.vector_store %arg15[%c38, %c0_44], %45 {strides = array<i32>} : memref<48x256xf32, #tpu.memory_space<vmem>>, vector<3x256xf32>,
    %47 = vector.extract_strided_slice %38 {offsets = [0, 0], sizes = [12, 192], strides = [1, 1]} : vector<36x192xf32> to vector<12x192xf32>
    %c2_45 = arith.constant 2 : index
    %c0_46 = arith.constant 0 : index
    %48 = vector.load %arg15[%c2_45, %c0_46] : memref<48x256xf32, #tpu.memory_space<vmem>>, vector<12x192xf32>
    tpu.vector_store %arg15[%c2_45, %c0_46], %47 {strides = array<i32>} : memref<48x256xf32, #tpu.memory_space<vmem>>, vector<12x192xf32>,
    %49 = vector.extract_strided_slice %38 {offsets = [24, 0], sizes = [12, 192], strides = [1, 1]} : vector<36x192xf32> to vector<12x192xf32>
    %c26_47 = arith.constant 26 : index
    %c0_48 = arith.constant 0 : index
    %50 = vector.load %arg15[%c26_47, %c0_48] : memref<48x256xf32, #tpu.memory_space<vmem>>, vector<12x192xf32>
    tpu.vector_store %arg15[%c26_47, %c0_48], %49 {strides = array<i32>} : memref<48x256xf32, #tpu.memory_space<vmem>>, vector<12x192xf32>,
    %c2_49 = arith.constant 2 : index
    %c0_50 = arith.constant 0 : index
    %51 = vector.load %arg15[%c2_49, %c0_50] : memref<48x256xf32, #tpu.memory_space<vmem>>, vector<36x192xf32>
    %c0_51 = arith.constant 0 : index
    %c0_52 = arith.constant 0 : index
    %c0_53 = arith.constant 0 : index
    %52 = vector.load %arg4[%c0_51, %c0_52, %c0_53] : memref<1x192x96xf32, #tpu.memory_space<vmem>>, vector<1x192x96xf32>
    %53 = vector.shape_cast %52 : vector<1x192x96xf32> to vector<192x96xf32>
    %cst_54 = arith.constant dense<0.000000e+00> : vector<36x96xf32>
    %54 = tpu.matmul %51, %53, %cst_54 {dimension_numbers = #tpu.dot_dimension_numbers<[1], [0], [0], [1], [0, 0, 1, 1], [], []>} : vector<36x192xf32>, vector<192x96xf32>, vector<36x96xf32> -> vector<36x96xf32>
    %c0_55 = arith.constant 0 : index
    %c0_56 = arith.constant 0 : index
    %55 = vector.load %arg5[%c0_55, %c0_56] : memref<2x96xf32, #tpu.memory_space<vmem>>, vector<1x96xf32>
    %56 = vector.broadcast %55 : vector<1x96xf32> to vector<36x96xf32>
    %57 = arith.addf %54, %56 : vector<36x96xf32>
    %cst_57 = arith.constant 0.000000e+00 : f32
    %58 = vector.broadcast %cst_57 : f32 to vector<36x96xf32>
    %59 = arith.cmpf oge, %57, %58 : vector<36x96xf32>
    %c1_58 = arith.constant 1 : index
    %c0_59 = arith.constant 0 : index
    %60 = vector.load %arg5[%c1_58, %c0_59] : memref<2x96xf32, #tpu.memory_space<vmem>>, vector<1x96xf32>
    %61 = vector.broadcast %60 : vector<1x96xf32> to vector<36x96xf32>
    %62 = arith.mulf %61, %57 : vector<36x96xf32>
    %63 = arith.select %59, %57, %62 : vector<36x96xi1>, vector<36x96xf32>
    %64 = vector.extract_strided_slice %63 {offsets = [0, 0], sizes = [12, 96], strides = [1, 1]} : vector<36x96xf32> to vector<12x96xf32>
    %c2_60 = arith.constant 2 : index
    %c0_61 = arith.constant 0 : index
    %65 = vector.load %arg15[%c2_60, %c0_61] : memref<48x256xf32, #tpu.memory_space<vmem>>, vector<12x96xf32>
    tpu.vector_store %arg15[%c2_60, %c0_61], %64 {strides = array<i32>} : memref<48x256xf32, #tpu.memory_space<vmem>>, vector<12x96xf32>,
    %66 = vector.extract_strided_slice %63 {offsets = [24, 0], sizes = [12, 96], strides = [1, 1]} : vector<36x96xf32> to vector<12x96xf32>
    %c26_62 = arith.constant 26 : index
    %c0_63 = arith.constant 0 : index
    %67 = vector.load %arg15[%c26_62, %c0_63] : memref<48x256xf32, #tpu.memory_space<vmem>>, vector<12x96xf32>
    tpu.vector_store %arg15[%c26_62, %c0_63], %66 {strides = array<i32>} : memref<48x256xf32, #tpu.memory_space<vmem>>, vector<12x96xf32>,
    %c1_64 = arith.constant 1 : index
    %c0_65 = arith.constant 0 : index
    %68 = vector.load %arg15[%c1_64, %c0_65] : memref<48x256xf32, #tpu.memory_space<vmem>>, vector<36x96xf32>
    %c0_66 = arith.constant 0 : index
    %c0_67 = arith.constant 0 : index
    %c0_68 = arith.constant 0 : index
    %69 = vector.load %arg6[%c0_66, %c0_67, %c0_68] : memref<3x96x96xf32, #tpu.memory_space<vmem>>, vector<1x96x96xf32>
    %70 = vector.shape_cast %69 : vector<1x96x96xf32> to vector<96x96xf32>
    %cst_69 = arith.constant dense<0.000000e+00> : vector<36x96xf32>
    %71 = tpu.matmul %68, %70, %cst_69 {dimension_numbers = #tpu.dot_dimension_numbers<[1], [0], [0], [1], [0, 0, 1, 1], [], []>} : vector<36x96xf32>, vector<96x96xf32>, vector<36x96xf32> -> vector<36x96xf32>
    %c2_70 = arith.constant 2 : index
    %c0_71 = arith.constant 0 : index
    %72 = vector.load %arg15[%c2_70, %c0_71] : memref<48x256xf32, #tpu.memory_space<vmem>>, vector<36x96xf32>
    %c1_72 = arith.constant 1 : index
    %c0_73 = arith.constant 0 : index
    %c0_74 = arith.constant 0 : index
    %73 = vector.load %arg6[%c1_72, %c0_73, %c0_74] : memref<3x96x96xf32, #tpu.memory_space<vmem>>, vector<1x96x96xf32>
    %74 = vector.shape_cast %73 : vector<1x96x96xf32> to vector<96x96xf32>
    %cst_75 = arith.constant dense<0.000000e+00> : vector<36x96xf32>
    %75 = tpu.matmul %72, %74, %cst_75 {dimension_numbers = #tpu.dot_dimension_numbers<[1], [0], [0], [1], [0, 0, 1, 1], [], []>} : vector<36x96xf32>, vector<96x96xf32>, vector<36x96xf32> -> vector<36x96xf32>
    %76 = arith.addf %71, %75 : vector<36x96xf32>
    %c3_76 = arith.constant 3 : index
    %c0_77 = arith.constant 0 : index
    %77 = vector.load %arg15[%c3_76, %c0_77] : memref<48x256xf32, #tpu.memory_space<vmem>>, vector<36x96xf32>
    %c2_78 = arith.constant 2 : index
    %c0_79 = arith.constant 0 : index
    %c0_80 = arith.constant 0 : index
    %78 = vector.load %arg6[%c2_78, %c0_79, %c0_80] : memref<3x96x96xf32, #tpu.memory_space<vmem>>, vector<1x96x96xf32>
    %79 = vector.shape_cast %78 : vector<1x96x96xf32> to vector<96x96xf32>
    %cst_81 = arith.constant dense<0.000000e+00> : vector<36x96xf32>
    %80 = tpu.matmul %77, %79, %cst_81 {dimension_numbers = #tpu.dot_dimension_numbers<[1], [0], [0], [1], [0, 0, 1, 1], [], []>} : vector<36x96xf32>, vector<96x96xf32>, vector<36x96xf32> -> vector<36x96xf32>
    %81 = arith.addf %76, %80 : vector<36x96xf32>
    %c0_82 = arith.constant 0 : index
    %c0_83 = arith.constant 0 : index
    %82 = vector.load %arg7[%c0_82, %c0_83] : memref<2x96xf32, #tpu.memory_space<vmem>>, vector<1x96xf32>
    %83 = vector.broadcast %82 : vector<1x96xf32> to vector<36x96xf32>
    %84 = arith.addf %81, %83 : vector<36x96xf32>
    %cst_84 = arith.constant 0.000000e+00 : f32
    %85 = vector.broadcast %cst_84 : f32 to vector<36x96xf32>
    %86 = arith.cmpf oge, %84, %85 : vector<36x96xf32>
    %c1_85 = arith.constant 1 : index
    %c0_86 = arith.constant 0 : index
    %87 = vector.load %arg7[%c1_85, %c0_86] : memref<2x96xf32, #tpu.memory_space<vmem>>, vector<1x96xf32>
    %88 = vector.broadcast %87 : vector<1x96xf32> to vector<36x96xf32>
    %89 = arith.mulf %88, %84 : vector<36x96xf32>
    %90 = arith.select %86, %84, %89 : vector<36x96xi1>, vector<36x96xf32>
    %91 = vector.extract_strided_slice %90 {offsets = [0, 0], sizes = [12, 96], strides = [1, 1]} : vector<36x96xf32> to vector<12x96xf32>
    %c2_87 = arith.constant 2 : index
    %c0_88 = arith.constant 0 : index
    %92 = vector.load %arg15[%c2_87, %c0_88] : memref<48x256xf32, #tpu.memory_space<vmem>>, vector<12x96xf32>
    tpu.vector_store %arg15[%c2_87, %c0_88], %91 {strides = array<i32>} : memref<48x256xf32, #tpu.memory_space<vmem>>, vector<12x96xf32>,
    %93 = vector.extract_strided_slice %90 {offsets = [24, 0], sizes = [12, 96], strides = [1, 1]} : vector<36x96xf32> to vector<12x96xf32>
    %c26_89 = arith.constant 26 : index
    %c0_90 = arith.constant 0 : index
    %94 = vector.load %arg15[%c26_89, %c0_90] : memref<48x256xf32, #tpu.memory_space<vmem>>, vector<12x96xf32>
    tpu.vector_store %arg15[%c26_89, %c0_90], %93 {strides = array<i32>} : memref<48x256xf32, #tpu.memory_space<vmem>>, vector<12x96xf32>,
    %c1_91 = arith.constant 1 : index
    %c0_92 = arith.constant 0 : index
    %95 = vector.load %arg15[%c1_91, %c0_92] : memref<48x256xf32, #tpu.memory_space<vmem>>, vector<36x96xf32>
    %c0_93 = arith.constant 0 : index
    %c0_94 = arith.constant 0 : index
    %c0_95 = arith.constant 0 : index
    %96 = vector.load %arg8[%c0_93, %c0_94, %c0_95] : memref<3x96x96xf32, #tpu.memory_space<vmem>>, vector<1x96x96xf32>
    %97 = vector.shape_cast %96 : vector<1x96x96xf32> to vector<96x96xf32>
    %cst_96 = arith.constant dense<0.000000e+00> : vector<36x96xf32>
    %98 = tpu.matmul %95, %97, %cst_96 {dimension_numbers = #tpu.dot_dimension_numbers<[1], [0], [0], [1], [0, 0, 1, 1], [], []>} : vector<36x96xf32>, vector<96x96xf32>, vector<36x96xf32> -> vector<36x96xf32>
    %c2_97 = arith.constant 2 : index
    %c0_98 = arith.constant 0 : index
    %99 = vector.load %arg15[%c2_97, %c0_98] : memref<48x256xf32, #tpu.memory_space<vmem>>, vector<36x96xf32>
    %c1_99 = arith.constant 1 : index
    %c0_100 = arith.constant 0 : index
    %c0_101 = arith.constant 0 : index
    %100 = vector.load %arg8[%c1_99, %c0_100, %c0_101] : memref<3x96x96xf32, #tpu.memory_space<vmem>>, vector<1x96x96xf32>
    %101 = vector.shape_cast %100 : vector<1x96x96xf32> to vector<96x96xf32>
    %cst_102 = arith.constant dense<0.000000e+00> : vector<36x96xf32>
    %102 = tpu.matmul %99, %101, %cst_102 {dimension_numbers = #tpu.dot_dimension_numbers<[1], [0], [0], [1], [0, 0, 1, 1], [], []>} : vector<36x96xf32>, vector<96x96xf32>, vector<36x96xf32> -> vector<36x96xf32>
    %103 = arith.addf %98, %102 : vector<36x96xf32>
    %c3_103 = arith.constant 3 : index
    %c0_104 = arith.constant 0 : index
    %104 = vector.load %arg15[%c3_103, %c0_104] : memref<48x256xf32, #tpu.memory_space<vmem>>, vector<36x96xf32>
    %c2_105 = arith.constant 2 : index
    %c0_106 = arith.constant 0 : index
    %c0_107 = arith.constant 0 : index
    %105 = vector.load %arg8[%c2_105, %c0_106, %c0_107] : memref<3x96x96xf32, #tpu.memory_space<vmem>>, vector<1x96x96xf32>
    %106 = vector.shape_cast %105 : vector<1x96x96xf32> to vector<96x96xf32>
    %cst_108 = arith.constant dense<0.000000e+00> : vector<36x96xf32>
    %107 = tpu.matmul %104, %106, %cst_108 {dimension_numbers = #tpu.dot_dimension_numbers<[1], [0], [0], [1], [0, 0, 1, 1], [], []>} : vector<36x96xf32>, vector<96x96xf32>, vector<36x96xf32> -> vector<36x96xf32>
    %108 = arith.addf %103, %107 : vector<36x96xf32>
    %c0_109 = arith.constant 0 : index
    %c0_110 = arith.constant 0 : index
    %109 = vector.load %arg9[%c0_109, %c0_110] : memref<2x96xf32, #tpu.memory_space<vmem>>, vector<1x96xf32>
    %110 = vector.broadcast %109 : vector<1x96xf32> to vector<36x96xf32>
    %111 = arith.addf %108, %110 : vector<36x96xf32>
    %cst_111 = arith.constant 0.000000e+00 : f32
    %112 = vector.broadcast %cst_111 : f32 to vector<36x96xf32>
    %113 = arith.cmpf oge, %111, %112 : vector<36x96xf32>
    %c1_112 = arith.constant 1 : index
    %c0_113 = arith.constant 0 : index
    %114 = vector.load %arg9[%c1_112, %c0_113] : memref<2x96xf32, #tpu.memory_space<vmem>>, vector<1x96xf32>
    %115 = vector.broadcast %114 : vector<1x96xf32> to vector<36x96xf32>
    %116 = arith.mulf %115, %111 : vector<36x96xf32>
    %117 = arith.select %113, %111, %116 : vector<36x96xi1>, vector<36x96xf32>
    %118 = vector.extract_strided_slice %117 {offsets = [0, 0], sizes = [12, 96], strides = [1, 1]} : vector<36x96xf32> to vector<12x96xf32>
    %c2_114 = arith.constant 2 : index
    %c0_115 = arith.constant 0 : index
    %119 = vector.load %arg15[%c2_114, %c0_115] : memref<48x256xf32, #tpu.memory_space<vmem>>, vector<12x96xf32>
    tpu.vector_store %arg15[%c2_114, %c0_115], %118 {strides = array<i32>} : memref<48x256xf32, #tpu.memory_space<vmem>>, vector<12x96xf32>,
    %120 = vector.extract_strided_slice %117 {offsets = [24, 0], sizes = [12, 96], strides = [1, 1]} : vector<36x96xf32> to vector<12x96xf32>
    %c26_116 = arith.constant 26 : index
    %c0_117 = arith.constant 0 : index
    %121 = vector.load %arg15[%c26_116, %c0_117] : memref<48x256xf32, #tpu.memory_space<vmem>>, vector<12x96xf32>
    tpu.vector_store %arg15[%c26_116, %c0_117], %120 {strides = array<i32>} : memref<48x256xf32, #tpu.memory_space<vmem>>, vector<12x96xf32>,
    %c2_118 = arith.constant 2 : index
    %c0_119 = arith.constant 0 : index
    %122 = vector.load %arg15[%c2_118, %c0_119] : memref<48x256xf32, #tpu.memory_space<vmem>>, vector<36x96xf32>
    %c0_120 = arith.constant 0 : index
    %c0_121 = arith.constant 0 : index
    %c0_122 = arith.constant 0 : index
    %123 = vector.load %arg10[%c0_120, %c0_121, %c0_122] : memref<1x96x192xf32, #tpu.memory_space<vmem>>, vector<1x96x192xf32>
    %124 = vector.shape_cast %123 : vector<1x96x192xf32> to vector<96x192xf32>
    %cst_123 = arith.constant dense<0.000000e+00> : vector<36x192xf32>
    %125 = tpu.matmul %122, %124, %cst_123 {dimension_numbers = #tpu.dot_dimension_numbers<[1], [0], [0], [1], [0, 0, 1, 1], [], []>} : vector<36x96xf32>, vector<96x192xf32>, vector<36x192xf32> -> vector<36x192xf32>
    %c0_124 = arith.constant 0 : index
    %c0_125 = arith.constant 0 : index
    %126 = vector.load %arg11[%c0_124, %c0_125] : memref<2x192xf32, #tpu.memory_space<vmem>>, vector<1x192xf32>
    %127 = vector.broadcast %126 : vector<1x192xf32> to vector<36x192xf32>
    %128 = arith.addf %125, %127 : vector<36x192xf32>
    %cst_126 = arith.constant 0.000000e+00 : f32
    %129 = vector.broadcast %cst_126 : f32 to vector<36x192xf32>
    %130 = arith.cmpf oge, %128, %129 : vector<36x192xf32>
    %c1_127 = arith.constant 1 : index
    %c0_128 = arith.constant 0 : index
    %131 = vector.load %arg11[%c1_127, %c0_128] : memref<2x192xf32, #tpu.memory_space<vmem>>, vector<1x192xf32>
    %132 = vector.broadcast %131 : vector<1x192xf32> to vector<36x192xf32>
    %133 = arith.mulf %132, %128 : vector<36x192xf32>
    %134 = arith.select %130, %128, %133 : vector<36x192xi1>, vector<36x192xf32>
    %135 = vector.extract_strided_slice %134 {offsets = [0, 0], sizes = [12, 192], strides = [1, 1]} : vector<36x192xf32> to vector<12x192xf32>
    %c2_129 = arith.constant 2 : index
    %c0_130 = arith.constant 0 : index
    %136 = vector.load %arg15[%c2_129, %c0_130] : memref<48x256xf32, #tpu.memory_space<vmem>>, vector<12x192xf32>
    tpu.vector_store %arg15[%c2_129, %c0_130], %135 {strides = array<i32>} : memref<48x256xf32, #tpu.memory_space<vmem>>, vector<12x192xf32>,
    %137 = vector.extract_strided_slice %134 {offsets = [24, 0], sizes = [12, 192], strides = [1, 1]} : vector<36x192xf32> to vector<12x192xf32>
    %c26_131 = arith.constant 26 : index
    %c0_132 = arith.constant 0 : index
    %138 = vector.load %arg15[%c26_131, %c0_132] : memref<48x256xf32, #tpu.memory_space<vmem>>, vector<12x192xf32>
    tpu.vector_store %arg15[%c26_131, %c0_132], %137 {strides = array<i32>} : memref<48x256xf32, #tpu.memory_space<vmem>>, vector<12x192xf32>,
    %c0_133 = arith.constant 0 : index
    %c0_134 = arith.constant 0 : index
    %139 = vector.load %arg15[%c0_133, %c0_134] : memref<48x256xf32, #tpu.memory_space<vmem>>, vector<37x192xf32>
    %c0_135 = arith.constant 0 : index
    %c0_136 = arith.constant 0 : index
    %c0_137 = arith.constant 0 : index
    %140 = vector.load %arg12[%c0_135, %c0_136, %c0_137] : memref<5x192x128xf32, #tpu.memory_space<vmem>>, vector<1x192x128xf32>
    %141 = vector.shape_cast %140 : vector<1x192x128xf32> to vector<192x128xf32>
    %cst_138 = arith.constant dense<0.000000e+00> : vector<37x128xf32>
    %142 = tpu.matmul %139, %141, %cst_138 {dimension_numbers = #tpu.dot_dimension_numbers<[1], [0], [0], [1], [0, 0, 1, 1], [], []>} : vector<37x192xf32>, vector<192x128xf32>, vector<37x128xf32> -> vector<37x128xf32>
    %c1_139 = arith.constant 1 : index
    %c0_140 = arith.constant 0 : index
    %143 = vector.load %arg15[%c1_139, %c0_140] : memref<48x256xf32, #tpu.memory_space<vmem>>, vector<37x192xf32>
    %c1_141 = arith.constant 1 : index
    %c0_142 = arith.constant 0 : index
    %c0_143 = arith.constant 0 : index
    %144 = vector.load %arg12[%c1_141, %c0_142, %c0_143] : memref<5x192x128xf32, #tpu.memory_space<vmem>>, vector<1x192x128xf32>
    %145 = vector.shape_cast %144 : vector<1x192x128xf32> to vector<192x128xf32>
    %cst_144 = arith.constant dense<0.000000e+00> : vector<37x128xf32>
    %146 = tpu.matmul %143, %145, %cst_144 {dimension_numbers = #tpu.dot_dimension_numbers<[1], [0], [0], [1], [0, 0, 1, 1], [], []>} : vector<37x192xf32>, vector<192x128xf32>, vector<37x128xf32> -> vector<37x128xf32>
    %147 = arith.addf %142, %146 : vector<37x128xf32>
    %c2_145 = arith.constant 2 : index
    %c0_146 = arith.constant 0 : index
    %148 = vector.load %arg15[%c2_145, %c0_146] : memref<48x256xf32, #tpu.memory_space<vmem>>, vector<37x192xf32>
    %c2_147 = arith.constant 2 : index
    %c0_148 = arith.constant 0 : index
    %c0_149 = arith.constant 0 : index
    %149 = vector.load %arg12[%c2_147, %c0_148, %c0_149] : memref<5x192x128xf32, #tpu.memory_space<vmem>>, vector<1x192x128xf32>
    %150 = vector.shape_cast %149 : vector<1x192x128xf32> to vector<192x128xf32>
    %cst_150 = arith.constant dense<0.000000e+00> : vector<37x128xf32>
    %151 = tpu.matmul %148, %150, %cst_150 {dimension_numbers = #tpu.dot_dimension_numbers<[1], [0], [0], [1], [0, 0, 1, 1], [], []>} : vector<37x192xf32>, vector<192x128xf32>, vector<37x128xf32> -> vector<37x128xf32>
    %152 = arith.addf %147, %151 : vector<37x128xf32>
    %c3_151 = arith.constant 3 : index
    %c0_152 = arith.constant 0 : index
    %153 = vector.load %arg15[%c3_151, %c0_152] : memref<48x256xf32, #tpu.memory_space<vmem>>, vector<37x192xf32>
    %c3_153 = arith.constant 3 : index
    %c0_154 = arith.constant 0 : index
    %c0_155 = arith.constant 0 : index
    %154 = vector.load %arg12[%c3_153, %c0_154, %c0_155] : memref<5x192x128xf32, #tpu.memory_space<vmem>>, vector<1x192x128xf32>
    %155 = vector.shape_cast %154 : vector<1x192x128xf32> to vector<192x128xf32>
    %cst_156 = arith.constant dense<0.000000e+00> : vector<37x128xf32>
    %156 = tpu.matmul %153, %155, %cst_156 {dimension_numbers = #tpu.dot_dimension_numbers<[1], [0], [0], [1], [0, 0, 1, 1], [], []>} : vector<37x192xf32>, vector<192x128xf32>, vector<37x128xf32> -> vector<37x128xf32>
    %157 = arith.addf %152, %156 : vector<37x128xf32>
    %c4_157 = arith.constant 4 : index
    %c0_158 = arith.constant 0 : index
    %158 = vector.load %arg15[%c4_157, %c0_158] : memref<48x256xf32, #tpu.memory_space<vmem>>, vector<37x192xf32>
    %c4_159 = arith.constant 4 : index
    %c0_160 = arith.constant 0 : index
    %c0_161 = arith.constant 0 : index
    %159 = vector.load %arg12[%c4_159, %c0_160, %c0_161] : memref<5x192x128xf32, #tpu.memory_space<vmem>>, vector<1x192x128xf32>
    %160 = vector.shape_cast %159 : vector<1x192x128xf32> to vector<192x128xf32>
    %cst_162 = arith.constant dense<0.000000e+00> : vector<37x128xf32>
    %161 = tpu.matmul %158, %160, %cst_162 {dimension_numbers = #tpu.dot_dimension_numbers<[1], [0], [0], [1], [0, 0, 1, 1], [], []>} : vector<37x192xf32>, vector<192x128xf32>, vector<37x128xf32> -> vector<37x128xf32>
    %162 = arith.addf %157, %161 : vector<37x128xf32>
    %c0_163 = arith.constant 0 : index
    %c0_164 = arith.constant 0 : index
    %163 = vector.load %arg13[%c0_163, %c0_164] : memref<1x128xf32, #tpu.memory_space<vmem>>, vector<1x128xf32>
    %164 = vector.broadcast %163 : vector<1x128xf32> to vector<37x128xf32>
    %165 = arith.addf %162, %164 : vector<37x128xf32>
    %166 = vector.extract_strided_slice %165 {offsets = [0, 0], sizes = [13, 128], strides = [1, 1]} : vector<37x128xf32> to vector<13x128xf32>
    %c0_165 = arith.constant 0 : index
    %c0_166 = arith.constant 0 : index
    %c0_167 = arith.constant 0 : index
    %167 = vector.load %arg14[%c0_165, %c0_166, %c0_167] : memref<2x13x128xf32, #tpu.memory_space<vmem>>, vector<1x13x128xf32>
    %168 = vector.shape_cast %167 : vector<1x13x128xf32> to vector<13x128xf32>
    %169 = vector.shape_cast %166 : vector<13x128xf32> to vector<1x13x128xf32>
    tpu.vector_store %arg14[%c0_165, %c0_166, %c0_167], %169 {strides = array<i32>} : memref<2x13x128xf32, #tpu.memory_space<vmem>>, vector<1x13x128xf32>,
    %170 = vector.extract_strided_slice %165 {offsets = [24, 0], sizes = [13, 128], strides = [1, 1]} : vector<37x128xf32> to vector<13x128xf32>
    %c1_168 = arith.constant 1 : index
    %c0_169 = arith.constant 0 : index
    %c0_170 = arith.constant 0 : index
    %171 = vector.load %arg14[%c1_168, %c0_169, %c0_170] : memref<2x13x128xf32, #tpu.memory_space<vmem>>, vector<1x13x128xf32>
    %172 = vector.shape_cast %171 : vector<1x13x128xf32> to vector<13x128xf32>
    %173 = vector.shape_cast %170 : vector<13x128xf32> to vector<1x13x128xf32>
    tpu.vector_store %arg14[%c1_168, %c0_169, %c0_170], %173 {strides = array<i32>} : memref<2x13x128xf32, #tpu.memory_space<vmem>>, vector<1x13x128xf32>,
    return
  }
  func.func @transform_0(%arg0: i32) -> (i32, i32, i32) {
    %c0_i32 = arith.constant 0 : i32
    %c0_i32_0 = arith.constant 0 : i32
    %c0_i32_1 = arith.constant 0 : i32
    return %arg0, %c0_i32, %c0_i32_0 : i32, i32, i32
  }
  func.func @transform_1(%arg0: i32) -> (i32, i32, i32) {
    %c0_i32 = arith.constant 0 : i32
    %c0_i32_0 = arith.constant 0 : i32
    %c0_i32_1 = arith.constant 0 : i32
    %c0_i32_2 = arith.constant 0 : i32
    return %c0_i32, %c0_i32_0, %c0_i32_1 : i32, i32, i32
  }
  func.func @transform_2(%arg0: i32) -> (i32, i32) {
    %c0_i32 = arith.constant 0 : i32
    %c0_i32_0 = arith.constant 0 : i32
    %c0_i32_1 = arith.constant 0 : i32
    return %c0_i32, %c0_i32_0 : i32, i32
  }
  func.func @transform_3(%arg0: i32) -> (i32, i32, i32) {
    %c0_i32 = arith.constant 0 : i32
    %c0_i32_0 = arith.constant 0 : i32
    %c0_i32_1 = arith.constant 0 : i32
    %c0_i32_2 = arith.constant 0 : i32
    return %c0_i32, %c0_i32_0, %c0_i32_1 : i32, i32, i32
  }
  func.func @transform_4(%arg0: i32) -> (i32, i32) {
    %c0_i32 = arith.constant 0 : i32
    %c0_i32_0 = arith.constant 0 : i32
    %c0_i32_1 = arith.constant 0 : i32
    return %c0_i32, %c0_i32_0 : i32, i32
  }
  func.func @transform_5(%arg0: i32) -> (i32, i32, i32) {
    %c0_i32 = arith.constant 0 : i32
    %c0_i32_0 = arith.constant 0 : i32
    %c0_i32_1 = arith.constant 0 : i32
    %c0_i32_2 = arith.constant 0 : i32
    return %c0_i32, %c0_i32_0, %c0_i32_1 : i32, i32, i32
  }
  func.func @transform_6(%arg0: i32) -> (i32, i32) {
    %c0_i32 = arith.constant 0 : i32
    %c0_i32_0 = arith.constant 0 : i32
    %c0_i32_1 = arith.constant 0 : i32
    return %c0_i32, %c0_i32_0 : i32, i32
  }
  func.func @transform_7(%arg0: i32) -> (i32, i32, i32) {
    %c0_i32 = arith.constant 0 : i32
    %c0_i32_0 = arith.constant 0 : i32
    %c0_i32_1 = arith.constant 0 : i32
    %c0_i32_2 = arith.constant 0 : i32
    return %c0_i32, %c0_i32_0, %c0_i32_1 : i32, i32, i32
  }
  func.func @transform_8(%arg0: i32) -> (i32, i32) {
    %c0_i32 = arith.constant 0 : i32
    %c0_i32_0 = arith.constant 0 : i32
    %c0_i32_1 = arith.constant 0 : i32
    return %c0_i32, %c0_i32_0 : i32, i32
  }
  func.func @transform_9(%arg0: i32) -> (i32, i32, i32) {
    %c0_i32 = arith.constant 0 : i32
    %c0_i32_0 = arith.constant 0 : i32
    %c0_i32_1 = arith.constant 0 : i32
    %c0_i32_2 = arith.constant 0 : i32
    return %c0_i32, %c0_i32_0, %c0_i32_1 : i32, i32, i32
  }
  func.func @transform_10(%arg0: i32) -> (i32, i32) {
    %c0_i32 = arith.constant 0 : i32
    %c0_i32_0 = arith.constant 0 : i32
    %c0_i32_1 = arith.constant 0 : i32
    return %c0_i32, %c0_i32_0 : i32, i32
  }
  func.func @transform_11(%arg0: i32) -> (i32, i32, i32) {
    %c0_i32 = arith.constant 0 : i32
    %c0_i32_0 = arith.constant 0 : i32
    %c0_i32_1 = arith.constant 0 : i32
    %c0_i32_2 = arith.constant 0 : i32
    return %c0_i32, %c0_i32_0, %c0_i32_1 : i32, i32, i32
  }
  func.func @transform_12(%arg0: i32) -> (i32, i32) {
    %c0_i32 = arith.constant 0 : i32
    %c0_i32_0 = arith.constant 0 : i32
    %c0_i32_1 = arith.constant 0 : i32
    return %c0_i32, %c0_i32_0 : i32, i32
  }
  func.func @transform_13(%arg0: i32) -> (i32, i32, i32) {
    %c0_i32 = arith.constant 0 : i32
    %c0_i32_0 = arith.constant 0 : i32
    %c0_i32_1 = arith.constant 0 : i32
    return %arg0, %c0_i32, %c0_i32_0 : i32, i32, i32
  }
}

</mosaic_0001>

<llo_original>
// kernel: tile.63
$region0: #{tile.63}
  %s0 = inlined_call_operand.vmem [shape: f32[12,16], index: 0, kind: input, shape index: {}]
  %s1 = inlined_call_operand.vmem [shape: f32[1,192], index: 1, kind: output, shape index: {}]
  $region1: #{tile.63} parent=0
    #allocation0 [shape = 'u8[8192]{0}', space=vmem, size = 0x2000, scoped, tag = 'scoped mem for output reshape']
    %s2 = smov 3
    %v3 = vld [vmem:[%s0] ss:$8 sm:%s2]
    %vm4 = vcmask 130048
    %5 = vst.msk [vmem:[#allocation0] ss:$8 sm:$0x3] %vm4, %v3
    %s6 = scalar_lea.vmem %s0, 7
    %v7 = vld [vmem:[%s6] sm:$0x1]
    %8 = vrot.lane.b32.xlu0 %v7, 112
    %v9 = vpop.permute.xlu0 %8
    %vm10 = vcmask 1048448
    %11 = vst.msk [vmem:[#allocation0] sm:$0x1] %vm10, %v9
    %s12 = scalar_lea.vmem %s0, 6
    %v13 = vld [vmem:[%s12] sm:$0x1]
    %14 = vrot.lane.b32.xlu0 %v13, 96
    %v15 = vpop.permute.xlu0 %14
    %vm16 = vcmask 917248
    %17 = vst.msk [vmem:[#allocation0] sm:$0x1] %vm16, %v15
    %s18 = scalar_lea.vmem %s0, 5
    %v19 = vld [vmem:[%s18] sm:$0x1]
    %20 = vrot.lane.b32.xlu0 %v19, 80
    %v21 = vpop.permute.xlu0 %20
    %vm22 = vcmask 786048
    %23 = vst.msk [vmem:[#allocation0] sm:$0x1] %vm22, %v21
    %s24 = scalar_lea.vmem %s0, 4
    %v25 = vld [vmem:[%s24] sm:$0x1]
    %26 = vrot.lane.b32.xlu0 %v25, 64
    %v27 = vpop.permute.xlu0 %26
    %vm28 = vcmask 654848
    %29 = vst.msk [vmem:[#allocation0] sm:$0x1] %vm28, %v27
    %s30 = scalar_lea.vmem %s0, 3
    %s31 = smov 3
    %v32 = vld [vmem:[%s30] ss:$8 sm:%s31]
    %33 = vrot.lane.b32.xlu0 %v32, 48
    %v34 = vpop.permute.xlu0 %33
    %vm35 = vcmask 523648
    %36 = vst.msk [vmem:[#allocation0] ss:$8 sm:$0x3] %vm35, %v34
    %s37 = scalar_lea.vmem %s0, 2
    %s38 = smov 3
    %v39 = vld [vmem:[%s37] ss:$8 sm:%s38]
    %40 = vrot.lane.b32.xlu0 %v39, 32
    %v41 = vpop.permute.xlu0 %40
    %vm42 = vcmask 392448
    %43 = vst.msk [vmem:[#allocation0] ss:$8 sm:$0x3] %vm42, %v41
    %s44 = scalar_lea.vmem %s0, 1
    %s45 = smov 3
    %v46 = vld [vmem:[%s44] ss:$8 sm:%s45]
    %47 = vrot.lane.b32.xlu0 %v46, 16
    %v48 = vpop.permute.xlu0 %47
    %vm49 = vcmask 261248
    %50 = vst.msk [vmem:[#allocation0] ss:$8 sm:$0x3] %vm49, %v48
    %s52 = sshllo.u32 0, 1
    %v54 = vld [vmem:[#allocation0] sm:%s52]
    %s55 = sshllo.u32 0, 1
    %56 = vst [vmem:[%s1] sm:%s55] %v54
    %s57 = scalar_lea.vmem [#allocation0], 8
    %v58 = vld [vmem:[%s57] sm:%s52]
    %s59 = sshllo.u32 0, 1
    %s60 = scalar_lea.vmem %s1, 1
    %61 = vst [vmem:[%s60] sm:%s59] %v58

// kernel: tile.68
$region0: #{tile.68}
  #allocation0 [shape = 's32[1]{0}', space=sflag, size = 0x4, scoped, tag = 'scoped memory for tile.68']
  %s0 = inlined_call_operand.vmem [shape: f32[8], index: 0, kind: input, shape index: {}]
  %s1 = inlined_call_operand.vmem [shape: f32[12,8], index: 1, kind: output, shape index: {}]
  // Predicated region
  $region2: #{tile.68} parent=0 // pred_check
    _
  $region3: #{tile.68} parent=0 // pred_check_branch
    %3 = sbr.rel (0) target = $region5
  $region4: #{tile.68} parent=0 // pred_region
    _
  $region5: #{tile.68} parent=0 // pred_fallthru
    _
  %v4 = vld [vmem:[%s0] ss:$0 sm:$0xff]
  %5 = vst [vmem:[%s1] sm:$0xff] %v4
  %s6 = scalar_lea.vmem %s1, 8
  %7 = vst [vmem:[%s6] sm:$0xff] %v4

// kernel: tile.73
$region0: #{tile.73}
  %s0 = inlined_call_operand.vmem [shape: f32[12,8], index: 0, kind: input, shape index: {}]
  %s1 = inlined_call_operand.vmem [shape: f32[1,96], index: 1, kind: output, shape index: {}]
  $region1: #{tile.73} parent=0
    #allocation0 [shape = 'u8[4096]{0}', space=vmem, size = 0x1000, scoped, tag = 'scoped mem for output reshape']
    %v2 = vld [vmem:[%s0] sm:$0x1]
    %vm3 = vcmask 64512
    %4 = vst.msk [vmem:[#allocation0] sm:$0x1] %vm3, %v2
    %s5 = scalar_lea.vmem %s0, 11
    %v6 = vld [vmem:[%s5] sm:$0x1]
    %7 = vrot.lane.b32.xlu0 %v6, 88
    %v8 = vpop.permute.xlu0 %7
    %vm9 = vcmask 786112
    %10 = vst.msk [vmem:[#allocation0] sm:$0x1] %vm9, %v8
    %s11 = scalar_lea.vmem %s0, 10
    %v12 = vld [vmem:[%s11] sm:$0x1]
    %13 = vrot.lane.b32.xlu0 %v12, 80
    %v14 = vpop.permute.xlu0 %13
    %vm15 = vcmask 720512
    %16 = vst.msk [vmem:[#allocation0] sm:$0x1] %vm15, %v14
    %s17 = scalar_lea.vmem %s0, 9
    %v18 = vld [vmem:[%s17] sm:$0x1]
    %19 = vrot.lane.b32.xlu0 %v18, 72
    %v20 = vpop.permute.xlu0 %19
    %vm21 = vcmask 654912
    %22 = vst.msk [vmem:[#allocation0] sm:$0x1] %vm21, %v20
    %s23 = scalar_lea.vmem %s0, 8
    %v24 = vld [vmem:[%s23] sm:$0x1]
    %25 = vrot.lane.b32.xlu0 %v24, 64
    %v26 = vpop.permute.xlu0 %25
    %vm27 = vcmask 589312
    %28 = vst.msk [vmem:[#allocation0] sm:$0x1] %vm27, %v26
    %s29 = scalar_lea.vmem %s0, 7
    %v30 = vld [vmem:[%s29] sm:$0x1]
    %31 = vrot.lane.b32.xlu0 %v30, 56
    %v32 = vpop.permute.xlu0 %31
    %vm33 = vcmask 523712
    %34 = vst.msk [vmem:[#allocation0] sm:$0x1] %vm33, %v32
    %s35 = scalar_lea.vmem %s0, 6
    %v36 = vld [vmem:[%s35] sm:$0x1]
    %37 = vrot.lane.b32.xlu0 %v36, 48
    %v38 = vpop.permute.xlu0 %37
    %vm39 = vcmask 458112
    %40 = vst.msk [vmem:[#allocation0] sm:$0x1] %vm39, %v38
    %s41 = scalar_lea.vmem %s0, 5
    %v42 = vld [vmem:[%s41] sm:$0x1]
    %43 = vrot.lane.b32.xlu0 %v42, 40
    %v44 = vpop.permute.xlu0 %43
    %vm45 = vcmask 392512
    %46 = vst.msk [vmem:[#allocation0] sm:$0x1] %vm45, %v44
    %s47 = scalar_lea.vmem %s0, 4
    %v48 = vld [vmem:[%s47] sm:$0x1]
    %49 = vrot.lane.b32.xlu0 %v48, 32
    %v50 = vpop.permute.xlu0 %49
    %vm51 = vcmask 326912
    %52 = vst.msk [vmem:[#allocation0] sm:$0x1] %vm51, %v50
    %s53 = scalar_lea.vmem %s0, 3
    %v54 = vld [vmem:[%s53] sm:$0x1]
    %55 = vrot.lane.b32.xlu0 %v54, 24
    %v56 = vpop.permute.xlu0 %55
    %vm57 = vcmask 261312
    %58 = vst.msk [vmem:[#allocation0] sm:$0x1] %vm57, %v56
    %s59 = scalar_lea.vmem %s0, 2
    %v60 = vld [vmem:[%s59] sm:$0x1]
    %61 = vrot.lane.b32.xlu0 %v60, 16
    %v62 = vpop.permute.xlu0 %61
    %vm63 = vcmask 195712
    %64 = vst.msk [vmem:[#allocation0] sm:$0x1] %vm63, %v62
    %s65 = scalar_lea.vmem %s0, 1
    %v66 = vld [vmem:[%s65] sm:$0x1]
    %67 = vrot.lane.b32.xlu0 %v66, 8
    %v68 = vpop.permute.xlu0 %67
    %vm69 = vcmask 130112
    %70 = vst.msk [vmem:[#allocation0] sm:$0x1] %vm69, %v68
    %s72 = sshllo.u32 0, 1
    %v74 = vld [vmem:[#allocation0] sm:%s72]
    %s75 = sshllo.u32 0, 1
    %76 = vst [vmem:[%s1] sm:%s75] %v74

// kernel: net_new4_forward.1
$region0: #{net_new4_forward.1}
  #allocation0 [shape = 'u32[]', space=smem, size = 0x4, offset = 0x4, fixed_abs, tag = 'smem constant byte address 0x4 - core index']
  #allocation1 [shape = 'u32[144,128]{1,0:T(1,128)}', space=vmem, size = 0x12000, scoped, tag = 'internal scratch']
  #allocation2 [shape = 'f32[48,256]{1,0:T(8,128)}', space=vmem, size = 0xc000, scoped, tag = 'scratch operand']
  %s0 = inlined_call_operand.vmem [shape: f32[4,16,16], index: 0, kind: input, shape index: {}]
  %s1 = inlined_call_operand.vmem [shape: f32[5,16,192], index: 1, kind: input, shape index: {}]
  %s2 = inlined_call_operand.vmem [shape: f32[2,192], index: 2, kind: input, shape index: {}]
  %s3 = inlined_call_operand.vmem [shape: f32[1,192,96], index: 3, kind: input, shape index: {}]
  %s4 = inlined_call_operand.vmem [shape: f32[2,96], index: 4, kind: input, shape index: {}]
  %s5 = inlined_call_operand.vmem [shape: f32[3,96,96], index: 5, kind: input, shape index: {}]
  %s6 = inlined_call_operand.vmem [shape: f32[2,96], index: 6, kind: input, shape index: {}]
  %s7 = inlined_call_operand.vmem [shape: f32[3,96,96], index: 7, kind: input, shape index: {}]
  %s8 = inlined_call_operand.vmem [shape: f32[2,96], index: 8, kind: input, shape index: {}]
  %s9 = inlined_call_operand.vmem [shape: f32[1,96,192], index: 9, kind: input, shape index: {}]
  %s10 = inlined_call_operand.vmem [shape: f32[2,192], index: 10, kind: input, shape index: {}]
  %s11 = inlined_call_operand.vmem [shape: f32[5,192,128], index: 11, kind: input, shape index: {}]
  %s12 = inlined_call_operand.vmem [shape: f32[1,128], index: 12, kind: input, shape index: {}]
  %s13 = inlined_call_operand.vmem [shape: f32[4,13,128], index: 13, kind: output, shape index: {}]
  %s14 = sld [smem:[#allocation0]]
  $region85: #{net_new4_forward.1} parent=0
    _
  %s16 = ssub.s32 1, %s14
  %s17 = scalar_select 0, %s16, %s14
  loop: start=0, step=1, limit=4
  $region2: #{net_new4_forward.1} parent=0 // loop_pre_header
    _
  $region3: #{net_new4_forward.1} parent=0 // loop_header
    %s19 = sphi 0, %s23
    %p20 = scmp.ge.s32.totalorder %s19, 4
    %s29 = sphi 0, %s31
    %s32 = sphi 0, %s29
    %s33 = sphi 0, %s32
    %s49 = sphi 0, %s33
    %s53 = sphi 0, %s53
    %s55 = sphi 0, %s53
    %s56 = sphi 0, %s55
    %s70 = sphi 0, %s56
    %s74 = sphi 0, %s74
    %s76 = sphi 0, %s74
    %s77 = sphi 0, %s76
    %s91 = sphi 0, %s77
    %s95 = sphi 0, %s95
    %s97 = sphi 0, %s95
    %s98 = sphi 0, %s97
    %s112 = sphi 0, %s98
    %s116 = sphi 0, %s116
    %s118 = sphi 0, %s116
    %s119 = sphi 0, %s118
    %s133 = sphi 0, %s119
    %s137 = sphi 0, %s137
    %s139 = sphi 0, %s137
    %s140 = sphi 0, %s139
    %s154 = sphi 0, %s140
    %s158 = sphi 0, %s158
    %s160 = sphi 0, %s158
    %s161 = sphi 0, %s160
    %s175 = sphi 0, %s161
    %s179 = sphi 0, %s179
    %s181 = sphi 0, %s179
    %s182 = sphi 0, %s181
    %s196 = sphi 0, %s182
    %s200 = sphi 0, %s200
    %s202 = sphi 0, %s200
    %s203 = sphi 0, %s202
    %s217 = sphi 0, %s203
    %s221 = sphi 0, %s221
    %s223 = sphi 0, %s221
    %s224 = sphi 0, %s223
    %s238 = sphi 0, %s224
    %s242 = sphi 0, %s242
    %s244 = sphi 0, %s242
    %s245 = sphi 0, %s244
    %s259 = sphi 0, %s245
    %s263 = sphi 0, %s263
    %s265 = sphi 0, %s263
    %s266 = sphi 0, %s265
    %s280 = sphi 0, %s266
    %s284 = sphi 0, %s284
    %s286 = sphi 0, %s284
    %s287 = sphi 0, %s286
    %s301 = sphi 0, %s287
    %s307 = sphi 0, %s309
    %s310 = sphi 0, %s307
    %s311 = sphi 0, %s310
    %s327 = sphi 0, %s311
  $region4: #{net_new4_forward.1} parent=0 // loop_header_branch
    %22 = sbr.rel (%p20) target = $region8
  $region5: #{net_new4_forward.1} parent=0 // loop_body
    %s24 = ssub.s32 %s19, 1
    %s25 = ssub.s32 %s19, 2
    %s26 = sadd.s32 %s19, 1
    %s27 = ssub.s32 %s19, %s26
    %p28 = scmp.eq.s32.totalorder %s27, 0
    %s30 = sadd.s32 %s29, 1
    %s31 = scalar_select %p28, %s29, %s30
    %p34 = pneg %p28
    %p35 = scmp.eq.s32.totalorder %s19, 1
    %p36 = por %p34, %p35
    %p37 = scmp.ne.s32.totalorder %s29, %s32
    %p38 = scmp.eq.s32.totalorder %s19, 0
    %p39 = por %p37, %p38
    %p40 = scmp.ne.s32.totalorder %s29, %s32
    %p41 = scmp.eq.s32.totalorder %s24, 1
    %p42 = por %p40, %p41
    %p43 = scmp.ne.s32.totalorder %s32, %s33
    %p44 = scmp.eq.s32.totalorder %s24, 0
    %p45 = por %p43, %p44
    %p46 = scmp.ne.s32.totalorder %s32, %s33
    %p47 = scmp.eq.s32.totalorder %s25, 1
    %p48 = por %p46, %p47
    %p50 = scmp.ne.s32.totalorder %s33, %s49
    %p51 = scmp.eq.s32.totalorder %s25, 0
    %p52 = por %p50, %p51
    %s54 = sadd.s32 %s53, 1
    %p57 = scmp.eq.s32.totalorder %s19, 1
    %p58 = scmp.ne.s32.totalorder %s53, %s55
    %p59 = scmp.eq.s32.totalorder %s19, 0
    %p60 = por %p58, %p59
    %p61 = scmp.ne.s32.totalorder %s53, %s55
    %p62 = scmp.eq.s32.totalorder %s24, 1
    %p63 = por %p61, %p62
    %p64 = scmp.ne.s32.totalorder %s55, %s56
    %p65 = scmp.eq.s32.totalorder %s24, 0
    %p66 = por %p64, %p65
    %p67 = scmp.ne.s32.totalorder %s55, %s56
    %p68 = scmp.eq.s32.totalorder %s25, 1
    %p69 = por %p67, %p68
    %p71 = scmp.ne.s32.totalorder %s56, %s70
    %p72 = scmp.eq.s32.totalorder %s25, 0
    %p73 = por %p71, %p72
    %s75 = sadd.s32 %s74, 1
    %p78 = scmp.eq.s32.totalorder %s19, 1
    %p79 = scmp.ne.s32.totalorder %s74, %s76
    %p80 = scmp.eq.s32.totalorder %s19, 0
    %p81 = por %p79, %p80
    %p82 = scmp.ne.s32.totalorder %s74, %s76
    %p83 = scmp.eq.s32.totalorder %s24, 1
    %p84 = por %p82, %p83
    %p85 = scmp.ne.s32.totalorder %s76, %s77
    %p86 = scmp.eq.s32.totalorder %s24, 0
    %p87 = por %p85, %p86
    %p88 = scmp.ne.s32.totalorder %s76, %s77
    %p89 = scmp.eq.s32.totalorder %s25, 1
    %p90 = por %p88, %p89
    %p92 = scmp.ne.s32.totalorder %s77, %s91
    %p93 = scmp.eq.s32.totalorder %s25, 0
    %p94 = por %p92, %p93
    %s96 = sadd.s32 %s95, 1
    %p99 = scmp.eq.s32.totalorder %s19, 1
    %p100 = scmp.ne.s32.totalorder %s95, %s97
    %p101 = scmp.eq.s32.totalorder %s19, 0
    %p102 = por %p100, %p101
    %p103 = scmp.ne.s32.totalorder %s95, %s97
    %p104 = scmp.eq.s32.totalorder %s24, 1
    %p105 = por %p103, %p104
    %p106 = scmp.ne.s32.totalorder %s97, %s98
    %p107 = scmp.eq.s32.totalorder %s24, 0
    %p108 = por %p106, %p107
    %p109 = scmp.ne.s32.totalorder %s97, %s98
    %p110 = scmp.eq.s32.totalorder %s25, 1
    %p111 = por %p109, %p110
    %p113 = scmp.ne.s32.totalorder %s98, %s112
    %p114 = scmp.eq.s32.totalorder %s25, 0
    %p115 = por %p113, %p114
    %s117 = sadd.s32 %s116, 1
    %p120 = scmp.eq.s32.totalorder %s19, 1
    %p121 = scmp.ne.s32.totalorder %s116, %s118
    %p122 = scmp.eq.s32.totalorder %s19, 0
    %p123 = por %p121, %p122
    %p124 = scmp.ne.s32.totalorder %s116, %s118
    %p125 = scmp.eq.s32.totalorder %s24, 1
    %p126 = por %p124, %p125
    %p127 = scmp.ne.s32.totalorder %s118, %s119
    %p128 = scmp.eq.s32.totalorder %s24, 0
    %p129 = por %p127, %p128
    %p130 = scmp.ne.s32.totalorder %s118, %s119
    %p131 = scmp.eq.s32.totalorder %s25, 1
    %p132 = por %p130, %p131
    %p134 = scmp.ne.s32.totalorder %s119, %s133
    %p135 = scmp.eq.s32.totalorder %s25, 0
    %p136 = por %p134, %p135
    %s138 = sadd.s32 %s137, 1
    %p141 = scmp.eq.s32.totalorder %s19, 1
    %p142 = scmp.ne.s32.totalorder %s137, %s139
    %p143 = scmp.eq.s32.totalorder %s19, 0
    %p144 = por %p142, %p143
    %p145 = scmp.ne.s32.totalorder %s137, %s139
    %p146 = scmp.eq.s32.totalorder %s24, 1
    %p147 = por %p145, %p146
    %p148 = scmp.ne.s32.totalorder %s139, %s140
    %p149 = scmp.eq.s32.totalorder %s24, 0
    %p150 = por %p148, %p149
    %p151 = scmp.ne.s32.totalorder %s139, %s140
    %p152 = scmp.eq.s32.totalorder %s25, 1
    %p153 = por %p151, %p152
    %p155 = scmp.ne.s32.totalorder %s140, %s154
    %p156 = scmp.eq.s32.totalorder %s25, 0
    %p157 = por %p155, %p156
    %s159 = sadd.s32 %s158, 1
    %p162 = scmp.eq.s32.totalorder %s19, 1
    %p163 = scmp.ne.s32.totalorder %s158, %s160
    %p164 = scmp.eq.s32.totalorder %s19, 0
    %p165 = por %p163, %p164
    %p166 = scmp.ne.s32.totalorder %s158, %s160
    %p167 = scmp.eq.s32.totalorder %s24, 1
    %p168 = por %p166, %p167
    %p169 = scmp.ne.s32.totalorder %s160, %s161
    %p170 = scmp.eq.s32.totalorder %s24, 0
    %p171 = por %p169, %p170
    %p172 = scmp.ne.s32.totalorder %s160, %s161
    %p173 = scmp.eq.s32.totalorder %s25, 1
    %p174 = por %p172, %p173
    %p176 = scmp.ne.s32.totalorder %s161, %s175
    %p177 = scmp.eq.s32.totalorder %s25, 0
    %p178 = por %p176, %p177
    %s180 = sadd.s32 %s179, 1
    %p183 = scmp.eq.s32.totalorder %s19, 1
    %p184 = scmp.ne.s32.totalorder %s179, %s181
    %p185 = scmp.eq.s32.totalorder %s19, 0
    %p186 = por %p184, %p185
    %p187 = scmp.ne.s32.totalorder %s179, %s181
    %p188 = scmp.eq.s32.totalorder %s24, 1
    %p189 = por %p187, %p188
    %p190 = scmp.ne.s32.totalorder %s181, %s182
    %p191 = scmp.eq.s32.totalorder %s24, 0
    %p192 = por %p190, %p191
    %p193 = scmp.ne.s32.totalorder %s181, %s182
    %p194 = scmp.eq.s32.totalorder %s25, 1
    %p195 = por %p193, %p194
    %p197 = scmp.ne.s32.totalorder %s182, %s196
    %p198 = scmp.eq.s32.totalorder %s25, 0
    %p199 = por %p197, %p198
    %s201 = sadd.s32 %s200, 1
    %p204 = scmp.eq.s32.totalorder %s19, 1
    %p205 = scmp.ne.s32.totalorder %s200, %s202
    %p206 = scmp.eq.s32.totalorder %s19, 0
    %p207 = por %p205, %p206
    %p208 = scmp.ne.s32.totalorder %s200, %s202
    %p209 = scmp.eq.s32.totalorder %s24, 1
    %p210 = por %p208, %p209
    %p211 = scmp.ne.s32.totalorder %s202, %s203
    %p212 = scmp.eq.s32.totalorder %s24, 0
    %p213 = por %p211, %p212
    %p214 = scmp.ne.s32.totalorder %s202, %s203
    %p215 = scmp.eq.s32.totalorder %s25, 1
    %p216 = por %p214, %p215
    %p218 = scmp.ne.s32.totalorder %s203, %s217
    %p219 = scmp.eq.s32.totalorder %s25, 0
    %p220 = por %p218, %p219
    %s222 = sadd.s32 %s221, 1
    %p225 = scmp.eq.s32.totalorder %s19, 1
    %p226 = scmp.ne.s32.totalorder %s221, %s223
    %p227 = scmp.eq.s32.totalorder %s19, 0
    %p228 = por %p226, %p227
    %p229 = scmp.ne.s32.totalorder %s221, %s223
    %p230 = scmp.eq.s32.totalorder %s24, 1
    %p231 = por %p229, %p230
    %p232 = scmp.ne.s32.totalorder %s223, %s224
    %p233 = scmp.eq.s32.totalorder %s24, 0
    %p234 = por %p232, %p233
    %p235 = scmp.ne.s32.totalorder %s223, %s224
    %p236 = scmp.eq.s32.totalorder %s25, 1
    %p237 = por %p235, %p236
    %p239 = scmp.ne.s32.totalorder %s224, %s238
    %p240 = scmp.eq.s32.totalorder %s25, 0
    %p241 = por %p239, %p240
    %s243 = sadd.s32 %s242, 1
    %p246 = scmp.eq.s32.totalorder %s19, 1
    %p247 = scmp.ne.s32.totalorder %s242, %s244
    %p248 = scmp.eq.s32.totalorder %s19, 0
    %p249 = por %p247, %p248
    %p250 = scmp.ne.s32.totalorder %s242, %s244
    %p251 = scmp.eq.s32.totalorder %s24, 1
    %p252 = por %p250, %p251
    %p253 = scmp.ne.s32.totalorder %s244, %s245
    %p254 = scmp.eq.s32.totalorder %s24, 0
    %p255 = por %p253, %p254
    %p256 = scmp.ne.s32.totalorder %s244, %s245
    %p257 = scmp.eq.s32.totalorder %s25, 1
    %p258 = por %p256, %p257
    %p260 = scmp.ne.s32.totalorder %s245, %s259
    %p261 = scmp.eq.s32.totalorder %s25, 0
    %p262 = por %p260, %p261
    %s264 = sadd.s32 %s263, 1
    %p267 = scmp.eq.s32.totalorder %s19, 1
    %p268 = scmp.ne.s32.totalorder %s263, %s265
    %p269 = scmp.eq.s32.totalorder %s19, 0
    %p270 = por %p268, %p269
    %p271 = scmp.ne.s32.totalorder %s263, %s265
    %p272 = scmp.eq.s32.totalorder %s24, 1
    %p273 = por %p271, %p272
    %p274 = scmp.ne.s32.totalorder %s265, %s266
    %p275 = scmp.eq.s32.totalorder %s24, 0
    %p276 = por %p274, %p275
    %p277 = scmp.ne.s32.totalorder %s265, %s266
    %p278 = scmp.eq.s32.totalorder %s25, 1
    %p279 = por %p277, %p278
    %p281 = scmp.ne.s32.totalorder %s266, %s280
    %p282 = scmp.eq.s32.totalorder %s25, 0
    %p283 = por %p281, %p282
    %s285 = sadd.s32 %s284, 1
    %p288 = scmp.eq.s32.totalorder %s19, 1
    %p289 = scmp.ne.s32.totalorder %s284, %s286
    %p290 = scmp.eq.s32.totalorder %s19, 0
    %p291 = por %p289, %p290
    %p292 = scmp.ne.s32.totalorder %s284, %s286
    %p293 = scmp.eq.s32.totalorder %s24, 1
    %p294 = por %p292, %p293
    %p295 = scmp.ne.s32.totalorder %s286, %s287
    %p296 = scmp.eq.s32.totalorder %s24, 0
    %p297 = por %p295, %p296
    %p298 = scmp.ne.s32.totalorder %s286, %s287
    %p299 = scmp.eq.s32.totalorder %s25, 1
    %p300 = por %p298, %p299
    %p302 = scmp.ne.s32.totalorder %s287, %s301
    %p303 = scmp.eq.s32.totalorder %s25, 0
    %p304 = por %p302, %p303
    %s305 = ssub.s32 %s19, %s26
    %p306 = scmp.eq.s32.totalorder %s305, 0
    %s308 = sadd.s32 %s307, 1
    %s309 = scalar_select %p306, %s307, %s308
    %p312 = pneg %p306
    %p313 = scmp.eq.s32.totalorder %s19, 1
    %p314 = por %p312, %p313
    %p315 = scmp.ne.s32.totalorder %s307, %s310
    %p316 = scmp.eq.s32.totalorder %s19, 0
    %p317 = por %p315, %p316
    %p318 = scmp.ne.s32.totalorder %s307, %s310
    %p319 = scmp.eq.s32.totalorder %s24, 1
    %p320 = por %p318, %p319
    %p321 = scmp.ne.s32.totalorder %s310, %s311
    %p322 = scmp.eq.s32.totalorder %s24, 0
    %p323 = por %p321, %p322
    %p324 = scmp.ne.s32.totalorder %s310, %s311
    %p325 = scmp.eq.s32.totalorder %s25, 1
    %p326 = por %p324, %p325
    %p328 = scmp.ne.s32.totalorder %s311, %s327
    %p329 = scmp.eq.s32.totalorder %s25, 0
    %p330 = por %p328, %p329
    %p331 = scmp.le.s32.totalorder 1, %s19
    %p332 = scmp.lt.s32.totalorder %s19, 3
    %p333 = pnand %p331, %p332
    %p334 = pneg %p333
    // Predicated region
    $region9: #{net_new4_forward.1} parent=5 // pred_check
      _
    $region10: #{net_new4_forward.1} parent=5 // pred_check_branch
      %336 = sbr.rel (%p333) target = $region12
    $region11: #{net_new4_forward.1} parent=5 // pred_region
      %s337 = ssub.s32 %s19, 1
      // Predicated region
      $region13: #{net_new4_forward.1} parent=11 // pred_check
        %p338 = pneg %p66
      $region14: #{net_new4_forward.1} parent=11 // pred_check_branch
        %340 = sbr.rel (%p338) target = $region16
      $region15: #{net_new4_forward.1} parent=11 // pred_region
        _
      $region16: #{net_new4_forward.1} parent=11 // pred_fallthru
        _
      // Predicated region
      $region17: #{net_new4_forward.1} parent=11 // pred_check
        %p341 = pneg %p87
      $region18: #{net_new4_forward.1} parent=11 // pred_check_branch
        %343 = sbr.rel (%p341) target = $region20
      $region19: #{net_new4_forward.1} parent=11 // pred_region
        _
      $region20: #{net_new4_forward.1} parent=11 // pred_fallthru
        _
      // Predicated region
      $region21: #{net_new4_forward.1} parent=11 // pred_check
        %p344 = pneg %p108
      $region22: #{net_new4_forward.1} parent=11 // pred_check_branch
        %346 = sbr.rel (%p344) target = $region24
      $region23: #{net_new4_forward.1} parent=11 // pred_region
        _
      $region24: #{net_new4_forward.1} parent=11 // pred_fallthru
        _
      // Predicated region
      $region25: #{net_new4_forward.1} parent=11 // pred_check
        %p347 = pneg %p129
      $region26: #{net_new4_forward.1} parent=11 // pred_check_branch
        %349 = sbr.rel (%p347) target = $region28
      $region27: #{net_new4_forward.1} parent=11 // pred_region
        _
      $region28: #{net_new4_forward.1} parent=11 // pred_fallthru
        _
      // Predicated region
      $region29: #{net_new4_forward.1} parent=11 // pred_check
        %p350 = pneg %p150
      $region30: #{net_new4_forward.1} parent=11 // pred_check_branch
        %352 = sbr.rel (%p350) target = $region32
      $region31: #{net_new4_forward.1} parent=11 // pred_region
        _
      $region32: #{net_new4_forward.1} parent=11 // pred_fallthru
        _
      // Predicated region
      $region33: #{net_new4_forward.1} parent=11 // pred_check
        %p353 = pneg %p171
      $region34: #{net_new4_forward.1} parent=11 // pred_check_branch
        %355 = sbr.rel (%p353) target = $region36
      $region35: #{net_new4_forward.1} parent=11 // pred_region
        _
      $region36: #{net_new4_forward.1} parent=11 // pred_fallthru
        _
      // Predicated region
      $region37: #{net_new4_forward.1} parent=11 // pred_check
        %p356 = pneg %p192
      $region38: #{net_new4_forward.1} parent=11 // pred_check_branch
        %358 = sbr.rel (%p356) target = $region40
      $region39: #{net_new4_forward.1} parent=11 // pred_region
        _
      $region40: #{net_new4_forward.1} parent=11 // pred_fallthru
        _
      // Predicated region
      $region41: #{net_new4_forward.1} parent=11 // pred_check
        %p359 = pneg %p213
      $region42: #{net_new4_forward.1} parent=11 // pred_check_branch
        %361 = sbr.rel (%p359) target = $region44
      $region43: #{net_new4_forward.1} parent=11 // pred_region
        _
      $region44: #{net_new4_forward.1} parent=11 // pred_fallthru
        _
      // Predicated region
      $region45: #{net_new4_forward.1} parent=11 // pred_check
        %p362 = pneg %p234
      $region46: #{net_new4_forward.1} parent=11 // pred_check_branch
        %364 = sbr.rel (%p362) target = $region48
      $region47: #{net_new4_forward.1} parent=11 // pred_region
        _
      $region48: #{net_new4_forward.1} parent=11 // pred_fallthru
        _
      // Predicated region
      $region49: #{net_new4_forward.1} parent=11 // pred_check
        %p365 = pneg %p255
      $region50: #{net_new4_forward.1} parent=11 // pred_check_branch
        %367 = sbr.rel (%p365) target = $region52
      $region51: #{net_new4_forward.1} parent=11 // pred_region
        _
      $region52: #{net_new4_forward.1} parent=11 // pred_fallthru
        _
      // Predicated region
      $region53: #{net_new4_forward.1} parent=11 // pred_check
        %p368 = pneg %p276
      $region54: #{net_new4_forward.1} parent=11 // pred_check_branch
        %370 = sbr.rel (%p368) target = $region56
      $region55: #{net_new4_forward.1} parent=11 // pred_region
        _
      $region56: #{net_new4_forward.1} parent=11 // pred_fallthru
        _
      // Predicated region
      $region57: #{net_new4_forward.1} parent=11 // pred_check
        %p371 = pneg %p297
      $region58: #{net_new4_forward.1} parent=11 // pred_check_branch
        %373 = sbr.rel (%p371) target = $region60
      $region59: #{net_new4_forward.1} parent=11 // pred_region
        _
      $region60: #{net_new4_forward.1} parent=11 // pred_fallthru
        _
    $region12: #{net_new4_forward.1} parent=5 // pred_fallthru
      _
    %p374 = scmp.lt.s32.totalorder %s19, 2
    // Predicated region
    $region61: #{net_new4_forward.1} parent=5 // pred_check
      %p375 = pneg %p374
    $region62: #{net_new4_forward.1} parent=5 // pred_check_branch
      %377 = sbr.rel (%p375) target = $region64
    $region63: #{net_new4_forward.1} parent=5 // pred_region
      // Predicated region
      $region65: #{net_new4_forward.1} parent=63 // pred_check
        %p378 = pneg %p39
      $region66: #{net_new4_forward.1} parent=63 // pred_check_branch
        %380 = sbr.rel (%p378) target = $region68
      $region67: #{net_new4_forward.1} parent=63 // pred_region
        %s381 = smul.u32 2, %s19
        %p382 = scmp.lt.s32.totalorder %s381, 3
        %s383 = scalar_select %p382, %s381, 3
        %s384 = smul.addr %s383, 2
        %s385 = smul.addr %s384, 8
        %s386 = scalar_lea.vmem %s0, %s385
        %s387 = smul.u32 2, %s19
      $region68: #{net_new4_forward.1} parent=63 // pred_fallthru
        _
    $region64: #{net_new4_forward.1} parent=5 // pred_fallthru
      _
    %p388 = scmp.le.s32.totalorder 1, %s19
    %p389 = scmp.lt.s32.totalorder %s19, 3
    %p390 = pnand %p388, %p389
    %p391 = pneg %p390
    // Predicated region
    $region69: #{net_new4_forward.1} parent=5 // pred_check
      _
    $region70: #{net_new4_forward.1} parent=5 // pred_check_branch
      %393 = sbr.rel (%p390) target = $region72
    $region71: #{net_new4_forward.1} parent=5 // pred_region
      %s394 = ssub.s32 %s19, 1
      %s395 = smul.u32 2, %s24
      %p396 = scmp.lt.s32.totalorder %s395, 3
      %s397 = scalar_select %p396, %s395, 3
      %s398 = smul.addr %s397, 2
      %s399 = smul.addr %s398, 8
      %s400 = scalar_lea.vmem %s0, %s399
      %p401 = pneg %p45
      %p402 = pneg %p42
      %p403 = pneg %p66
      %p404 = pneg %p63
      %p405 = pneg %p87
      %p406 = pneg %p84
      %p407 = pneg %p108
      %p408 = pneg %p105
      %p409 = pneg %p129
      %p410 = pneg %p126
      %p411 = pneg %p150
      %p412 = pneg %p147
      %p413 = pneg %p171
      %p414 = pneg %p168
      %p415 = pneg %p192
      %p416 = pneg %p189
      %p417 = pneg %p213
      %p418 = pneg %p210
      %p419 = pneg %p234
      %p420 = pneg %p231
      %p421 = pneg %p255
      %p422 = pneg %p252
      %p423 = pneg %p276
      %p424 = pneg %p273
      %p425 = pneg %p297
      %p426 = pneg %p294
      %p427 = pneg %p323
      %p428 = pneg %p320
      %s429 = smul.u32 2, %s24
      %p430 = scmp.lt.s32.totalorder %s429, 3
      %s431 = scalar_select %p430, %s429, 3
      %s432 = smul.addr %s431, 2
      %s433 = smul.addr %s432, 8
      %s434 = scalar_lea.vmem %s13, %s433
      %s435 = smul.u32 2, %s24
      %p436 = scmp.lt.s32.totalorder %s435, 3
      %s437 = scalar_select %p436, %s435, 3
      %s438 = smul.addr %s437, 2
      %s439 = smul.addr %s438, 8
      %s440 = scalar_lea.vmem %s0, %s439
      %s441 = smul.u32 2, %s24
      %s442 = smul.u32 2, %s24
      %p443 = scmp.lt.s32.totalorder %s442, 3
      %s444 = scalar_select %p443, %s442, 3
      %s445 = smul.addr %s444, 2
      %s446 = smul.addr %s445, 8
      %s447 = scalar_lea.vmem %s13, %s446
      %s448 = smul.u32 2, %s24
      %v449 = vld [vmem:[%s440] sm:$0xff]
      %v450 = vld [vmem:[%s440 + $0x8] sm:$0xff]
      %vm453 = vcmask 1041408
      %v454 = vrot.slane %v449, 6
      %v455 = vrot.slane %v450, 6
      %v456 = vsel %vm453, %v454, %v455
      %vm460 = vcmask 130050
      %461 = vst.msk [vmem:[#allocation2] sm:$0xfc] %vm460, %v454
      %vm462 = vcmask 130048
      %463 = vst.msk [vmem:[#allocation2 + $0x10] sm:$0xff] %vm462, %v456
      %vm464 = vcmask 123904
      %465 = vst.msk [vmem:[#allocation2 + $0x20] sm:$0x3] %vm464, %v455
      %s466 = scalar_lea.vmem %s440, 16
      %v467 = vld [vmem:[%s466] sm:$0xff]
      %v468 = vld [vmem:[%s466 + $0x8] sm:$0xff]
      %v471 = vrot.slane %v467, 6
      %v472 = vrot.slane %v468, 6
      %v473 = vsel %vm453, %v471, %v472
      %477 = vst.msk [vmem:[#allocation2 + $0x30] sm:$0xfc] %vm460, %v471
      %478 = vst.msk [vmem:[#allocation2 + $0x40] sm:$0xff] %vm462, %v473
      %479 = vst.msk [vmem:[#allocation2 + $0x50] sm:$0x3] %vm464, %v472
      %v480 = vld [vmem:[#allocation2] sm:$0xfc]
      %v481 = vld [vmem:[#allocation2 + $0x10] sm:$0xff]
      %v482 = vld [vmem:[#allocation2 + $0x20] sm:$0xff]
      %v483 = vld [vmem:[#allocation2 + $0x30] sm:$0xff]
      %v484 = vld [vmem:[#allocation2 + $0x40] sm:$0x3f]
      %v485 = vld [vmem:[%s1] sm:$0xff]
      %v486 = vld [vmem:[%s1 + $0x8] sm:$0xff]
      %v487 = vld [vmem:[%s1 + $0x10] sm:$0xff]
      %v488 = vld [vmem:[%s1 + $0x18] sm:$0xff]
      %v489 = vld [vmem:[#allocation2] sm:$0xf8]
      %v490 = vld [vmem:[#allocation2 + $0x40] sm:$0x7f]
      %s491 = scalar_lea.vmem %s1, 32
      %v492 = vld [vmem:[%s491] sm:$0xff]
      %v493 = vld [vmem:[%s491 + $0x8] sm:$0xff]
      %v494 = vld [vmem:[%s491 + $0x10] sm:$0xff]
      %v495 = vld [vmem:[%s491 + $0x18] sm:$0xff]
      %vm501 = vcmask 1044480
      %v502 = vrot.slane %v489, 3
      %v503 = vrot.slane %v481, 3
      %v504 = vsel %vm501, %v502, %v503
      %v505 = vrot.slane %v482, 3
      %v506 = vsel %vm501, %v503, %v505
      %v507 = vrot.slane %v483, 3
      %v508 = vsel %vm501, %v505, %v507
      %v509 = vrot.slane %v490, 3
      %v510 = vsel %vm501, %v507, %v509
      %v511 = vsel %vm462, %v504, 0
      %v513 = vsel %vm462, %v506, 0
      %v515 = vsel %vm462, %v508, 0
      %v517 = vsel %vm462, %v510, 0
      %v519 = vsel %vm462, %v509, 0
      %521 = vmatprep.subr.mxu0 %v493
      %522 = vmatpush1.msra.mxu0 %v492
      %523 = vmatprep.subr.mxu0 %v495
      %524 = vmatpush1.msra.mxu0 %v494
      %525 = vmatprep.subr.mxu0 0.0
      %526 = vmatpush1.msra.mxu0 0.0
      %527 = vmatprep.subr.mxu0 0.0
      %528 = vmatpush1.msra.mxu0 0.0
      %529 = vmatprep.subr.mxu0 0.0
      %530 = vmatpush1.msra.mxu0 0.0
      %531 = vmatprep.subr.mxu0 0.0
      %532 = vmatpush1.msra.mxu0 0.0
      %533 = vmatprep.subr.mxu0 0.0
      %534 = vmatpush1.msra.mxu0 0.0
      %535 = vmatprep.subr.mxu0 0.0
      %536 = vmatpush1.msra.mxu0 0.0
      %537 = vmatprep.subr.mxu0 0.0
      %538 = vmatpush1.msra.mxu0 0.0
      %539 = vmatprep.subr.mxu0 0.0
      %540 = vmatpush1.msra.mxu0 0.0
      %541 = vmatprep.subr.mxu0 0.0
      %542 = vmatpush1.msra.mxu0 0.0
      %543 = vmatprep.subr.mxu0 0.0
      %544 = vmatpush1.msra.mxu0 0.0
      %545 = vmatprep.subr.mxu0 0.0
      %546 = vmatpush1.msra.mxu0 0.0
      %547 = vmatprep.subr.mxu0 0.0
      %548 = vmatpush1.msra.mxu0 0.0
      %549 = vmatprep.subr.mxu0 0.0
      %550 = vmatpush1.msra.mxu0 0.0
      %551 = vmatprep.subr.mxu0 0.0
      %552 = vmatpush1.msra.mxu0 0.0
      %553 = vmatprep.subr.mxu0 0.0
      %554 = vmatpush1.msra.mxu0 0.0
      %555 = vmatprep.subr.mxu0 0.0
      %556 = vmatpush1.msra.mxu0 0.0
      %557 = vmatprep.subr.mxu0 0.0
      %558 = vmatpush1.msra.mxu0 0.0
      %559 = vmatprep.subr.mxu0 0.0
      %560 = vmatpush1.msra.mxu0 0.0
      %561 = vmatprep.subr.mxu0 0.0
      %562 = vmatpush1.msra.mxu0 0.0
      %563 = vmatprep.subr.mxu0 0.0
      %564 = vmatpush1.msra.mxu0 0.0
      %565 = vmatprep.subr.mxu0 0.0
      %566 = vmatpush1.msra.mxu0 0.0
      %567 = vmatprep.subr.mxu0 0.0
      %568 = vmatpush1.msra.mxu0 0.0
      %569 = vmatprep.subr.mxu0 0.0
      %570 = vmatpush1.msra.mxu0 0.0
      %571 = vmatprep.subr.mxu0 0.0
      %572 = vmatpush1.msra.mxu0 0.0
      %573 = vmatprep.subr.mxu0 0.0
      %574 = vmatpush1.msra.mxu0 0.0
      %575 = vmatprep.subr.mxu0 0.0
      %576 = vmatpush1.msra.mxu0 0.0
      %577 = vmatprep.subr.mxu0 0.0
      %578 = vmatpush1.msra.mxu0 0.0
      %579 = vmatprep.subr.mxu0 0.0
      %580 = vmatpush1.msra.mxu0 0.0
      %581 = vmatprep.subr.mxu0 0.0
      %582 = vmatpush1.msra.mxu0 0.0
      %583 = vmatprep.subr.mxu0 0.0
      %584 = vmatpush1.msra.mxu0 0.0
      %585 = vmatprep.mubr.f32.mxu0 0.0
      %586 = vmatmul.mubr.f32.gmra.mrb[0].mxu0 %v511
      %v587 = vpop.f32.mrb[0].mxu0
      %v588 = vadd.f32 0.0, %v587
      %v589 = vpop.f32.mrb[0].mxu0
      %v590 = vadd.f32 0.0, %v589
      %591 = vmatprep.mubr.f32.mxu0 0.0
      %592 = vmatmul.mubr.f32.gmra.mrb[0].mxu0 %v513
      %v593 = vpop.f32.mrb[0].mxu0
      %v594 = vadd.f32 0.0, %v593
      %v595 = vpop.f32.mrb[0].mxu0
      %v596 = vadd.f32 0.0, %v595
      %597 = vmatprep.mubr.f32.mxu0 0.0
      %598 = vmatmul.mubr.f32.gmra.mrb[0].mxu0 %v515
      %v599 = vpop.f32.mrb[0].mxu0
      %v600 = vpop.f32.mrb[0].mxu0
      %601 = vmatprep.mubr.f32.mxu0 0.0
      %602 = vmatmul.mubr.f32.gmra.mrb[0].mxu0 %v517
      %v603 = vpop.f32.mrb[0].mxu0
      %v604 = vadd.f32 0.0, %v603
      %v605 = vpop.f32.mrb[0].mxu0
      %v606 = vadd.f32 0.0, %v605
      %607 = vmatprep.mubr.f32.mxu0 0.0
      %608 = vmatmul.mubr.f32.gmra.mrb[0].mxu0 %v519
      %v609 = vpop.f32.mrb[0].mxu0
      %v610 = vadd.f32 0.0, %v609
      %v611 = vpop.f32.mrb[0].mxu0
      %v612 = vadd.f32 0.0, %v611
      %613 = vdwg.mxu0
      %vm616 = vcmask 1045504
      %v617 = vrot.slane %v480, 2
      %v618 = vrot.slane %v481, 2
      %v619 = vsel %vm616, %v617, %v618
      %v620 = vrot.slane %v482, 2
      %v621 = vsel %vm616, %v618, %v620
      %v622 = vrot.slane %v483, 2
      %v623 = vsel %vm616, %v620, %v622
      %v624 = vrot.slane %v484, 2
      %v625 = vsel %vm616, %v622, %v624
      %v626 = vsel %vm462, %v619, 0
      %v628 = vsel %vm462, %v621, 0
      %v630 = vsel %vm462, %v623, 0
      %v632 = vsel %vm462, %v625, 0
      %v634 = vsel %vm462, %v624, 0
      %636 = vmatprep.subr.mxu0 %v486
      %637 = vmatpush1.msra.mxu0 %v485
      %638 = vmatprep.subr.mxu0 %v488
      %639 = vmatpush1.msra.mxu0 %v487
      %640 = vmatprep.subr.mxu0 0.0
      %641 = vmatpush1.msra.mxu0 0.0
      %642 = vmatprep.subr.mxu0 0.0
      %643 = vmatpush1.msra.mxu0 0.0
      %644 = vmatprep.subr.mxu0 0.0
      %645 = vmatpush1.msra.mxu0 0.0
      %646 = vmatprep.subr.mxu0 0.0
      %647 = vmatpush1.msra.mxu0 0.0
      %648 = vmatprep.subr.mxu0 0.0
      %649 = vmatpush1.msra.mxu0 0.0
      %650 = vmatprep.subr.mxu0 0.0
      %651 = vmatpush1.msra.mxu0 0.0
      %652 = vmatprep.subr.mxu0 0.0
      %653 = vmatpush1.msra.mxu0 0.0
      %654 = vmatprep.subr.mxu0 0.0
      %655 = vmatpush1.msra.mxu0 0.0
      %656 = vmatprep.subr.mxu0 0.0
      %657 = vmatpush1.msra.mxu0 0.0
      %658 = vmatprep.subr.mxu0 0.0
      %659 = vmatpush1.msra.mxu0 0.0
      %660 = vmatprep.subr.mxu0 0.0
      %661 = vmatpush1.msra.mxu0 0.0
      %662 = vmatprep.subr.mxu0 0.0
      %663 = vmatpush1.msra.mxu0 0.0
      %664 = vmatprep.subr.mxu0 0.0
      %665 = vmatpush1.msra.mxu0 0.0
      %666 = vmatprep.subr.mxu0 0.0
      %667 = vmatpush1.msra.mxu0 0.0
      %668 = vmatprep.subr.mxu0 0.0
      %669 = vmatpush1.msra.mxu0 0.0
      %670 = vmatprep.subr.mxu0 0.0
      %671 = vmatpush1.msra.mxu0 0.0
      %672 = vmatprep.subr.mxu0 0.0
      %673 = vmatpush1.msra.mxu0 0.0
      %674 = vmatprep.subr.mxu0 0.0
      %675 = vmatpush1.msra.mxu0 0.0
      %676 = vmatprep.subr.mxu0 0.0
      %677 = vmatpush1.msra.mxu0 0.0
      %678 = vmatprep.subr.mxu0 0.0
      %679 = vmatpush1.msra.mxu0 0.0
      %680 = vmatprep.subr.mxu0 0.0
      %681 = vmatpush1.msra.mxu0 0.0
      %682 = vmatprep.subr.mxu0 0.0
      %683 = vmatpush1.msra.mxu0 0.0
      %684 = vmatprep.subr.mxu0 0.0
      %685 = vmatpush1.msra.mxu0 0.0
      %686 = vmatprep.subr.mxu0 0.0
      %687 = vmatpush1.msra.mxu0 0.0
      %688 = vmatprep.subr.mxu0 0.0
      %689 = vmatpush1.msra.mxu0 0.0
      %690 = vmatprep.subr.mxu0 0.0
      %691 = vmatpush1.msra.mxu0 0.0
      %692 = vmatprep.subr.mxu0 0.0
      %693 = vmatpush1.msra.mxu0 0.0
      %694 = vmatprep.subr.mxu0 0.0
      %695 = vmatpush1.msra.mxu0 0.0
      %696 = vmatprep.subr.mxu0 0.0
      %697 = vmatpush1.msra.mxu0 0.0
      %698 = vmatprep.subr.mxu0 0.0
      %699 = vmatpush1.msra.mxu0 0.0
      %700 = vmatprep.mubr.f32.mxu0 0.0
      %701 = vmatmul.mubr.f32.gmra.mrb[0].mxu0 %v626
      %v702 = vpop.f32.mrb[0].mxu0
      %v703 = vadd.f32 %v588, %v702
      %v704 = vpop.f32.mrb[0].mxu0
      %v705 = vadd.f32 %v590, %v704
      %706 = vmatprep.mubr.f32.mxu0 0.0
      %707 = vmatmul.mubr.f32.gmra.mrb[0].mxu0 %v628
      %v708 = vpop.f32.mrb[0].mxu0
      %v709 = vadd.f32 %v594, %v708
      %v710 = vpop.f32.mrb[0].mxu0
      %v711 = vadd.f32 %v596, %v710
      %712 = vmatprep.mubr.f32.mxu0 0.0
      %713 = vmatmul.mubr.f32.gmra.mrb[0].mxu0 %v630
      %v714 = vpop.f32.mrb[0].mxu0
      %v715 = vpop.f32.mrb[0].mxu0
      %716 = vmatprep.mubr.f32.mxu0 0.0
      %717 = vmatmul.mubr.f32.gmra.mrb[0].mxu0 %v632
      %v718 = vpop.f32.mrb[0].mxu0
      %v719 = vadd.f32 %v604, %v718
      %v720 = vpop.f32.mrb[0].mxu0
      %v721 = vadd.f32 %v606, %v720
      %722 = vmatprep.mubr.f32.mxu0 0.0
      %723 = vmatmul.mubr.f32.gmra.mrb[0].mxu0 %v634
      %v724 = vpop.f32.mrb[0].mxu0
      %v725 = vadd.f32 %v610, %v724
      %v726 = vpop.f32.mrb[0].mxu0
      %v727 = vadd.f32 %v612, %v726
      %728 = vdwg.mxu0
      %v729 = vld [vmem:[#allocation2] sm:$0xf0]
      %v730 = vld [vmem:[#allocation2 + $0x40] sm:$0xff]
      %s731 = scalar_lea.vmem %s1, 64
      %v732 = vld [vmem:[%s731] sm:$0xff]
      %v733 = vld [vmem:[%s731 + $0x8] sm:$0xff]
      %v734 = vld [vmem:[%s731 + $0x10] sm:$0xff]
      %v735 = vld [vmem:[%s731 + $0x18] sm:$0xff]
      %vm738 = vcmask 1043456
      %v739 = vrot.slane %v729, 4
      %v740 = vrot.slane %v481, 4
      %v741 = vsel %vm738, %v739, %v740
      %v742 = vrot.slane %v482, 4
      %v743 = vsel %vm738, %v740, %v742
      %v744 = vrot.slane %v483, 4
      %v745 = vsel %vm738, %v742, %v744
      %v746 = vrot.slane %v730, 4
      %v747 = vsel %vm738, %v744, %v746
      %v748 = vsel %vm462, %v741, 0
      %v750 = vsel %vm462, %v743, 0
      %v752 = vsel %vm462, %v745, 0
      %v754 = vsel %vm462, %v747, 0
      %v756 = vsel %vm462, %v746, 0
      %758 = vmatprep.subr.mxu0 %v733
      %759 = vmatpush1.msra.mxu0 %v732
      %760 = vmatprep.subr.mxu0 %v735
      %761 = vmatpush1.msra.mxu0 %v734
      %762 = vmatprep.subr.mxu0 0.0
      %763 = vmatpush1.msra.mxu0 0.0
      %764 = vmatprep.subr.mxu0 0.0
      %765 = vmatpush1.msra.mxu0 0.0
      %766 = vmatprep.subr.mxu0 0.0
      %767 = vmatpush1.msra.mxu0 0.0
      %768 = vmatprep.subr.mxu0 0.0
      %769 = vmatpush1.msra.mxu0 0.0
      %770 = vmatprep.subr.mxu0 0.0
      %771 = vmatpush1.msra.mxu0 0.0
      %772 = vmatprep.subr.mxu0 0.0
      %773 = vmatpush1.msra.mxu0 0.0
      %774 = vmatprep.subr.mxu0 0.0
      %775 = vmatpush1.msra.mxu0 0.0
      %776 = vmatprep.subr.mxu0 0.0
      %777 = vmatpush1.msra.mxu0 0.0
      %778 = vmatprep.subr.mxu0 0.0
      %779 = vmatpush1.msra.mxu0 0.0
      %780 = vmatprep.subr.mxu0 0.0
      %781 = vmatpush1.msra.mxu0 0.0
      %782 = vmatprep.subr.mxu0 0.0
      %783 = vmatpush1.msra.mxu0 0.0
      %784 = vmatprep.subr.mxu0 0.0
      %785 = vmatpush1.msra.mxu0 0.0
      %786 = vmatprep.subr.mxu0 0.0
      %787 = vmatpush1.msra.mxu0 0.0
      %788 = vmatprep.subr.mxu0 0.0
      %789 = vmatpush1.msra.mxu0 0.0
      %790 = vmatprep.subr.mxu0 0.0
      %791 = vmatpush1.msra.mxu0 0.0
      %792 = vmatprep.subr.mxu0 0.0
      %793 = vmatpush1.msra.mxu0 0.0
      %794 = vmatprep.subr.mxu0 0.0
      %795 = vmatpush1.msra.mxu0 0.0
      %796 = vmatprep.subr.mxu0 0.0
      %797 = vmatpush1.msra.mxu0 0.0
      %798 = vmatprep.subr.mxu0 0.0
      %799 = vmatpush1.msra.mxu0 0.0
      %800 = vmatprep.subr.mxu0 0.0
      %801 = vmatpush1.msra.mxu0 0.0
      %802 = vmatprep.subr.mxu0 0.0
      %803 = vmatpush1.msra.mxu0 0.0
      %804 = vmatprep.subr.mxu0 0.0
      %805 = vmatpush1.msra.mxu0 0.0
      %806 = vmatprep.subr.mxu0 0.0
      %807 = vmatpush1.msra.mxu0 0.0
      %808 = vmatprep.subr.mxu0 0.0
      %809 = vmatpush1.msra.mxu0 0.0
      %810 = vmatprep.subr.mxu0 0.0
      %811 = vmatpush1.msra.mxu0 0.0
      %812 = vmatprep.subr.mxu0 0.0
      %813 = vmatpush1.msra.mxu0 0.0
      %814 = vmatprep.subr.mxu0 0.0
      %815 = vmatpush1.msra.mxu0 0.0
      %816 = vmatprep.subr.mxu0 0.0
      %817 = vmatpush1.msra.mxu0 0.0
      %818 = vmatprep.subr.mxu0 0.0
      %819 = vmatpush1.msra.mxu0 0.0
      %820 = vmatprep.subr.mxu0 0.0
      %821 = vmatpush1.msra.mxu0 0.0
      %822 = vmatprep.mubr.f32.mxu0 0.0
      %823 = vmatmul.mubr.f32.gmra.mrb[0].mxu0 %v748
      %v824 = vpop.f32.mrb[0].mxu0
      %v825 = vadd.f32 0.0, %v824
      %v826 = vpop.f32.mrb[0].mxu0
      %v827 = vadd.f32 0.0, %v826
      %828 = vmatprep.mubr.f32.mxu0 0.0
      %829 = vmatmul.mubr.f32.gmra.mrb[0].mxu0 %v750
      %v830 = vpop.f32.mrb[0].mxu0
      %v831 = vadd.f32 0.0, %v830
      %v832 = vpop.f32.mrb[0].mxu0
      %v833 = vadd.f32 0.0, %v832
      %834 = vmatprep.mubr.f32.mxu0 0.0
      %835 = vmatmul.mubr.f32.gmra.mrb[0].mxu0 %v752
      %v836 = vpop.f32.mrb[0].mxu0
      %v837 = vpop.f32.mrb[0].mxu0
      %838 = vmatprep.mubr.f32.mxu0 0.0
      %839 = vmatmul.mubr.f32.gmra.mrb[0].mxu0 %v754
      %v840 = vpop.f32.mrb[0].mxu0
      %v841 = vadd.f32 0.0, %v840
      %v842 = vpop.f32.mrb[0].mxu0
      %v843 = vadd.f32 0.0, %v842
      %844 = vmatprep.mubr.f32.mxu0 0.0
      %845 = vmatmul.mubr.f32.gmra.mrb[0].mxu0 %v756
      %v846 = vpop.f32.mrb[0].mxu0
      %v847 = vadd.f32 0.0, %v846
      %v848 = vpop.f32.mrb[0].mxu0
      %v849 = vadd.f32 0.0, %v848
      %850 = vdwg.mxu0
      %v851 = vadd.f32 %v703, %v825
      %v852 = vadd.f32 %v705, %v827
      %v853 = vadd.f32 %v709, %v831
      %v854 = vadd.f32 %v711, %v833
      %v855 = vadd.f32 %v719, %v841
      %v856 = vadd.f32 %v721, %v843
      %v857 = vadd.f32 %v725, %v847
      %v858 = vadd.f32 %v727, %v849
      %v859 = vld [vmem:[#allocation2] sm:$0xe0]
      %v860 = vld [vmem:[#allocation2 + $0x10] sm:$0xff]
      %v861 = vld [vmem:[#allocation2 + $0x20] sm:$0xff]
      %v862 = vld [vmem:[#allocation2 + $0x30] sm:$0xff]
      %v863 = vld [vmem:[#allocation2 + $0x40] sm:$0xff]
      %v864 = vld [vmem:[#allocation2 + $0x50] sm:$0x1]
      %s865 = scalar_lea.vmem %s1, 96
      %v866 = vld [vmem:[%s865] sm:$0xff]
      %v867 = vld [vmem:[%s865 + $0x8] sm:$0xff]
      %v868 = vld [vmem:[%s865 + $0x10] sm:$0xff]
      %v869 = vld [vmem:[%s865 + $0x18] sm:$0xff]
      %vm876 = vcmask 1042432
      %v877 = vrot.slane %v859, 5
      %v878 = vrot.slane %v860, 5
      %v879 = vsel %vm876, %v877, %v878
      %v880 = vrot.slane %v861, 5
      %v881 = vsel %vm876, %v878, %v880
      %v882 = vrot.slane %v862, 5
      %v883 = vsel %vm876, %v880, %v882
      %v884 = vrot.slane %v863, 5
      %v885 = vsel %vm876, %v882, %v884
      %v886 = vrot.slane %v864, 5
      %v887 = vsel %vm876, %v884, %v886
      %v888 = vsel %vm462, %v879, 0
      %v890 = vsel %vm462, %v881, 0
      %v892 = vsel %vm462, %v883, 0
      %v894 = vsel %vm462, %v885, 0
      %v896 = vsel %vm462, %v887, 0
      %898 = vmatprep.subr.mxu0 %v867
      %899 = vmatpush1.msra.mxu0 %v866
      %900 = vmatprep.subr.mxu0 %v869
      %901 = vmatpush1.msra.mxu0 %v868
      %902 = vmatprep.subr.mxu0 0.0
      %903 = vmatpush1.msra.mxu0 0.0
      %904 = vmatprep.subr.mxu0 0.0
      %905 = vmatpush1.msra.mxu0 0.0
      %906 = vmatprep.subr.mxu0 0.0
      %907 = vmatpush1.msra.mxu0 0.0
      %908 = vmatprep.subr.mxu0 0.0
      %909 = vmatpush1.msra.mxu0 0.0
      %910 = vmatprep.subr.mxu0 0.0
      %911 = vmatpush1.msra.mxu0 0.0
      %912 = vmatprep.subr.mxu0 0.0
      %913 = vmatpush1.msra.mxu0 0.0
      %914 = vmatprep.subr.mxu0 0.0
      %915 = vmatpush1.msra.mxu0 0.0
      %916 = vmatprep.subr.mxu0 0.0
      %917 = vmatpush1.msra.mxu0 0.0
      %918 = vmatprep.subr.mxu0 0.0
      %919 = vmatpush1.msra.mxu0 0.0
      %920 = vmatprep.subr.mxu0 0.0
      %921 = vmatpush1.msra.mxu0 0.0
      %922 = vmatprep.subr.mxu0 0.0
      %923 = vmatpush1.msra.mxu0 0.0
      %924 = vmatprep.subr.mxu0 0.0
      %925 = vmatpush1.msra.mxu0 0.0
      %926 = vmatprep.subr.mxu0 0.0
      %927 = vmatpush1.msra.mxu0 0.0
      %928 = vmatprep.subr.mxu0 0.0
      %929 = vmatpush1.msra.mxu0 0.0
      %930 = vmatprep.subr.mxu0 0.0
      %931 = vmatpush1.msra.mxu0 0.0
      %932 = vmatprep.subr.mxu0 0.0
      %933 = vmatpush1.msra.mxu0 0.0
      %934 = vmatprep.subr.mxu0 0.0
      %935 = vmatpush1.msra.mxu0 0.0
      %936 = vmatprep.subr.mxu0 0.0
      %937 = vmatpush1.msra.mxu0 0.0
      %938 = vmatprep.subr.mxu0 0.0
      %939 = vmatpush1.msra.mxu0 0.0
      %940 = vmatprep.subr.mxu0 0.0
      %941 = vmatpush1.msra.mxu0 0.0
      %942 = vmatprep.subr.mxu0 0.0
      %943 = vmatpush1.msra.mxu0 0.0
      %944 = vmatprep.subr.mxu0 0.0
      %945 = vmatpush1.msra.mxu0 0.0
      %946 = vmatprep.subr.mxu0 0.0
      %947 = vmatpush1.msra.mxu0 0.0
      %948 = vmatprep.subr.mxu0 0.0
      %949 = vmatpush1.msra.mxu0 0.0
      %950 = vmatprep.subr.mxu0 0.0
      %951 = vmatpush1.msra.mxu0 0.0
      %952 = vmatprep.subr.mxu0 0.0
      %953 = vmatpush1.msra.mxu0 0.0
      %954 = vmatprep.subr.mxu0 0.0
      %955 = vmatpush1.msra.mxu0 0.0
      %956 = vmatprep.subr.mxu0 0.0
      %957 = vmatpush1.msra.mxu0 0.0
      %958 = vmatprep.subr.mxu0 0.0
      %959 = vmatpush1.msra.mxu0 0.0
      %960 = vmatprep.subr.mxu0 0.0
      %961 = vmatpush1.msra.mxu0 0.0
      %962 = vmatprep.mubr.f32.mxu0 0.0
      %963 = vmatmul.mubr.f32.gmra.mrb[0].mxu0 %v888
      %v964 = vpop.f32.mrb[0].mxu0
      %v965 = vadd.f32 0.0, %v964
      %v966 = vpop.f32.mrb[0].mxu0
      %v967 = vadd.f32 0.0, %v966
      %968 = vmatprep.mubr.f32.mxu0 0.0
      %969 = vmatmul.mubr.f32.gmra.mrb[0].mxu0 %v890
      %v970 = vpop.f32.mrb[0].mxu0
      %v971 = vadd.f32 0.0, %v970
      %v972 = vpop.f32.mrb[0].mxu0
      %v973 = vadd.f32 0.0, %v972
      %974 = vmatprep.mubr.f32.mxu0 0.0
      %975 = vmatmul.mubr.f32.gmra.mrb[0].mxu0 %v892
      %v976 = vpop.f32.mrb[0].mxu0
      %v977 = vpop.f32.mrb[0].mxu0
      %978 = vmatprep.mubr.f32.mxu0 0.0
      %979 = vmatmul.mubr.f32.gmra.mrb[0].mxu0 %v894
      %v980 = vpop.f32.mrb[0].mxu0
      %v981 = vadd.f32 0.0, %v980
      %v982 = vpop.f32.mrb[0].mxu0
      %v983 = vadd.f32 0.0, %v982
      %984 = vmatprep.mubr.f32.mxu0 0.0
      %985 = vmatmul.mubr.f32.gmra.mrb[0].mxu0 %v896
      %v986 = vpop.f32.mrb[0].mxu0
      %v987 = vadd.f32 0.0, %v986
      %v988 = vpop.f32.mrb[0].mxu0
      %v989 = vadd.f32 0.0, %v988
      %990 = vdwg.mxu0
      %v991 = vadd.f32 %v851, %v965
      %v992 = vadd.f32 %v852, %v967
      %v993 = vadd.f32 %v853, %v971
      %v994 = vadd.f32 %v854, %v973
      %v995 = vadd.f32 %v855, %v981
      %v996 = vadd.f32 %v856, %v983
      %v997 = vadd.f32 %v857, %v987
      %v998 = vadd.f32 %v858, %v989
      %v999 = vld [vmem:[#allocation2] sm:$0xc0]
      %v1000 = vld [vmem:[#allocation2 + $0x50] sm:$0x3]
      %s1001 = scalar_lea.vmem %s1, 128
      %v1002 = vld [vmem:[%s1001] sm:$0xff]
      %v1003 = vld [vmem:[%s1001 + $0x8] sm:$0xff]
      %v1004 = vld [vmem:[%s1001 + $0x10] sm:$0xff]
      %v1005 = vld [vmem:[%s1001 + $0x18] sm:$0xff]
      %v1008 = vrot.slane %v999, 6
      %v1009 = vrot.slane %v860, 6
      %v1010 = vsel %vm453, %v1008, %v1009
      %v1011 = vrot.slane %v861, 6
      %v1012 = vsel %vm453, %v1009, %v1011
      %v1013 = vrot.slane %v862, 6
      %v1014 = vsel %vm453, %v1011, %v1013
      %v1015 = vrot.slane %v863, 6
      %v1016 = vsel %vm453, %v1013, %v1015
      %v1017 = vrot.slane %v1000, 6
      %v1018 = vsel %vm453, %v1015, %v1017
      %v1019 = vsel %vm462, %v1010, 0
      %v1021 = vsel %vm462, %v1012, 0
      %v1023 = vsel %vm462, %v1014, 0
      %v1025 = vsel %vm462, %v1016, 0
      %v1027 = vsel %vm462, %v1018, 0
      %1029 = vmatprep.subr.mxu0 %v1003
      %1030 = vmatpush1.msra.mxu0 %v1002
      %1031 = vmatprep.subr.mxu0 %v1005
      %1032 = vmatpush1.msra.mxu0 %v1004
      %1033 = vmatprep.subr.mxu0 0.0
      %1034 = vmatpush1.msra.mxu0 0.0
      %1035 = vmatprep.subr.mxu0 0.0
      %1036 = vmatpush1.msra.mxu0 0.0
      %1037 = vmatprep.subr.mxu0 0.0
      %1038 = vmatpush1.msra.mxu0 0.0
      %1039 = vmatprep.subr.mxu0 0.0
      %1040 = vmatpush1.msra.mxu0 0.0
      %1041 = vmatprep.subr.mxu0 0.0
      %1042 = vmatpush1.msra.mxu0 0.0
      %1043 = vmatprep.subr.mxu0 0.0
      %1044 = vmatpush1.msra.mxu0 0.0
      %1045 = vmatprep.subr.mxu0 0.0
      %1046 = vmatpush1.msra.mxu0 0.0
      %1047 = vmatprep.subr.mxu0 0.0
      %1048 = vmatpush1.msra.mxu0 0.0
      %1049 = vmatprep.subr.mxu0 0.0
      %1050 = vmatpush1.msra.mxu0 0.0
      %1051 = vmatprep.subr.mxu0 0.0
      %1052 = vmatpush1.msra.mxu0 0.0
      %1053 = vmatprep.subr.mxu0 0.0
      %1054 = vmatpush1.msra.mxu0 0.0
      %1055 = vmatprep.subr.mxu0 0.0
      %1056 = vmatpush1.msra.mxu0 0.0
      %1057 = vmatprep.subr.mxu0 0.0
      %1058 = vmatpush1.msra.mxu0 0.0
      %1059 = vmatprep.subr.mxu0 0.0
      %1060 = vmatpush1.msra.mxu0 0.0
      %1061 = vmatprep.subr.mxu0 0.0
      %1062 = vmatpush1.msra.mxu0 0.0
      %1063 = vmatprep.subr.mxu0 0.0
      %1064 = vmatpush1.msra.mxu0 0.0
      %1065 = vmatprep.subr.mxu0 0.0
      %1066 = vmatpush1.msra.mxu0 0.0
      %1067 = vmatprep.subr.mxu0 0.0
      %1068 = vmatpush1.msra.mxu0 0.0
      %1069 = vmatprep.subr.mxu0 0.0
      %1070 = vmatpush1.msra.mxu0 0.0
      %1071 = vmatprep.subr.mxu0 0.0
      %1072 = vmatpush1.msra.mxu0 0.0
      %1073 = vmatprep.subr.mxu0 0.0
      %1074 = vmatpush1.msra.mxu0 0.0
      %1075 = vmatprep.subr.mxu0 0.0
      %1076 = vmatpush1.msra.mxu0 0.0
      %1077 = vmatprep.subr.mxu0 0.0
      %1078 = vmatpush1.msra.mxu0 0.0
      %1079 = vmatprep.subr.mxu0 0.0
      %1080 = vmatpush1.msra.mxu0 0.0
      %1081 = vmatprep.subr.mxu0 0.0
      %1082 = vmatpush1.msra.mxu0 0.0
      %1083 = vmatprep.subr.mxu0 0.0
      %1084 = vmatpush1.msra.mxu0 0.0
      %1085 = vmatprep.subr.mxu0 0.0
      %1086 = vmatpush1.msra.mxu0 0.0
      %1087 = vmatprep.subr.mxu0 0.0
      %1088 = vmatpush1.msra.mxu0 0.0
      %1089 = vmatprep.subr.mxu0 0.0
      %1090 = vmatpush1.msra.mxu0 0.0
      %1091 = vmatprep.subr.mxu0 0.0
      %1092 = vmatpush1.msra.mxu0 0.0
      %1093 = vmatprep.mubr.f32.mxu0 0.0
      %1094 = vmatmul.mubr.f32.gmra.mrb[0].mxu0 %v1019
      %v1095 = vpop.f32.mrb[0].mxu0
      %v1096 = vadd.f32 0.0, %v1095
      %v1097 = vpop.f32.mrb[0].mxu0
      %v1098 = vadd.f32 0.0, %v1097
      %1099 = vmatprep.mubr.f32.mxu0 0.0
      %1100 = vmatmul.mubr.f32.gmra.mrb[0].mxu0 %v1021
      %v1101 = vpop.f32.mrb[0].mxu0
      %v1102 = vadd.f32 0.0, %v1101
      %v1103 = vpop.f32.mrb[0].mxu0
      %v1104 = vadd.f32 0.0, %v1103
      %1105 = vmatprep.mubr.f32.mxu0 0.0
      %1106 = vmatmul.mubr.f32.gmra.mrb[0].mxu0 %v1023
      %v1107 = vpop.f32.mrb[0].mxu0
      %v1108 = vpop.f32.mrb[0].mxu0
      %1109 = vmatprep.mubr.f32.mxu0 0.0
      %1110 = vmatmul.mubr.f32.gmra.mrb[0].mxu0 %v1025
      %v1111 = vpop.f32.mrb[0].mxu0
      %v1112 = vadd.f32 0.0, %v1111
      %v1113 = vpop.f32.mrb[0].mxu0
      %v1114 = vadd.f32 0.0, %v1113
      %1115 = vmatprep.mubr.f32.mxu0 0.0
      %1116 = vmatmul.mubr.f32.gmra.mrb[0].mxu0 %v1027
      %v1117 = vpop.f32.mrb[0].mxu0
      %v1118 = vadd.f32 0.0, %v1117
      %v1119 = vpop.f32.mrb[0].mxu0
      %v1120 = vadd.f32 0.0, %v1119
      %1121 = vdwg.mxu0
      %v1122 = vadd.f32 %v991, %v1096
      %v1123 = vadd.f32 %v992, %v1098
      %v1124 = vadd.f32 %v993, %v1102
      %v1125 = vadd.f32 %v994, %v1104
      %v1126 = vadd.f32 %v995, %v1112
      %v1127 = vadd.f32 %v996, %v1114
      %v1128 = vadd.f32 %v997, %v1118
      %v1129 = vadd.f32 %v998, %v1120
      %v1130 = vld [vmem:[%s2] ss:$2 sm:$0x3]
      %v1132 = vlaneseq
      %v1133 = vshrl.u32 %v1132, 7
      %v1134 = vsub.s32 0, %v1133
      %v1135 = vrot.slane %v1130, %v1134
      %v1136 = vlaneseq
      %v1137 = vshrl.u32 %v1136, 7
      %v1138 = vsub.s32 1, %v1137
      %v1139 = vrot.slane %v1130, %v1138
      %v1142 = vadd.f32 %v1122, %v1135
      %v1143 = vadd.f32 %v1123, %v1139
      %v1144 = vadd.f32 %v1124, %v1135
      %v1145 = vadd.f32 %v1125, %v1139
      %v1146 = vadd.f32 %v1126, %v1135
      %v1147 = vadd.f32 %v1127, %v1139
      %v1148 = vadd.f32 %v1128, %v1135
      %v1149 = vadd.f32 %v1129, %v1139
      %vm1150 = vcmp.ge.f32.partialorder %v1142, 0.0
      %vm1151 = vcmp.ge.f32.partialorder %v1143, 0.0
      %vm1152 = vcmp.ge.f32.partialorder %v1144, 0.0
      %vm1153 = vcmp.ge.f32.partialorder %v1145, 0.0
      %vm1154 = vcmp.ge.f32.partialorder %v1146, 0.0
      %vm1155 = vcmp.ge.f32.partialorder %v1147, 0.0
      %vm1156 = vcmp.ge.f32.partialorder %v1148, 0.0
      %vm1157 = vcmp.ge.f32.partialorder %v1149, 0.0
      %s1158 = scalar_lea.vmem %s2, 1
      %v1159 = vld [vmem:[%s1158] ss:$2 sm:$0x3]
      %v1161 = vlaneseq
      %v1162 = vshrl.u32 %v1161, 7
      %v1163 = vsub.s32 0, %v1162
      %v1164 = vrot.slane %v1159, %v1163
      %v1165 = vlaneseq
      %v1166 = vshrl.u32 %v1165, 7
      %v1167 = vsub.s32 1, %v1166
      %v1168 = vrot.slane %v1159, %v1167
      %v1171 = vmul.f32 %v1164, %v1142
      %v1172 = vmul.f32 %v1168, %v1143
      %v1173 = vmul.f32 %v1164, %v1144
      %v1174 = vmul.f32 %v1168, %v1145
      %v1175 = vmul.f32 %v1164, %v1146
      %v1176 = vmul.f32 %v1168, %v1147
      %v1177 = vmul.f32 %v1164, %v1148
      %v1178 = vmul.f32 %v1168, %v1149
      %v1179 = vsel %vm1150, %v1142, %v1171
      %v1180 = vsel %vm1151, %v1143, %v1172
      %v1181 = vsel %vm1152, %v1144, %v1173
      %v1182 = vsel %vm1153, %v1145, %v1174
      %v1183 = vsel %vm1154, %v1146, %v1175
      %v1184 = vsel %vm1155, %v1147, %v1176
      %v1185 = vsel %vm1156, %v1148, %v1177
      %v1186 = vsel %vm1157, %v1149, %v1178
      %1187 = vst [vmem:[#allocation2] sm:$0x3] 0.0
      %1188 = vst [vmem:[#allocation2 + $0x8] sm:$0x3] 0.0
      %1189 = vst [vmem:[#allocation2 + $0x10] sm:$0xc0] 0.0
      %1190 = vst [vmem:[#allocation2 + $0x18] sm:$0xc0] 0.0
      %1191 = vst [vmem:[#allocation2 + $0x20] sm:$0x1] 0.0
      %1192 = vst [vmem:[#allocation2 + $0x28] sm:$0x1] 0.0
      %1193 = vst [vmem:[#allocation2 + $0x30] sm:$0x3] 0.0
      %1194 = vst [vmem:[#allocation2 + $0x38] sm:$0x3] 0.0
      %1195 = vst [vmem:[#allocation2 + $0x40] sm:$0xc0] 0.0
      %1196 = vst [vmem:[#allocation2 + $0x48] sm:$0xc0] 0.0
      %1197 = vst [vmem:[#allocation2 + $0x50] sm:$0x1] 0.0
      %1198 = vst [vmem:[#allocation2 + $0x58] sm:$0x1] 0.0
      %v1203 = vrot.slane %v1179, 6
      %v1204 = vrot.slane %v1180, 6
      %v1205 = vrot.slane %v1181, 6
      %v1206 = vsel %vm453, %v1203, %v1205
      %v1207 = vrot.slane %v1182, 6
      %v1208 = vsel %vm453, %v1204, %v1207
      %1213 = vst [vmem:[#allocation2] sm:$0xfc] %v1203
      %vm1214 = vcmask 523266
      %1215 = vst.msk [vmem:[#allocation2 + $0x8] sm:$0xfc] %vm1214, %v1204
      %1216 = vst [vmem:[#allocation2 + $0x10] sm:$0x3f] %v1206
      %vm1217 = vcmask 521216
      %1218 = vst.msk [vmem:[#allocation2 + $0x18] sm:$0x3f] %vm1217, %v1208
      %v1223 = vrot.slane %v1183, 6
      %v1224 = vrot.slane %v1184, 6
      %v1225 = vrot.slane %v1185, 6
      %v1226 = vsel %vm453, %v1223, %v1225
      %v1227 = vrot.slane %v1186, 6
      %v1228 = vsel %vm453, %v1224, %v1227
      %1233 = vst [vmem:[#allocation2 + $0x30] sm:$0xfc] %v1223
      %1234 = vst.msk [vmem:[#allocation2 + $0x38] sm:$0xfc] %vm1214, %v1224
      %1235 = vst [vmem:[#allocation2 + $0x40] sm:$0x3f] %v1226
      %1236 = vst.msk [vmem:[#allocation2 + $0x48] sm:$0x3f] %vm1217, %v1228
      %v1237 = vld [vmem:[#allocation2] sm:$0xfc]
      %v1238 = vld [vmem:[#allocation2 + $0x8] sm:$0xfc]
      %v1239 = vld [vmem:[#allocation2 + $0x10] sm:$0xff]
      %v1240 = vld [vmem:[#allocation2 + $0x18] sm:$0xff]
      %v1241 = vld [vmem:[#allocation2 + $0x20] sm:$0xff]
      %v1242 = vld [vmem:[#allocation2 + $0x28] sm:$0xff]
      %v1243 = vld [vmem:[#allocation2 + $0x30] sm:$0xff]
      %v1244 = vld [vmem:[#allocation2 + $0x38] sm:$0xff]
      %v1245 = vld [vmem:[#allocation2 + $0x40] sm:$0x3f]
      %v1246 = vld [vmem:[#allocation2 + $0x48] sm:$0x3f]
      %v1247 = vld [vmem:[%s3] sm:$0xff]
      %v1248 = vld [vmem:[%s3 + $0x8] sm:$0xff]
      %v1249 = vld [vmem:[%s3 + $0x10] sm:$0xff]
      %v1250 = vld [vmem:[%s3 + $0x18] sm:$0xff]
      %v1251 = vld [vmem:[%s3 + $0x20] sm:$0xff]
      %v1252 = vld [vmem:[%s3 + $0x28] sm:$0xff]
      %v1253 = vld [vmem:[%s3 + $0x30] sm:$0xff]
      %v1254 = vld [vmem:[%s3 + $0x38] sm:$0xff]
      %v1255 = vld [vmem:[%s3 + $0x40] sm:$0xff]
      %v1256 = vld [vmem:[%s3 + $0x48] sm:$0xff]
      %v1257 = vld [vmem:[%s3 + $0x50] sm:$0xff]
      %v1258 = vld [vmem:[%s3 + $0x58] sm:$0xff]
      %v1259 = vld [vmem:[%s3 + $0x60] sm:$0xff]
      %v1260 = vld [vmem:[%s3 + $0x68] sm:$0xff]
      %v1261 = vld [vmem:[%s3 + $0x70] sm:$0xff]
      %v1262 = vld [vmem:[%s3 + $0x78] sm:$0xff]
      %v1263 = vld [vmem:[%s3 + $0x80] sm:$0xff]
      %v1264 = vld [vmem:[%s3 + $0x88] sm:$0xff]
      %v1265 = vld [vmem:[%s3 + $0x90] sm:$0xff]
      %v1266 = vld [vmem:[%s3 + $0x98] sm:$0xff]
      %v1267 = vld [vmem:[%s3 + $0xa0] sm:$0xff]
      %v1268 = vld [vmem:[%s3 + $0xa8] sm:$0xff]
      %v1269 = vld [vmem:[%s3 + $0xb0] sm:$0xff]
      %v1270 = vld [vmem:[%s3 + $0xb8] sm:$0xff]
      %v1271 = vld [vmem:[%s4] sm:$0x1]
      %v1272 = vlaneseq
      %v1273 = vshrl.u32 %v1272, 7
      %v1274 = vsub.s32 0, %v1273
      %v1275 = vrot.slane %v1271, %v1274
      %v1286 = vrot.slane %v1237, 2
      %v1287 = vrot.slane %v1239, 2
      %v1288 = vsel %vm616, %v1286, %v1287
      %v1289 = vrot.slane %v1238, 2
      %v1290 = vrot.slane %v1240, 2
      %v1291 = vsel %vm616, %v1289, %v1290
      %v1292 = vrot.slane %v1241, 2
      %v1293 = vsel %vm616, %v1287, %v1292
      %v1294 = vrot.slane %v1242, 2
      %v1295 = vsel %vm616, %v1290, %v1294
      %v1296 = vrot.slane %v1243, 2
      %v1297 = vsel %vm616, %v1292, %v1296
      %v1298 = vrot.slane %v1244, 2
      %v1299 = vsel %vm616, %v1294, %v1298
      %v1300 = vrot.slane %v1245, 2
      %v1301 = vsel %vm616, %v1296, %v1300
      %v1302 = vrot.slane %v1246, 2
      %v1303 = vsel %vm616, %v1298, %v1302
      %vm1309 = vcmask 523264
      %v1310 = vsel %vm1309, %v1291, 0
      %v1312 = vsel %vm1309, %v1295, 0
      %v1314 = vsel %vm1309, %v1299, 0
      %v1316 = vsel %vm1309, %v1303, 0
      %v1318 = vsel %vm1309, %v1302, 0
      %1320 = vmatprep.subr.mxu0 0.0
      %1321 = vmatpush1.msra.mxu0 %v1247
      %1322 = vmatprep.subr.mxu0 0.0
      %1323 = vmatpush1.msra.mxu0 %v1248
      %1324 = vmatprep.subr.mxu0 0.0
      %1325 = vmatpush1.msra.mxu0 %v1249
      %1326 = vmatprep.subr.mxu0 0.0
      %1327 = vmatpush1.msra.mxu0 %v1250
      %1328 = vmatprep.subr.mxu0 0.0
      %1329 = vmatpush1.msra.mxu0 %v1251
      %1330 = vmatprep.subr.mxu0 0.0
      %1331 = vmatpush1.msra.mxu0 %v1252
      %1332 = vmatprep.subr.mxu0 0.0
      %1333 = vmatpush1.msra.mxu0 %v1253
      %1334 = vmatprep.subr.mxu0 0.0
      %1335 = vmatpush1.msra.mxu0 %v1254
      %1336 = vmatprep.subr.mxu0 0.0
      %1337 = vmatpush1.msra.mxu0 %v1255
      %1338 = vmatprep.subr.mxu0 0.0
      %1339 = vmatpush1.msra.mxu0 %v1256
      %1340 = vmatprep.subr.mxu0 0.0
      %1341 = vmatpush1.msra.mxu0 %v1257
      %1342 = vmatprep.subr.mxu0 0.0
      %1343 = vmatpush1.msra.mxu0 %v1258
      %1344 = vmatprep.subr.mxu0 0.0
      %1345 = vmatpush1.msra.mxu0 %v1259
      %1346 = vmatprep.subr.mxu0 0.0
      %1347 = vmatpush1.msra.mxu0 %v1260
      %1348 = vmatprep.subr.mxu0 0.0
      %1349 = vmatpush1.msra.mxu0 %v1261
      %1350 = vmatprep.subr.mxu0 0.0
      %1351 = vmatpush1.msra.mxu0 %v1262
      %1352 = vmatprep.subr.mxu0 0.0
      %1353 = vmatpush1.msra.mxu0 %v1263
      %1354 = vmatprep.subr.mxu0 0.0
      %1355 = vmatpush1.msra.mxu0 %v1264
      %1356 = vmatprep.subr.mxu0 0.0
      %1357 = vmatpush1.msra.mxu0 %v1265
      %1358 = vmatprep.subr.mxu0 0.0
      %1359 = vmatpush1.msra.mxu0 %v1266
      %1360 = vmatprep.subr.mxu0 0.0
      %1361 = vmatpush1.msra.mxu0 %v1267
      %1362 = vmatprep.subr.mxu0 0.0
      %1363 = vmatpush1.msra.mxu0 %v1268
      %1364 = vmatprep.subr.mxu0 0.0
      %1365 = vmatpush1.msra.mxu0 %v1269
      %1366 = vmatprep.subr.mxu0 0.0
      %1367 = vmatpush1.msra.mxu0 %v1270
      %1368 = vmatprep.subr.mxu0 0.0
      %1369 = vmatpush1.msra.mxu0 0.0
      %1370 = vmatprep.subr.mxu0 0.0
      %1371 = vmatpush1.msra.mxu0 0.0
      %1372 = vmatprep.subr.mxu0 0.0
      %1373 = vmatpush1.msra.mxu0 0.0
      %1374 = vmatprep.subr.mxu0 0.0
      %1375 = vmatpush1.msra.mxu0 0.0
      %1376 = vmatprep.subr.mxu0 0.0
      %1377 = vmatpush1.msra.mxu0 0.0
      %1378 = vmatprep.subr.mxu0 0.0
      %1379 = vmatpush1.msra.mxu0 0.0
      %1380 = vmatprep.subr.mxu0 0.0
      %1381 = vmatpush1.msra.mxu0 0.0
      %1382 = vmatprep.subr.mxu0 0.0
      %1383 = vmatpush1.msra.mxu0 0.0
      %1384 = vmatprep.mubr.f32.mxu0 %v1310
      %1385 = vmatmul.mubr.f32.gmra.mrb[0].mxu0 %v1288
      %v1386 = vpop.f32.mrb[0].mxu0
      %v1387 = vadd.f32 %v1275, %v1386
      %v1388 = vpop.f32.mrb[0].mxu0
      %1389 = vmatprep.mubr.f32.mxu0 %v1312
      %1390 = vmatmul.mubr.f32.gmra.mrb[0].mxu0 %v1293
      %v1391 = vpop.f32.mrb[0].mxu0
      %v1392 = vadd.f32 %v1275, %v1391
      %v1393 = vpop.f32.mrb[0].mxu0
      %1394 = vmatprep.mubr.f32.mxu0 %v1314
      %1395 = vmatmul.mubr.f32.gmra.mrb[0].mxu0 %v1297
      %v1396 = vpop.f32.mrb[0].mxu0
      %v1397 = vpop.f32.mrb[0].mxu0
      %1398 = vmatprep.mubr.f32.mxu0 %v1316
      %1399 = vmatmul.mubr.f32.gmra.mrb[0].mxu0 %v1301
      %v1400 = vpop.f32.mrb[0].mxu0
      %v1401 = vadd.f32 %v1275, %v1400
      %v1402 = vpop.f32.mrb[0].mxu0
      %1403 = vmatprep.mubr.f32.mxu0 %v1318
      %1404 = vmatmul.mubr.f32.gmra.mrb[0].mxu0 %v1300
      %v1405 = vpop.f32.mrb[0].mxu0
      %v1406 = vadd.f32 %v1275, %v1405
      %v1407 = vpop.f32.mrb[0].mxu0
      %1408 = vdwg.mxu0
      %vm1409 = vcmp.ge.f32.partialorder %v1387, 0.0
      %vm1410 = vcmp.ge.f32.partialorder %v1392, 0.0
      %vm1411 = vcmp.ge.f32.partialorder %v1401, 0.0
      %vm1412 = vcmp.ge.f32.partialorder %v1406, 0.0
      %v1413 = vld [vmem:[%s4 + $0x1] sm:$0x1]
      %v1414 = vlaneseq
      %v1415 = vshrl.u32 %v1414, 7
      %v1416 = vsub.s32 0, %v1415
      %v1417 = vrot.slane %v1413, %v1416
      %v1418 = vmul.f32 %v1417, %v1387
      %v1419 = vmul.f32 %v1417, %v1392
      %v1420 = vmul.f32 %v1417, %v1401
      %v1421 = vmul.f32 %v1417, %v1406
      %v1422 = vsel %vm1409, %v1387, %v1418
      %v1423 = vsel %vm1410, %v1392, %v1419
      %v1424 = vsel %vm1411, %v1401, %v1420
      %v1425 = vsel %vm1412, %v1406, %v1421
      %v1428 = vrot.slane %v1422, 6
      %v1429 = vrot.slane %v1423, 6
      %v1430 = vsel %vm453, %v1428, %v1429
      %vm1433 = vcmask 785410
      %1434 = vst.msk [vmem:[#allocation2] sm:$0xfc] %vm1433, %v1428
      %vm1435 = vcmask 783360
      %1436 = vst.msk [vmem:[#allocation2 + $0x10] sm:$0x3f] %vm1435, %v1430
      %v1439 = vrot.slane %v1424, 6
      %v1440 = vrot.slane %v1425, 6
      %v1441 = vsel %vm453, %v1439, %v1440
      %1444 = vst.msk [vmem:[#allocation2 + $0x30] sm:$0xfc] %vm1433, %v1439
      %1445 = vst.msk [vmem:[#allocation2 + $0x40] sm:$0x3f] %vm1435, %v1441
      %v1446 = vld [vmem:[#allocation2] sm:$0xfe]
      %v1447 = vld [vmem:[#allocation2 + $0x10] sm:$0xff]
      %v1448 = vld [vmem:[#allocation2 + $0x20] sm:$0xff]
      %v1449 = vld [vmem:[#allocation2 + $0x30] sm:$0xff]
      %v1450 = vld [vmem:[#allocation2 + $0x40] sm:$0x1f]
      %v1451 = vld [vmem:[%s5] sm:$0xff]
      %v1452 = vld [vmem:[%s5 + $0x8] sm:$0xff]
      %v1453 = vld [vmem:[%s5 + $0x10] sm:$0xff]
      %v1454 = vld [vmem:[%s5 + $0x18] sm:$0xff]
      %v1455 = vld [vmem:[%s5 + $0x20] sm:$0xff]
      %v1456 = vld [vmem:[%s5 + $0x28] sm:$0xff]
      %v1457 = vld [vmem:[%s5 + $0x30] sm:$0xff]
      %v1458 = vld [vmem:[%s5 + $0x38] sm:$0xff]
      %v1459 = vld [vmem:[%s5 + $0x40] sm:$0xff]
      %v1460 = vld [vmem:[%s5 + $0x48] sm:$0xff]
      %v1461 = vld [vmem:[%s5 + $0x50] sm:$0xff]
      %v1462 = vld [vmem:[%s5 + $0x58] sm:$0xff]
      %v1463 = vld [vmem:[#allocation2] sm:$0xfc]
      %v1464 = vld [vmem:[#allocation2 + $0x40] sm:$0x3f]
      %s1465 = scalar_lea.vmem %s5, 96
      %v1466 = vld [vmem:[%s1465] sm:$0xff]
      %v1467 = vld [vmem:[%s1465 + $0x8] sm:$0xff]
      %v1468 = vld [vmem:[%s1465 + $0x10] sm:$0xff]
      %v1469 = vld [vmem:[%s1465 + $0x18] sm:$0xff]
      %v1470 = vld [vmem:[%s1465 + $0x20] sm:$0xff]
      %v1471 = vld [vmem:[%s1465 + $0x28] sm:$0xff]
      %v1472 = vld [vmem:[%s1465 + $0x30] sm:$0xff]
      %v1473 = vld [vmem:[%s1465 + $0x38] sm:$0xff]
      %v1474 = vld [vmem:[%s1465 + $0x40] sm:$0xff]
      %v1475 = vld [vmem:[%s1465 + $0x48] sm:$0xff]
      %v1476 = vld [vmem:[%s1465 + $0x50] sm:$0xff]
      %v1477 = vld [vmem:[%s1465 + $0x58] sm:$0xff]
      %v1483 = vrot.slane %v1463, 2
      %v1484 = vrot.slane %v1447, 2
      %v1485 = vsel %vm616, %v1483, %v1484
      %v1486 = vrot.slane %v1448, 2
      %v1487 = vsel %vm616, %v1484, %v1486
      %v1488 = vrot.slane %v1449, 2
      %v1489 = vsel %vm616, %v1486, %v1488
      %v1490 = vrot.slane %v1464, 2
      %v1491 = vsel %vm616, %v1488, %v1490
      %vm1492 = vcmask 785408
      %v1493 = vsel %vm1492, %v1485, 0
      %v1495 = vsel %vm1492, %v1487, 0
      %v1497 = vsel %vm1492, %v1489, 0
      %v1499 = vsel %vm1492, %v1491, 0
      %v1501 = vsel %vm1492, %v1490, 0
      %1503 = vmatprep.subr.mxu0 0.0
      %1504 = vmatpush1.msra.mxu0 %v1466
      %1505 = vmatprep.subr.mxu0 0.0
      %1506 = vmatpush1.msra.mxu0 %v1467
      %1507 = vmatprep.subr.mxu0 0.0
      %1508 = vmatpush1.msra.mxu0 %v1468
      %1509 = vmatprep.subr.mxu0 0.0
      %1510 = vmatpush1.msra.mxu0 %v1469
      %1511 = vmatprep.subr.mxu0 0.0
      %1512 = vmatpush1.msra.mxu0 %v1470
      %1513 = vmatprep.subr.mxu0 0.0
      %1514 = vmatpush1.msra.mxu0 %v1471
      %1515 = vmatprep.subr.mxu0 0.0
      %1516 = vmatpush1.msra.mxu0 %v1472
      %1517 = vmatprep.subr.mxu0 0.0
      %1518 = vmatpush1.msra.mxu0 %v1473
      %1519 = vmatprep.subr.mxu0 0.0
      %1520 = vmatpush1.msra.mxu0 %v1474
      %1521 = vmatprep.subr.mxu0 0.0
      %1522 = vmatpush1.msra.mxu0 %v1475
      %1523 = vmatprep.subr.mxu0 0.0
      %1524 = vmatpush1.msra.mxu0 %v1476
      %1525 = vmatprep.subr.mxu0 0.0
      %1526 = vmatpush1.msra.mxu0 %v1477
      %1527 = vmatprep.subr.mxu0 0.0
      %1528 = vmatpush1.msra.mxu0 0.0
      %1529 = vmatprep.subr.mxu0 0.0
      %1530 = vmatpush1.msra.mxu0 0.0
      %1531 = vmatprep.subr.mxu0 0.0
      %1532 = vmatpush1.msra.mxu0 0.0
      %1533 = vmatprep.subr.mxu0 0.0
      %1534 = vmatpush1.msra.mxu0 0.0
      %1535 = vmatprep.subr.mxu0 0.0
      %1536 = vmatpush1.msra.mxu0 0.0
      %1537 = vmatprep.subr.mxu0 0.0
      %1538 = vmatpush1.msra.mxu0 0.0
      %1539 = vmatprep.subr.mxu0 0.0
      %1540 = vmatpush1.msra.mxu0 0.0
      %1541 = vmatprep.subr.mxu0 0.0
      %1542 = vmatpush1.msra.mxu0 0.0
      %1543 = vmatprep.subr.mxu0 0.0
      %1544 = vmatpush1.msra.mxu0 0.0
      %1545 = vmatprep.subr.mxu0 0.0
      %1546 = vmatpush1.msra.mxu0 0.0
      %1547 = vmatprep.subr.mxu0 0.0
      %1548 = vmatpush1.msra.mxu0 0.0
      %1549 = vmatprep.subr.mxu0 0.0
      %1550 = vmatpush1.msra.mxu0 0.0
      %1551 = vmatprep.subr.mxu0 0.0
      %1552 = vmatpush1.msra.mxu0 0.0
      %1553 = vmatprep.subr.mxu0 0.0
      %1554 = vmatpush1.msra.mxu0 0.0
      %1555 = vmatprep.subr.mxu0 0.0
      %1556 = vmatpush1.msra.mxu0 0.0
      %1557 = vmatprep.subr.mxu0 0.0
      %1558 = vmatpush1.msra.mxu0 0.0
      %1559 = vmatprep.subr.mxu0 0.0
      %1560 = vmatpush1.msra.mxu0 0.0
      %1561 = vmatprep.subr.mxu0 0.0
      %1562 = vmatpush1.msra.mxu0 0.0
      %1563 = vmatprep.subr.mxu0 0.0
      %1564 = vmatpush1.msra.mxu0 0.0
      %1565 = vmatprep.subr.mxu0 0.0
      %1566 = vmatpush1.msra.mxu0 0.0
      %1567 = vmatprep.mubr.f32.mxu0 0.0
      %1568 = vmatmul.mubr.f32.gmra.mrb[0].mxu0 %v1493
      %v1569 = vpop.f32.mrb[0].mxu0
      %v1570 = vadd.f32 0.0, %v1569
      %v1571 = vpop.f32.mrb[0].mxu0
      %1572 = vmatprep.mubr.f32.mxu0 0.0
      %1573 = vmatmul.mubr.f32.gmra.mrb[0].mxu0 %v1495
      %v1574 = vpop.f32.mrb[0].mxu0
      %v1575 = vadd.f32 0.0, %v1574
      %v1576 = vpop.f32.mrb[0].mxu0
      %1577 = vmatprep.mubr.f32.mxu0 0.0
      %1578 = vmatmul.mubr.f32.gmra.mrb[0].mxu0 %v1497
      %v1579 = vpop.f32.mrb[0].mxu0
      %v1580 = vpop.f32.mrb[0].mxu0
      %1581 = vmatprep.mubr.f32.mxu0 0.0
      %1582 = vmatmul.mubr.f32.gmra.mrb[0].mxu0 %v1499
      %v1583 = vpop.f32.mrb[0].mxu0
      %v1584 = vadd.f32 0.0, %v1583
      %v1585 = vpop.f32.mrb[0].mxu0
      %1586 = vmatprep.mubr.f32.mxu0 0.0
      %1587 = vmatmul.mubr.f32.gmra.mrb[0].mxu0 %v1501
      %v1588 = vpop.f32.mrb[0].mxu0
      %v1589 = vadd.f32 0.0, %v1588
      %v1590 = vpop.f32.mrb[0].mxu0
      %1591 = vdwg.mxu0
      %vm1594 = vcmask 1046528
      %v1595 = vrot.slane %v1446, 1
      %v1596 = vrot.slane %v1447, 1
      %v1597 = vsel %vm1594, %v1595, %v1596
      %v1598 = vrot.slane %v1448, 1
      %v1599 = vsel %vm1594, %v1596, %v1598
      %v1600 = vrot.slane %v1449, 1
      %v1601 = vsel %vm1594, %v1598, %v1600
      %v1602 = vrot.slane %v1450, 1
      %v1603 = vsel %vm1594, %v1600, %v1602
      %v1604 = vsel %vm1492, %v1597, 0
      %v1606 = vsel %vm1492, %v1599, 0
      %v1608 = vsel %vm1492, %v1601, 0
      %v1610 = vsel %vm1492, %v1603, 0
      %v1612 = vsel %vm1492, %v1602, 0
      %1614 = vmatprep.subr.mxu0 0.0
      %1615 = vmatpush1.msra.mxu0 %v1451
      %1616 = vmatprep.subr.mxu0 0.0
      %1617 = vmatpush1.msra.mxu0 %v1452
      %1618 = vmatprep.subr.mxu0 0.0
      %1619 = vmatpush1.msra.mxu0 %v1453
      %1620 = vmatprep.subr.mxu0 0.0
      %1621 = vmatpush1.msra.mxu0 %v1454
      %1622 = vmatprep.subr.mxu0 0.0
      %1623 = vmatpush1.msra.mxu0 %v1455
      %1624 = vmatprep.subr.mxu0 0.0
      %1625 = vmatpush1.msra.mxu0 %v1456
      %1626 = vmatprep.subr.mxu0 0.0
      %1627 = vmatpush1.msra.mxu0 %v1457
      %1628 = vmatprep.subr.mxu0 0.0
      %1629 = vmatpush1.msra.mxu0 %v1458
      %1630 = vmatprep.subr.mxu0 0.0
      %1631 = vmatpush1.msra.mxu0 %v1459
      %1632 = vmatprep.subr.mxu0 0.0
      %1633 = vmatpush1.msra.mxu0 %v1460
      %1634 = vmatprep.subr.mxu0 0.0
      %1635 = vmatpush1.msra.mxu0 %v1461
      %1636 = vmatprep.subr.mxu0 0.0
      %1637 = vmatpush1.msra.mxu0 %v1462
      %1638 = vmatprep.subr.mxu0 0.0
      %1639 = vmatpush1.msra.mxu0 0.0
      %1640 = vmatprep.subr.mxu0 0.0
      %1641 = vmatpush1.msra.mxu0 0.0
      %1642 = vmatprep.subr.mxu0 0.0
      %1643 = vmatpush1.msra.mxu0 0.0
      %1644 = vmatprep.subr.mxu0 0.0
      %1645 = vmatpush1.msra.mxu0 0.0
      %1646 = vmatprep.subr.mxu0 0.0
      %1647 = vmatpush1.msra.mxu0 0.0
      %1648 = vmatprep.subr.mxu0 0.0
      %1649 = vmatpush1.msra.mxu0 0.0
      %1650 = vmatprep.subr.mxu0 0.0
      %1651 = vmatpush1.msra.mxu0 0.0
      %1652 = vmatprep.subr.mxu0 0.0
      %1653 = vmatpush1.msra.mxu0 0.0
      %1654 = vmatprep.subr.mxu0 0.0
      %1655 = vmatpush1.msra.mxu0 0.0
      %1656 = vmatprep.subr.mxu0 0.0
      %1657 = vmatpush1.msra.mxu0 0.0
      %1658 = vmatprep.subr.mxu0 0.0
      %1659 = vmatpush1.msra.mxu0 0.0
      %1660 = vmatprep.subr.mxu0 0.0
      %1661 = vmatpush1.msra.mxu0 0.0
      %1662 = vmatprep.subr.mxu0 0.0
      %1663 = vmatpush1.msra.mxu0 0.0
      %1664 = vmatprep.subr.mxu0 0.0
      %1665 = vmatpush1.msra.mxu0 0.0
      %1666 = vmatprep.subr.mxu0 0.0
      %1667 = vmatpush1.msra.mxu0 0.0
      %1668 = vmatprep.subr.mxu0 0.0
      %1669 = vmatpush1.msra.mxu0 0.0
      %1670 = vmatprep.subr.mxu0 0.0
      %1671 = vmatpush1.msra.mxu0 0.0
      %1672 = vmatprep.subr.mxu0 0.0
      %1673 = vmatpush1.msra.mxu0 0.0
      %1674 = vmatprep.subr.mxu0 0.0
      %1675 = vmatpush1.msra.mxu0 0.0
      %1676 = vmatprep.subr.mxu0 0.0
      %1677 = vmatpush1.msra.mxu0 0.0
      %1678 = vmatprep.mubr.f32.mxu0 0.0
      %1679 = vmatmul.mubr.f32.gmra.mrb[0].mxu0 %v1604
      %v1680 = vpop.f32.mrb[0].mxu0
      %v1681 = vadd.f32 %v1570, %v1680
      %v1682 = vpop.f32.mrb[0].mxu0
      %1683 = vmatprep.mubr.f32.mxu0 0.0
      %1684 = vmatmul.mubr.f32.gmra.mrb[0].mxu0 %v1606
      %v1685 = vpop.f32.mrb[0].mxu0
      %v1686 = vadd.f32 %v1575, %v1685
      %v1687 = vpop.f32.mrb[0].mxu0
      %1688 = vmatprep.mubr.f32.mxu0 0.0
      %1689 = vmatmul.mubr.f32.gmra.mrb[0].mxu0 %v1608
      %v1690 = vpop.f32.mrb[0].mxu0
      %v1691 = vpop.f32.mrb[0].mxu0
      %1692 = vmatprep.mubr.f32.mxu0 0.0
      %1693 = vmatmul.mubr.f32.gmra.mrb[0].mxu0 %v1610
      %v1694 = vpop.f32.mrb[0].mxu0
      %v1695 = vadd.f32 %v1584, %v1694
      %v1696 = vpop.f32.mrb[0].mxu0
      %1697 = vmatprep.mubr.f32.mxu0 0.0
      %1698 = vmatmul.mubr.f32.gmra.mrb[0].mxu0 %v1612
      %v1699 = vpop.f32.mrb[0].mxu0
      %v1700 = vadd.f32 %v1589, %v1699
      %v1701 = vpop.f32.mrb[0].mxu0
      %1702 = vdwg.mxu0
      %v1703 = vld [vmem:[#allocation2] sm:$0xf8]
      %v1704 = vld [vmem:[#allocation2 + $0x40] sm:$0x7f]
      %s1705 = scalar_lea.vmem %s5, 192
      %v1706 = vld [vmem:[%s1705] sm:$0xff]
      %v1707 = vld [vmem:[%s1705 + $0x8] sm:$0xff]
      %v1708 = vld [vmem:[%s1705 + $0x10] sm:$0xff]
      %v1709 = vld [vmem:[%s1705 + $0x18] sm:$0xff]
      %v1710 = vld [vmem:[%s1705 + $0x20] sm:$0xff]
      %v1711 = vld [vmem:[%s1705 + $0x28] sm:$0xff]
      %v1712 = vld [vmem:[%s1705 + $0x30] sm:$0xff]
      %v1713 = vld [vmem:[%s1705 + $0x38] sm:$0xff]
      %v1714 = vld [vmem:[%s1705 + $0x40] sm:$0xff]
      %v1715 = vld [vmem:[%s1705 + $0x48] sm:$0xff]
      %v1716 = vld [vmem:[%s1705 + $0x50] sm:$0xff]
      %v1717 = vld [vmem:[%s1705 + $0x58] sm:$0xff]
      %v1720 = vrot.slane %v1703, 3
      %v1721 = vrot.slane %v1447, 3
      %v1722 = vsel %vm501, %v1720, %v1721
      %v1723 = vrot.slane %v1448, 3
      %v1724 = vsel %vm501, %v1721, %v1723
      %v1725 = vrot.slane %v1449, 3
      %v1726 = vsel %vm501, %v1723, %v1725
      %v1727 = vrot.slane %v1704, 3
      %v1728 = vsel %vm501, %v1725, %v1727
      %v1729 = vsel %vm1492, %v1722, 0
      %v1731 = vsel %vm1492, %v1724, 0
      %v1733 = vsel %vm1492, %v1726, 0
      %v1735 = vsel %vm1492, %v1728, 0
      %v1737 = vsel %vm1492, %v1727, 0
      %1739 = vmatprep.subr.mxu0 0.0
      %1740 = vmatpush1.msra.mxu0 %v1706
      %1741 = vmatprep.subr.mxu0 0.0
      %1742 = vmatpush1.msra.mxu0 %v1707
      %1743 = vmatprep.subr.mxu0 0.0
      %1744 = vmatpush1.msra.mxu0 %v1708
      %1745 = vmatprep.subr.mxu0 0.0
      %1746 = vmatpush1.msra.mxu0 %v1709
      %1747 = vmatprep.subr.mxu0 0.0
      %1748 = vmatpush1.msra.mxu0 %v1710
      %1749 = vmatprep.subr.mxu0 0.0
      %1750 = vmatpush1.msra.mxu0 %v1711
      %1751 = vmatprep.subr.mxu0 0.0
      %1752 = vmatpush1.msra.mxu0 %v1712
      %1753 = vmatprep.subr.mxu0 0.0
      %1754 = vmatpush1.msra.mxu0 %v1713
      %1755 = vmatprep.subr.mxu0 0.0
      %1756 = vmatpush1.msra.mxu0 %v1714
      %1757 = vmatprep.subr.mxu0 0.0
      %1758 = vmatpush1.msra.mxu0 %v1715
      %1759 = vmatprep.subr.mxu0 0.0
      %1760 = vmatpush1.msra.mxu0 %v1716
      %1761 = vmatprep.subr.mxu0 0.0
      %1762 = vmatpush1.msra.mxu0 %v1717
      %1763 = vmatprep.subr.mxu0 0.0
      %1764 = vmatpush1.msra.mxu0 0.0
      %1765 = vmatprep.subr.mxu0 0.0
      %1766 = vmatpush1.msra.mxu0 0.0
      %1767 = vmatprep.subr.mxu0 0.0
      %1768 = vmatpush1.msra.mxu0 0.0
      %1769 = vmatprep.subr.mxu0 0.0
      %1770 = vmatpush1.msra.mxu0 0.0
      %1771 = vmatprep.subr.mxu0 0.0
      %1772 = vmatpush1.msra.mxu0 0.0
      %1773 = vmatprep.subr.mxu0 0.0
      %1774 = vmatpush1.msra.mxu0 0.0
      %1775 = vmatprep.subr.mxu0 0.0
      %1776 = vmatpush1.msra.mxu0 0.0
      %1777 = vmatprep.subr.mxu0 0.0
      %1778 = vmatpush1.msra.mxu0 0.0
      %1779 = vmatprep.subr.mxu0 0.0
      %1780 = vmatpush1.msra.mxu0 0.0
      %1781 = vmatprep.subr.mxu0 0.0
      %1782 = vmatpush1.msra.mxu0 0.0
      %1783 = vmatprep.subr.mxu0 0.0
      %1784 = vmatpush1.msra.mxu0 0.0
      %1785 = vmatprep.subr.mxu0 0.0
      %1786 = vmatpush1.msra.mxu0 0.0
      %1787 = vmatprep.subr.mxu0 0.0
      %1788 = vmatpush1.msra.mxu0 0.0
      %1789 = vmatprep.subr.mxu0 0.0
      %1790 = vmatpush1.msra.mxu0 0.0
      %1791 = vmatprep.subr.mxu0 0.0
      %1792 = vmatpush1.msra.mxu0 0.0
      %1793 = vmatprep.subr.mxu0 0.0
      %1794 = vmatpush1.msra.mxu0 0.0
      %1795 = vmatprep.subr.mxu0 0.0
      %1796 = vmatpush1.msra.mxu0 0.0
      %1797 = vmatprep.subr.mxu0 0.0
      %1798 = vmatpush1.msra.mxu0 0.0
      %1799 = vmatprep.subr.mxu0 0.0
      %1800 = vmatpush1.msra.mxu0 0.0
      %1801 = vmatprep.subr.mxu0 0.0
      %1802 = vmatpush1.msra.mxu0 0.0
      %1803 = vmatprep.mubr.f32.mxu0 0.0
      %1804 = vmatmul.mubr.f32.gmra.mrb[0].mxu0 %v1729
      %v1805 = vpop.f32.mrb[0].mxu0
      %v1806 = vadd.f32 0.0, %v1805
      %v1807 = vpop.f32.mrb[0].mxu0
      %1808 = vmatprep.mubr.f32.mxu0 0.0
      %1809 = vmatmul.mubr.f32.gmra.mrb[0].mxu0 %v1731
      %v1810 = vpop.f32.mrb[0].mxu0
      %v1811 = vadd.f32 0.0, %v1810
      %v1812 = vpop.f32.mrb[0].mxu0
      %1813 = vmatprep.mubr.f32.mxu0 0.0
      %1814 = vmatmul.mubr.f32.gmra.mrb[0].mxu0 %v1733
      %v1815 = vpop.f32.mrb[0].mxu0
      %v1816 = vpop.f32.mrb[0].mxu0
      %1817 = vmatprep.mubr.f32.mxu0 0.0
      %1818 = vmatmul.mubr.f32.gmra.mrb[0].mxu0 %v1735
      %v1819 = vpop.f32.mrb[0].mxu0
      %v1820 = vadd.f32 0.0, %v1819
      %v1821 = vpop.f32.mrb[0].mxu0
      %1822 = vmatprep.mubr.f32.mxu0 0.0
      %1823 = vmatmul.mubr.f32.gmra.mrb[0].mxu0 %v1737
      %v1824 = vpop.f32.mrb[0].mxu0
      %v1825 = vadd.f32 0.0, %v1824
      %v1826 = vpop.f32.mrb[0].mxu0
      %1827 = vdwg.mxu0
      %v1828 = vadd.f32 %v1681, %v1806
      %v1829 = vadd.f32 %v1686, %v1811
      %v1830 = vadd.f32 %v1695, %v1820
      %v1831 = vadd.f32 %v1700, %v1825
      %v1832 = vld [vmem:[%s6] sm:$0x1]
      %v1833 = vlaneseq
      %v1834 = vshrl.u32 %v1833, 7
      %v1835 = vsub.s32 0, %v1834
      %v1836 = vrot.slane %v1832, %v1835
      %v1837 = vadd.f32 %v1828, %v1836
      %v1838 = vadd.f32 %v1829, %v1836
      %v1839 = vadd.f32 %v1830, %v1836
      %v1840 = vadd.f32 %v1831, %v1836
      %vm1841 = vcmp.ge.f32.partialorder %v1837, 0.0
      %vm1842 = vcmp.ge.f32.partialorder %v1838, 0.0
      %vm1843 = vcmp.ge.f32.partialorder %v1839, 0.0
      %vm1844 = vcmp.ge.f32.partialorder %v1840, 0.0
      %v1845 = vld [vmem:[%s6 + $0x1] sm:$0x1]
      %v1846 = vlaneseq
      %v1847 = vshrl.u32 %v1846, 7
      %v1848 = vsub.s32 0, %v1847
      %v1849 = vrot.slane %v1845, %v1848
      %v1850 = vmul.f32 %v1849, %v1837
      %v1851 = vmul.f32 %v1849, %v1838
      %v1852 = vmul.f32 %v1849, %v1839
      %v1853 = vmul.f32 %v1849, %v1840
      %v1854 = vsel %vm1841, %v1837, %v1850
      %v1855 = vsel %vm1842, %v1838, %v1851
      %v1856 = vsel %vm1843, %v1839, %v1852
      %v1857 = vsel %vm1844, %v1840, %v1853
      %v1860 = vrot.slane %v1854, 6
      %v1861 = vrot.slane %v1855, 6
      %v1862 = vsel %vm453, %v1860, %v1861
      %1865 = vst.msk [vmem:[#allocation2] sm:$0xfc] %vm1433, %v1860
      %1866 = vst.msk [vmem:[#allocation2 + $0x10] sm:$0x3f] %vm1435, %v1862
      %v1869 = vrot.slane %v1856, 6
      %v1870 = vrot.slane %v1857, 6
      %v1871 = vsel %vm453, %v1869, %v1870
      %1874 = vst.msk [vmem:[#allocation2 + $0x30] sm:$0xfc] %vm1433, %v1869
      %1875 = vst.msk [vmem:[#allocation2 + $0x40] sm:$0x3f] %vm1435, %v1871
      %v1876 = vld [vmem:[#allocation2] sm:$0xfe]
      %v1877 = vld [vmem:[#allocation2 + $0x10] sm:$0xff]
      %v1878 = vld [vmem:[#allocation2 + $0x20] sm:$0xff]
      %v1879 = vld [vmem:[#allocation2 + $0x30] sm:$0xff]
      %v1880 = vld [vmem:[#allocation2 + $0x40] sm:$0x1f]
      %v1881 = vld [vmem:[%s7] sm:$0xff]
      %v1882 = vld [vmem:[%s7 + $0x8] sm:$0xff]
      %v1883 = vld [vmem:[%s7 + $0x10] sm:$0xff]
      %v1884 = vld [vmem:[%s7 + $0x18] sm:$0xff]
      %v1885 = vld [vmem:[%s7 + $0x20] sm:$0xff]
      %v1886 = vld [vmem:[%s7 + $0x28] sm:$0xff]
      %v1887 = vld [vmem:[%s7 + $0x30] sm:$0xff]
      %v1888 = vld [vmem:[%s7 + $0x38] sm:$0xff]
      %v1889 = vld [vmem:[%s7 + $0x40] sm:$0xff]
      %v1890 = vld [vmem:[%s7 + $0x48] sm:$0xff]
      %v1891 = vld [vmem:[%s7 + $0x50] sm:$0xff]
      %v1892 = vld [vmem:[%s7 + $0x58] sm:$0xff]
      %v1893 = vld [vmem:[#allocation2] sm:$0xfc]
      %v1894 = vld [vmem:[#allocation2 + $0x40] sm:$0x3f]
      %s1895 = scalar_lea.vmem %s7, 96
      %v1896 = vld [vmem:[%s1895] sm:$0xff]
      %v1897 = vld [vmem:[%s1895 + $0x8] sm:$0xff]
      %v1898 = vld [vmem:[%s1895 + $0x10] sm:$0xff]
      %v1899 = vld [vmem:[%s1895 + $0x18] sm:$0xff]
      %v1900 = vld [vmem:[%s1895 + $0x20] sm:$0xff]
      %v1901 = vld [vmem:[%s1895 + $0x28] sm:$0xff]
      %v1902 = vld [vmem:[%s1895 + $0x30] sm:$0xff]
      %v1903 = vld [vmem:[%s1895 + $0x38] sm:$0xff]
      %v1904 = vld [vmem:[%s1895 + $0x40] sm:$0xff]
      %v1905 = vld [vmem:[%s1895 + $0x48] sm:$0xff]
      %v1906 = vld [vmem:[%s1895 + $0x50] sm:$0xff]
      %v1907 = vld [vmem:[%s1895 + $0x58] sm:$0xff]
      %v1913 = vrot.slane %v1893, 2
      %v1914 = vrot.slane %v1877, 2
      %v1915 = vsel %vm616, %v1913, %v1914
      %v1916 = vrot.slane %v1878, 2
      %v1917 = vsel %vm616, %v1914, %v1916
      %v1918 = vrot.slane %v1879, 2
      %v1919 = vsel %vm616, %v1916, %v1918
      %v1920 = vrot.slane %v1894, 2
      %v1921 = vsel %vm616, %v1918, %v1920
      %v1922 = vsel %vm1492, %v1915, 0
      %v1924 = vsel %vm1492, %v1917, 0
      %v1926 = vsel %vm1492, %v1919, 0
      %v1928 = vsel %vm1492, %v1921, 0
      %v1930 = vsel %vm1492, %v1920, 0
      %1932 = vmatprep.subr.mxu0 0.0
      %1933 = vmatpush1.msra.mxu0 %v1896
      %1934 = vmatprep.subr.mxu0 0.0
      %1935 = vmatpush1.msra.mxu0 %v1897
      %1936 = vmatprep.subr.mxu0 0.0
      %1937 = vmatpush1.msra.mxu0 %v1898
      %1938 = vmatprep.subr.mxu0 0.0
      %1939 = vmatpush1.msra.mxu0 %v1899
      %1940 = vmatprep.subr.mxu0 0.0
      %1941 = vmatpush1.msra.mxu0 %v1900
      %1942 = vmatprep.subr.mxu0 0.0
      %1943 = vmatpush1.msra.mxu0 %v1901
      %1944 = vmatprep.subr.mxu0 0.0
      %1945 = vmatpush1.msra.mxu0 %v1902
      %1946 = vmatprep.subr.mxu0 0.0
      %1947 = vmatpush1.msra.mxu0 %v1903
      %1948 = vmatprep.subr.mxu0 0.0
      %1949 = vmatpush1.msra.mxu0 %v1904
      %1950 = vmatprep.subr.mxu0 0.0
      %1951 = vmatpush1.msra.mxu0 %v1905
      %1952 = vmatprep.subr.mxu0 0.0
      %1953 = vmatpush1.msra.mxu0 %v1906
      %1954 = vmatprep.subr.mxu0 0.0
      %1955 = vmatpush1.msra.mxu0 %v1907
      %1956 = vmatprep.subr.mxu0 0.0
      %1957 = vmatpush1.msra.mxu0 0.0
      %1958 = vmatprep.subr.mxu0 0.0
      %1959 = vmatpush1.msra.mxu0 0.0
      %1960 = vmatprep.subr.mxu0 0.0
      %1961 = vmatpush1.msra.mxu0 0.0
      %1962 = vmatprep.subr.mxu0 0.0
      %1963 = vmatpush1.msra.mxu0 0.0
      %1964 = vmatprep.subr.mxu0 0.0
      %1965 = vmatpush1.msra.mxu0 0.0
      %1966 = vmatprep.subr.mxu0 0.0
      %1967 = vmatpush1.msra.mxu0 0.0
      %1968 = vmatprep.subr.mxu0 0.0
      %1969 = vmatpush1.msra.mxu0 0.0
      %1970 = vmatprep.subr.mxu0 0.0
      %1971 = vmatpush1.msra.mxu0 0.0
      %1972 = vmatprep.subr.mxu0 0.0
      %1973 = vmatpush1.msra.mxu0 0.0
      %1974 = vmatprep.subr.mxu0 0.0
      %1975 = vmatpush1.msra.mxu0 0.0
      %1976 = vmatprep.subr.mxu0 0.0
      %1977 = vmatpush1.msra.mxu0 0.0
      %1978 = vmatprep.subr.mxu0 0.0
      %1979 = vmatpush1.msra.mxu0 0.0
      %1980 = vmatprep.subr.mxu0 0.0
      %1981 = vmatpush1.msra.mxu0 0.0
      %1982 = vmatprep.subr.mxu0 0.0
      %1983 = vmatpush1.msra.mxu0 0.0
      %1984 = vmatprep.subr.mxu0 0.0
      %1985 = vmatpush1.msra.mxu0 0.0
      %1986 = vmatprep.subr.mxu0 0.0
      %1987 = vmatpush1.msra.mxu0 0.0
      %1988 = vmatprep.subr.mxu0 0.0
      %1989 = vmatpush1.msra.mxu0 0.0
      %1990 = vmatprep.subr.mxu0 0.0
      %1991 = vmatpush1.msra.mxu0 0.0
      %1992 = vmatprep.subr.mxu0 0.0
      %1993 = vmatpush1.msra.mxu0 0.0
      %1994 = vmatprep.subr.mxu0 0.0
      %1995 = vmatpush1.msra.mxu0 0.0
      %1996 = vmatprep.mubr.f32.mxu0 0.0
      %1997 = vmatmul.mubr.f32.gmra.mrb[0].mxu0 %v1922
      %v1998 = vpop.f32.mrb[0].mxu0
      %v1999 = vadd.f32 0.0, %v1998
      %v2000 = vpop.f32.mrb[0].mxu0
      %2001 = vmatprep.mubr.f32.mxu0 0.0
      %2002 = vmatmul.mubr.f32.gmra.mrb[0].mxu0 %v1924
      %v2003 = vpop.f32.mrb[0].mxu0
      %v2004 = vadd.f32 0.0, %v2003
      %v2005 = vpop.f32.mrb[0].mxu0
      %2006 = vmatprep.mubr.f32.mxu0 0.0
      %2007 = vmatmul.mubr.f32.gmra.mrb[0].mxu0 %v1926
      %v2008 = vpop.f32.mrb[0].mxu0
      %v2009 = vpop.f32.mrb[0].mxu0
      %2010 = vmatprep.mubr.f32.mxu0 0.0
      %2011 = vmatmul.mubr.f32.gmra.mrb[0].mxu0 %v1928
      %v2012 = vpop.f32.mrb[0].mxu0
      %v2013 = vadd.f32 0.0, %v2012
      %v2014 = vpop.f32.mrb[0].mxu0
      %2015 = vmatprep.mubr.f32.mxu0 0.0
      %2016 = vmatmul.mubr.f32.gmra.mrb[0].mxu0 %v1930
      %v2017 = vpop.f32.mrb[0].mxu0
      %v2018 = vadd.f32 0.0, %v2017
      %v2019 = vpop.f32.mrb[0].mxu0
      %2020 = vdwg.mxu0
      %v2023 = vrot.slane %v1876, 1
      %v2024 = vrot.slane %v1877, 1
      %v2025 = vsel %vm1594, %v2023, %v2024
      %v2026 = vrot.slane %v1878, 1
      %v2027 = vsel %vm1594, %v2024, %v2026
      %v2028 = vrot.slane %v1879, 1
      %v2029 = vsel %vm1594, %v2026, %v2028
      %v2030 = vrot.slane %v1880, 1
      %v2031 = vsel %vm1594, %v2028, %v2030
      %v2032 = vsel %vm1492, %v2025, 0
      %v2034 = vsel %vm1492, %v2027, 0
      %v2036 = vsel %vm1492, %v2029, 0
      %v2038 = vsel %vm1492, %v2031, 0
      %v2040 = vsel %vm1492, %v2030, 0
      %2042 = vmatprep.subr.mxu0 0.0
      %2043 = vmatpush1.msra.mxu0 %v1881
      %2044 = vmatprep.subr.mxu0 0.0
      %2045 = vmatpush1.msra.mxu0 %v1882
      %2046 = vmatprep.subr.mxu0 0.0
      %2047 = vmatpush1.msra.mxu0 %v1883
      %2048 = vmatprep.subr.mxu0 0.0
      %2049 = vmatpush1.msra.mxu0 %v1884
      %2050 = vmatprep.subr.mxu0 0.0
      %2051 = vmatpush1.msra.mxu0 %v1885
      %2052 = vmatprep.subr.mxu0 0.0
      %2053 = vmatpush1.msra.mxu0 %v1886
      %2054 = vmatprep.subr.mxu0 0.0
      %2055 = vmatpush1.msra.mxu0 %v1887
      %2056 = vmatprep.subr.mxu0 0.0
      %2057 = vmatpush1.msra.mxu0 %v1888
      %2058 = vmatprep.subr.mxu0 0.0
      %2059 = vmatpush1.msra.mxu0 %v1889
      %2060 = vmatprep.subr.mxu0 0.0
      %2061 = vmatpush1.msra.mxu0 %v1890
      %2062 = vmatprep.subr.mxu0 0.0
      %2063 = vmatpush1.msra.mxu0 %v1891
      %2064 = vmatprep.subr.mxu0 0.0
      %2065 = vmatpush1.msra.mxu0 %v1892
      %2066 = vmatprep.subr.mxu0 0.0
      %2067 = vmatpush1.msra.mxu0 0.0
      %2068 = vmatprep.subr.mxu0 0.0
      %2069 = vmatpush1.msra.mxu0 0.0
      %2070 = vmatprep.subr.mxu0 0.0
      %2071 = vmatpush1.msra.mxu0 0.0
      %2072 = vmatprep.subr.mxu0 0.0
      %2073 = vmatpush1.msra.mxu0 0.0
      %2074 = vmatprep.subr.mxu0 0.0
      %2075 = vmatpush1.msra.mxu0 0.0
      %2076 = vmatprep.subr.mxu0 0.0
      %2077 = vmatpush1.msra.mxu0 0.0
      %2078 = vmatprep.subr.mxu0 0.0
      %2079 = vmatpush1.msra.mxu0 0.0
      %2080 = vmatprep.subr.mxu0 0.0
      %2081 = vmatpush1.msra.mxu0 0.0
      %2082 = vmatprep.subr.mxu0 0.0
      %2083 = vmatpush1.msra.mxu0 0.0
      %2084 = vmatprep.subr.mxu0 0.0
      %2085 = vmatpush1.msra.mxu0 0.0
      %2086 = vmatprep.subr.mxu0 0.0
      %2087 = vmatpush1.msra.mxu0 0.0
      %2088 = vmatprep.subr.mxu0 0.0
      %2089 = vmatpush1.msra.mxu0 0.0
      %2090 = vmatprep.subr.mxu0 0.0
      %2091 = vmatpush1.msra.mxu0 0.0
      %2092 = vmatprep.subr.mxu0 0.0
      %2093 = vmatpush1.msra.mxu0 0.0
      %2094 = vmatprep.subr.mxu0 0.0
      %2095 = vmatpush1.msra.mxu0 0.0
      %2096 = vmatprep.subr.mxu0 0.0
      %2097 = vmatpush1.msra.mxu0 0.0
      %2098 = vmatprep.subr.mxu0 0.0
      %2099 = vmatpush1.msra.mxu0 0.0
      %2100 = vmatprep.subr.mxu0 0.0
      %2101 = vmatpush1.msra.mxu0 0.0
      %2102 = vmatprep.subr.mxu0 0.0
      %2103 = vmatpush1.msra.mxu0 0.0
      %2104 = vmatprep.subr.mxu0 0.0
      %2105 = vmatpush1.msra.mxu0 0.0
      %2106 = vmatprep.mubr.f32.mxu0 0.0
      %2107 = vmatmul.mubr.f32.gmra.mrb[0].mxu0 %v2032
      %v2108 = vpop.f32.mrb[0].mxu0
      %v2109 = vadd.f32 %v1999, %v2108
      %v2110 = vpop.f32.mrb[0].mxu0
      %2111 = vmatprep.mubr.f32.mxu0 0.0
      %2112 = vmatmul.mubr.f32.gmra.mrb[0].mxu0 %v2034
      %v2113 = vpop.f32.mrb[0].mxu0
      %v2114 = vadd.f32 %v2004, %v2113
      %v2115 = vpop.f32.mrb[0].mxu0
      %2116 = vmatprep.mubr.f32.mxu0 0.0
      %2117 = vmatmul.mubr.f32.gmra.mrb[0].mxu0 %v2036
      %v2118 = vpop.f32.mrb[0].mxu0
      %v2119 = vpop.f32.mrb[0].mxu0
      %2120 = vmatprep.mubr.f32.mxu0 0.0
      %2121 = vmatmul.mubr.f32.gmra.mrb[0].mxu0 %v2038
      %v2122 = vpop.f32.mrb[0].mxu0
      %v2123 = vadd.f32 %v2013, %v2122
      %v2124 = vpop.f32.mrb[0].mxu0
      %2125 = vmatprep.mubr.f32.mxu0 0.0
      %2126 = vmatmul.mubr.f32.gmra.mrb[0].mxu0 %v2040
      %v2127 = vpop.f32.mrb[0].mxu0
      %v2128 = vadd.f32 %v2018, %v2127
      %v2129 = vpop.f32.mrb[0].mxu0
      %2130 = vdwg.mxu0
      %v2131 = vld [vmem:[#allocation2] sm:$0xf8]
      %v2132 = vld [vmem:[#allocation2 + $0x40] sm:$0x7f]
      %s2133 = scalar_lea.vmem %s7, 192
      %v2134 = vld [vmem:[%s2133] sm:$0xff]
      %v2135 = vld [vmem:[%s2133 + $0x8] sm:$0xff]
      %v2136 = vld [vmem:[%s2133 + $0x10] sm:$0xff]
      %v2137 = vld [vmem:[%s2133 + $0x18] sm:$0xff]
      %v2138 = vld [vmem:[%s2133 + $0x20] sm:$0xff]
      %v2139 = vld [vmem:[%s2133 + $0x28] sm:$0xff]
      %v2140 = vld [vmem:[%s2133 + $0x30] sm:$0xff]
      %v2141 = vld [vmem:[%s2133 + $0x38] sm:$0xff]
      %v2142 = vld [vmem:[%s2133 + $0x40] sm:$0xff]
      %v2143 = vld [vmem:[%s2133 + $0x48] sm:$0xff]
      %v2144 = vld [vmem:[%s2133 + $0x50] sm:$0xff]
      %v2145 = vld [vmem:[%s2133 + $0x58] sm:$0xff]
      %v2148 = vrot.slane %v2131, 3
      %v2149 = vrot.slane %v1877, 3
      %v2150 = vsel %vm501, %v2148, %v2149
      %v2151 = vrot.slane %v1878, 3
      %v2152 = vsel %vm501, %v2149, %v2151
      %v2153 = vrot.slane %v1879, 3
      %v2154 = vsel %vm501, %v2151, %v2153
      %v2155 = vrot.slane %v2132, 3
      %v2156 = vsel %vm501, %v2153, %v2155
      %v2157 = vsel %vm1492, %v2150, 0
      %v2159 = vsel %vm1492, %v2152, 0
      %v2161 = vsel %vm1492, %v2154, 0
      %v2163 = vsel %vm1492, %v2156, 0
      %v2165 = vsel %vm1492, %v2155, 0
      %2167 = vmatprep.subr.mxu0 0.0
      %2168 = vmatpush1.msra.mxu0 %v2134
      %2169 = vmatprep.subr.mxu0 0.0
      %2170 = vmatpush1.msra.mxu0 %v2135
      %2171 = vmatprep.subr.mxu0 0.0
      %2172 = vmatpush1.msra.mxu0 %v2136
      %2173 = vmatprep.subr.mxu0 0.0
      %2174 = vmatpush1.msra.mxu0 %v2137
      %2175 = vmatprep.subr.mxu0 0.0
      %2176 = vmatpush1.msra.mxu0 %v2138
      %2177 = vmatprep.subr.mxu0 0.0
      %2178 = vmatpush1.msra.mxu0 %v2139
      %2179 = vmatprep.subr.mxu0 0.0
      %2180 = vmatpush1.msra.mxu0 %v2140
      %2181 = vmatprep.subr.mxu0 0.0
      %2182 = vmatpush1.msra.mxu0 %v2141
      %2183 = vmatprep.subr.mxu0 0.0
      %2184 = vmatpush1.msra.mxu0 %v2142
      %2185 = vmatprep.subr.mxu0 0.0
      %2186 = vmatpush1.msra.mxu0 %v2143
      %2187 = vmatprep.subr.mxu0 0.0
      %2188 = vmatpush1.msra.mxu0 %v2144
      %2189 = vmatprep.subr.mxu0 0.0
      %2190 = vmatpush1.msra.mxu0 %v2145
      %2191 = vmatprep.subr.mxu0 0.0
      %2192 = vmatpush1.msra.mxu0 0.0
      %2193 = vmatprep.subr.mxu0 0.0
      %2194 = vmatpush1.msra.mxu0 0.0
      %2195 = vmatprep.subr.mxu0 0.0
      %2196 = vmatpush1.msra.mxu0 0.0
      %2197 = vmatprep.subr.mxu0 0.0
      %2198 = vmatpush1.msra.mxu0 0.0
      %2199 = vmatprep.subr.mxu0 0.0
      %2200 = vmatpush1.msra.mxu0 0.0
      %2201 = vmatprep.subr.mxu0 0.0
      %2202 = vmatpush1.msra.mxu0 0.0
      %2203 = vmatprep.subr.mxu0 0.0
      %2204 = vmatpush1.msra.mxu0 0.0
      %2205 = vmatprep.subr.mxu0 0.0
      %2206 = vmatpush1.msra.mxu0 0.0
      %2207 = vmatprep.subr.mxu0 0.0
      %2208 = vmatpush1.msra.mxu0 0.0
      %2209 = vmatprep.subr.mxu0 0.0
      %2210 = vmatpush1.msra.mxu0 0.0
      %2211 = vmatprep.subr.mxu0 0.0
      %2212 = vmatpush1.msra.mxu0 0.0
      %2213 = vmatprep.subr.mxu0 0.0
      %2214 = vmatpush1.msra.mxu0 0.0
      %2215 = vmatprep.subr.mxu0 0.0
      %2216 = vmatpush1.msra.mxu0 0.0
      %2217 = vmatprep.subr.mxu0 0.0
      %2218 = vmatpush1.msra.mxu0 0.0
      %2219 = vmatprep.subr.mxu0 0.0
      %2220 = vmatpush1.msra.mxu0 0.0
      %2221 = vmatprep.subr.mxu0 0.0
      %2222 = vmatpush1.msra.mxu0 0.0
      %2223 = vmatprep.subr.mxu0 0.0
      %2224 = vmatpush1.msra.mxu0 0.0
      %2225 = vmatprep.subr.mxu0 0.0
      %2226 = vmatpush1.msra.mxu0 0.0
      %2227 = vmatprep.subr.mxu0 0.0
      %2228 = vmatpush1.msra.mxu0 0.0
      %2229 = vmatprep.subr.mxu0 0.0
      %2230 = vmatpush1.msra.mxu0 0.0
      %2231 = vmatprep.mubr.f32.mxu0 0.0
      %2232 = vmatmul.mubr.f32.gmra.mrb[0].mxu0 %v2157
      %v2233 = vpop.f32.mrb[0].mxu0
      %v2234 = vadd.f32 0.0, %v2233
      %v2235 = vpop.f32.mrb[0].mxu0
      %2236 = vmatprep.mubr.f32.mxu0 0.0
      %2237 = vmatmul.mubr.f32.gmra.mrb[0].mxu0 %v2159
      %v2238 = vpop.f32.mrb[0].mxu0
      %v2239 = vadd.f32 0.0, %v2238
      %v2240 = vpop.f32.mrb[0].mxu0
      %2241 = vmatprep.mubr.f32.mxu0 0.0
      %2242 = vmatmul.mubr.f32.gmra.mrb[0].mxu0 %v2161
      %v2243 = vpop.f32.mrb[0].mxu0
      %v2244 = vpop.f32.mrb[0].mxu0
      %2245 = vmatprep.mubr.f32.mxu0 0.0
      %2246 = vmatmul.mubr.f32.gmra.mrb[0].mxu0 %v2163
      %v2247 = vpop.f32.mrb[0].mxu0
      %v2248 = vadd.f32 0.0, %v2247
      %v2249 = vpop.f32.mrb[0].mxu0
      %2250 = vmatprep.mubr.f32.mxu0 0.0
      %2251 = vmatmul.mubr.f32.gmra.mrb[0].mxu0 %v2165
      %v2252 = vpop.f32.mrb[0].mxu0
      %v2253 = vadd.f32 0.0, %v2252
      %v2254 = vpop.f32.mrb[0].mxu0
      %2255 = vdwg.mxu0
      %v2256 = vadd.f32 %v2109, %v2234
      %v2257 = vadd.f32 %v2114, %v2239
      %v2258 = vadd.f32 %v2123, %v2248
      %v2259 = vadd.f32 %v2128, %v2253
      %v2260 = vld [vmem:[%s8] sm:$0x1]
      %v2261 = vlaneseq
      %v2262 = vshrl.u32 %v2261, 7
      %v2263 = vsub.s32 0, %v2262
      %v2264 = vrot.slane %v2260, %v2263
      %v2265 = vadd.f32 %v2256, %v2264
      %v2266 = vadd.f32 %v2257, %v2264
      %v2267 = vadd.f32 %v2258, %v2264
      %v2268 = vadd.f32 %v2259, %v2264
      %vm2269 = vcmp.ge.f32.partialorder %v2265, 0.0
      %vm2270 = vcmp.ge.f32.partialorder %v2266, 0.0
      %vm2271 = vcmp.ge.f32.partialorder %v2267, 0.0
      %vm2272 = vcmp.ge.f32.partialorder %v2268, 0.0
      %v2273 = vld [vmem:[%s8 + $0x1] sm:$0x1]
      %v2274 = vlaneseq
      %v2275 = vshrl.u32 %v2274, 7
      %v2276 = vsub.s32 0, %v2275
      %v2277 = vrot.slane %v2273, %v2276
      %v2278 = vmul.f32 %v2277, %v2265
      %v2279 = vmul.f32 %v2277, %v2266
      %v2280 = vmul.f32 %v2277, %v2267
      %v2281 = vmul.f32 %v2277, %v2268
      %v2282 = vsel %vm2269, %v2265, %v2278
      %v2283 = vsel %vm2270, %v2266, %v2279
      %v2284 = vsel %vm2271, %v2267, %v2280
      %v2285 = vsel %vm2272, %v2268, %v2281
      %v2288 = vrot.slane %v2282, 6
      %v2289 = vrot.slane %v2283, 6
      %v2290 = vsel %vm453, %v2288, %v2289
      %2293 = vst.msk [vmem:[#allocation2] sm:$0xfc] %vm1433, %v2288
      %2294 = vst.msk [vmem:[#allocation2 + $0x10] sm:$0x3f] %vm1435, %v2290
      %v2297 = vrot.slane %v2284, 6
      %v2298 = vrot.slane %v2285, 6
      %v2299 = vsel %vm453, %v2297, %v2298
      %2302 = vst.msk [vmem:[#allocation2 + $0x30] sm:$0xfc] %vm1433, %v2297
      %2303 = vst.msk [vmem:[#allocation2 + $0x40] sm:$0x3f] %vm1435, %v2299
      %v2304 = vld [vmem:[#allocation2] sm:$0xfc]
      %v2305 = vld [vmem:[#allocation2 + $0x10] sm:$0xff]
      %v2306 = vld [vmem:[#allocation2 + $0x20] sm:$0xff]
      %v2307 = vld [vmem:[#allocation2 + $0x30] sm:$0xff]
      %v2308 = vld [vmem:[#allocation2 + $0x40] sm:$0x3f]
      %v2309 = vld [vmem:[%s9] sm:$0xff]
      %v2310 = vld [vmem:[%s9 + $0x8] sm:$0xff]
      %v2311 = vld [vmem:[%s9 + $0x10] sm:$0xff]
      %v2312 = vld [vmem:[%s9 + $0x18] sm:$0xff]
      %v2313 = vld [vmem:[%s9 + $0x20] sm:$0xff]
      %v2314 = vld [vmem:[%s9 + $0x28] sm:$0xff]
      %v2315 = vld [vmem:[%s9 + $0x30] sm:$0xff]
      %v2316 = vld [vmem:[%s9 + $0x38] sm:$0xff]
      %v2317 = vld [vmem:[%s9 + $0x40] sm:$0xff]
      %v2318 = vld [vmem:[%s9 + $0x48] sm:$0xff]
      %v2319 = vld [vmem:[%s9 + $0x50] sm:$0xff]
      %v2320 = vld [vmem:[%s9 + $0x58] sm:$0xff]
      %v2321 = vld [vmem:[%s9 + $0x60] sm:$0xff]
      %v2322 = vld [vmem:[%s9 + $0x68] sm:$0xff]
      %v2323 = vld [vmem:[%s9 + $0x70] sm:$0xff]
      %v2324 = vld [vmem:[%s9 + $0x78] sm:$0xff]
      %v2325 = vld [vmem:[%s9 + $0x80] sm:$0xff]
      %v2326 = vld [vmem:[%s9 + $0x88] sm:$0xff]
      %v2327 = vld [vmem:[%s9 + $0x90] sm:$0xff]
      %v2328 = vld [vmem:[%s9 + $0x98] sm:$0xff]
      %v2329 = vld [vmem:[%s9 + $0xa0] sm:$0xff]
      %v2330 = vld [vmem:[%s9 + $0xa8] sm:$0xff]
      %v2331 = vld [vmem:[%s9 + $0xb0] sm:$0xff]
      %v2332 = vld [vmem:[%s9 + $0xb8] sm:$0xff]
      %v2333 = vld [vmem:[%s10] ss:$2 sm:$0x3]
      %v2335 = vlaneseq
      %v2336 = vshrl.u32 %v2335, 7
      %v2337 = vsub.s32 0, %v2336
      %v2338 = vrot.slane %v2333, %v2337
      %v2339 = vlaneseq
      %v2340 = vshrl.u32 %v2339, 7
      %v2341 = vsub.s32 1, %v2340
      %v2342 = vrot.slane %v2333, %v2341
      %v2350 = vrot.slane %v2304, 2
      %v2351 = vrot.slane %v2305, 2
      %v2352 = vsel %vm616, %v2350, %v2351
      %v2353 = vrot.slane %v2306, 2
      %v2354 = vsel %vm616, %v2351, %v2353
      %v2355 = vrot.slane %v2307, 2
      %v2356 = vsel %vm616, %v2353, %v2355
      %v2357 = vrot.slane %v2308, 2
      %v2358 = vsel %vm616, %v2355, %v2357
      %v2359 = vsel %vm1492, %v2352, 0
      %v2361 = vsel %vm1492, %v2354, 0
      %v2363 = vsel %vm1492, %v2356, 0
      %v2365 = vsel %vm1492, %v2358, 0
      %v2367 = vsel %vm1492, %v2357, 0
      %2369 = vmatprep.subr.mxu0 %v2310
      %2370 = vmatpush1.msra.mxu0 %v2309
      %2371 = vmatprep.subr.mxu0 %v2312
      %2372 = vmatpush1.msra.mxu0 %v2311
      %2373 = vmatprep.subr.mxu0 %v2314
      %2374 = vmatpush1.msra.mxu0 %v2313
      %2375 = vmatprep.subr.mxu0 %v2316
      %2376 = vmatpush1.msra.mxu0 %v2315
      %2377 = vmatprep.subr.mxu0 %v2318
      %2378 = vmatpush1.msra.mxu0 %v2317
      %2379 = vmatprep.subr.mxu0 %v2320
      %2380 = vmatpush1.msra.mxu0 %v2319
      %2381 = vmatprep.subr.mxu0 %v2322
      %2382 = vmatpush1.msra.mxu0 %v2321
      %2383 = vmatprep.subr.mxu0 %v2324
      %2384 = vmatpush1.msra.mxu0 %v2323
      %2385 = vmatprep.subr.mxu0 %v2326
      %2386 = vmatpush1.msra.mxu0 %v2325
      %2387 = vmatprep.subr.mxu0 %v2328
      %2388 = vmatpush1.msra.mxu0 %v2327
      %2389 = vmatprep.subr.mxu0 %v2330
      %2390 = vmatpush1.msra.mxu0 %v2329
      %2391 = vmatprep.subr.mxu0 %v2332
      %2392 = vmatpush1.msra.mxu0 %v2331
      %2393 = vmatprep.subr.mxu0 0.0
      %2394 = vmatpush1.msra.mxu0 0.0
      %2395 = vmatprep.subr.mxu0 0.0
      %2396 = vmatpush1.msra.mxu0 0.0
      %2397 = vmatprep.subr.mxu0 0.0
      %2398 = vmatpush1.msra.mxu0 0.0
      %2399 = vmatprep.subr.mxu0 0.0
      %2400 = vmatpush1.msra.mxu0 0.0
      %2401 = vmatprep.subr.mxu0 0.0
      %2402 = vmatpush1.msra.mxu0 0.0
      %2403 = vmatprep.subr.mxu0 0.0
      %2404 = vmatpush1.msra.mxu0 0.0
      %2405 = vmatprep.subr.mxu0 0.0
      %2406 = vmatpush1.msra.mxu0 0.0
      %2407 = vmatprep.subr.mxu0 0.0
      %2408 = vmatpush1.msra.mxu0 0.0
      %2409 = vmatprep.subr.mxu0 0.0
      %2410 = vmatpush1.msra.mxu0 0.0
      %2411 = vmatprep.subr.mxu0 0.0
      %2412 = vmatpush1.msra.mxu0 0.0
      %2413 = vmatprep.subr.mxu0 0.0
      %2414 = vmatpush1.msra.mxu0 0.0
      %2415 = vmatprep.subr.mxu0 0.0
      %2416 = vmatpush1.msra.mxu0 0.0
      %2417 = vmatprep.subr.mxu0 0.0
      %2418 = vmatpush1.msra.mxu0 0.0
      %2419 = vmatprep.subr.mxu0 0.0
      %2420 = vmatpush1.msra.mxu0 0.0
      %2421 = vmatprep.subr.mxu0 0.0
      %2422 = vmatpush1.msra.mxu0 0.0
      %2423 = vmatprep.subr.mxu0 0.0
      %2424 = vmatpush1.msra.mxu0 0.0
      %2425 = vmatprep.subr.mxu0 0.0
      %2426 = vmatpush1.msra.mxu0 0.0
      %2427 = vmatprep.subr.mxu0 0.0
      %2428 = vmatpush1.msra.mxu0 0.0
      %2429 = vmatprep.subr.mxu0 0.0
      %2430 = vmatpush1.msra.mxu0 0.0
      %2431 = vmatprep.subr.mxu0 0.0
      %2432 = vmatpush1.msra.mxu0 0.0
      %2433 = vmatprep.mubr.f32.mxu0 0.0
      %2434 = vmatmul.mubr.f32.gmra.mrb[0].mxu0 %v2359
      %v2435 = vpop.f32.mrb[0].mxu0
      %v2436 = vadd.f32 %v2338, %v2435
      %v2437 = vpop.f32.mrb[0].mxu0
      %v2438 = vadd.f32 %v2342, %v2437
      %2439 = vmatprep.mubr.f32.mxu0 0.0
      %2440 = vmatmul.mubr.f32.gmra.mrb[0].mxu0 %v2361
      %v2441 = vpop.f32.mrb[0].mxu0
      %v2442 = vadd.f32 %v2338, %v2441
      %v2443 = vpop.f32.mrb[0].mxu0
      %v2444 = vadd.f32 %v2342, %v2443
      %2445 = vmatprep.mubr.f32.mxu0 0.0
      %2446 = vmatmul.mubr.f32.gmra.mrb[0].mxu0 %v2363
      %v2447 = vpop.f32.mrb[0].mxu0
      %v2448 = vpop.f32.mrb[0].mxu0
      %2449 = vmatprep.mubr.f32.mxu0 0.0
      %2450 = vmatmul.mubr.f32.gmra.mrb[0].mxu0 %v2365
      %v2451 = vpop.f32.mrb[0].mxu0
      %v2452 = vadd.f32 %v2338, %v2451
      %v2453 = vpop.f32.mrb[0].mxu0
      %v2454 = vadd.f32 %v2342, %v2453
      %2455 = vmatprep.mubr.f32.mxu0 0.0
      %2456 = vmatmul.mubr.f32.gmra.mrb[0].mxu0 %v2367
      %v2457 = vpop.f32.mrb[0].mxu0
      %v2458 = vadd.f32 %v2338, %v2457
      %v2459 = vpop.f32.mrb[0].mxu0
      %v2460 = vadd.f32 %v2342, %v2459
      %2461 = vdwg.mxu0
      %vm2462 = vcmp.ge.f32.partialorder %v2436, 0.0
      %vm2463 = vcmp.ge.f32.partialorder %v2438, 0.0
      %vm2464 = vcmp.ge.f32.partialorder %v2442, 0.0
      %vm2465 = vcmp.ge.f32.partialorder %v2444, 0.0
      %vm2466 = vcmp.ge.f32.partialorder %v2452, 0.0
      %vm2467 = vcmp.ge.f32.partialorder %v2454, 0.0
      %vm2468 = vcmp.ge.f32.partialorder %v2458, 0.0
      %vm2469 = vcmp.ge.f32.partialorder %v2460, 0.0
      %s2470 = scalar_lea.vmem %s10, 1
      %v2471 = vld [vmem:[%s2470] ss:$2 sm:$0x3]
      %v2473 = vlaneseq
      %v2474 = vshrl.u32 %v2473, 7
      %v2475 = vsub.s32 0, %v2474
      %v2476 = vrot.slane %v2471, %v2475
      %v2477 = vlaneseq
      %v2478 = vshrl.u32 %v2477, 7
      %v2479 = vsub.s32 1, %v2478
      %v2480 = vrot.slane %v2471, %v2479
      %v2483 = vmul.f32 %v2476, %v2436
      %v2484 = vmul.f32 %v2480, %v2438
      %v2485 = vmul.f32 %v2476, %v2442
      %v2486 = vmul.f32 %v2480, %v2444
      %v2487 = vmul.f32 %v2476, %v2452
      %v2488 = vmul.f32 %v2480, %v2454
      %v2489 = vmul.f32 %v2476, %v2458
      %v2490 = vmul.f32 %v2480, %v2460
      %v2491 = vsel %vm2462, %v2436, %v2483
      %v2492 = vsel %vm2463, %v2438, %v2484
      %v2493 = vsel %vm2464, %v2442, %v2485
      %v2494 = vsel %vm2465, %v2444, %v2486
      %v2495 = vsel %vm2466, %v2452, %v2487
      %v2496 = vsel %vm2467, %v2454, %v2488
      %v2497 = vsel %vm2468, %v2458, %v2489
      %v2498 = vsel %vm2469, %v2460, %v2490
      %v2503 = vrot.slane %v2491, 6
      %v2504 = vrot.slane %v2492, 6
      %v2505 = vrot.slane %v2493, 6
      %v2506 = vsel %vm453, %v2503, %v2505
      %v2507 = vrot.slane %v2494, 6
      %v2508 = vsel %vm453, %v2504, %v2507
      %2513 = vst [vmem:[#allocation2] sm:$0xfc] %v2503
      %2514 = vst.msk [vmem:[#allocation2 + $0x8] sm:$0xfc] %vm1214, %v2504
      %2515 = vst [vmem:[#allocation2 + $0x10] sm:$0x3f] %v2506
      %2516 = vst.msk [vmem:[#allocation2 + $0x18] sm:$0x3f] %vm1217, %v2508
      %v2521 = vrot.slane %v2495, 6
      %v2522 = vrot.slane %v2496, 6
      %v2523 = vrot.slane %v2497, 6
      %v2524 = vsel %vm453, %v2521, %v2523
      %v2525 = vrot.slane %v2498, 6
      %v2526 = vsel %vm453, %v2522, %v2525
      %2531 = vst [vmem:[#allocation2 + $0x30] sm:$0xfc] %v2521
      %2532 = vst.msk [vmem:[#allocation2 + $0x38] sm:$0xfc] %vm1214, %v2522
      %2533 = vst [vmem:[#allocation2 + $0x40] sm:$0x3f] %v2524
      %2534 = vst.msk [vmem:[#allocation2 + $0x48] sm:$0x3f] %vm1217, %v2526
      %v2535 = vld [vmem:[#allocation2] sm:$0xff]
      %v2536 = vld [vmem:[#allocation2 + $0x8] sm:$0xff]
      %v2537 = vld [vmem:[#allocation2 + $0x10] sm:$0xff]
      %v2538 = vld [vmem:[#allocation2 + $0x18] sm:$0xff]
      %v2539 = vld [vmem:[#allocation2 + $0x20] sm:$0xff]
      %v2540 = vld [vmem:[#allocation2 + $0x28] sm:$0xff]
      %v2541 = vld [vmem:[#allocation2 + $0x30] sm:$0xff]
      %v2542 = vld [vmem:[#allocation2 + $0x38] sm:$0xff]
      %v2543 = vld [vmem:[#allocation2 + $0x40] sm:$0x1f]
      %v2544 = vld [vmem:[#allocation2 + $0x48] sm:$0x1f]
      %v2545 = vld [vmem:[%s11] sm:$0xff]
      %v2546 = vld [vmem:[%s11 + $0x8] sm:$0xff]
      %v2547 = vld [vmem:[%s11 + $0x10] sm:$0xff]
      %v2548 = vld [vmem:[%s11 + $0x18] sm:$0xff]
      %v2549 = vld [vmem:[%s11 + $0x20] sm:$0xff]
      %v2550 = vld [vmem:[%s11 + $0x28] sm:$0xff]
      %v2551 = vld [vmem:[%s11 + $0x30] sm:$0xff]
      %v2552 = vld [vmem:[%s11 + $0x38] sm:$0xff]
      %v2553 = vld [vmem:[%s11 + $0x40] sm:$0xff]
      %v2554 = vld [vmem:[%s11 + $0x48] sm:$0xff]
      %v2555 = vld [vmem:[%s11 + $0x50] sm:$0xff]
      %v2556 = vld [vmem:[%s11 + $0x58] sm:$0xff]
      %v2557 = vld [vmem:[%s11 + $0x60] sm:$0xff]
      %v2558 = vld [vmem:[%s11 + $0x68] sm:$0xff]
      %v2559 = vld [vmem:[%s11 + $0x70] sm:$0xff]
      %v2560 = vld [vmem:[%s11 + $0x78] sm:$0xff]
      %v2561 = vld [vmem:[%s11 + $0x80] sm:$0xff]
      %v2562 = vld [vmem:[%s11 + $0x88] sm:$0xff]
      %v2563 = vld [vmem:[%s11 + $0x90] sm:$0xff]
      %v2564 = vld [vmem:[%s11 + $0x98] sm:$0xff]
      %v2565 = vld [vmem:[%s11 + $0xa0] sm:$0xff]
      %v2566 = vld [vmem:[%s11 + $0xa8] sm:$0xff]
      %v2567 = vld [vmem:[%s11 + $0xb0] sm:$0xff]
      %v2568 = vld [vmem:[%s11 + $0xb8] sm:$0xff]
      %v2569 = vld [vmem:[#allocation2] sm:$0xfe]
      %v2570 = vld [vmem:[#allocation2 + $0x8] sm:$0xfe]
      %v2571 = vld [vmem:[#allocation2 + $0x40] sm:$0x3f]
      %v2572 = vld [vmem:[#allocation2 + $0x48] sm:$0x3f]
      %s2573 = scalar_lea.vmem %s11, 192
      %v2574 = vld [vmem:[%s2573] sm:$0xff]
      %v2575 = vld [vmem:[%s2573 + $0x8] sm:$0xff]
      %v2576 = vld [vmem:[%s2573 + $0x10] sm:$0xff]
      %v2577 = vld [vmem:[%s2573 + $0x18] sm:$0xff]
      %v2578 = vld [vmem:[%s2573 + $0x20] sm:$0xff]
      %v2579 = vld [vmem:[%s2573 + $0x28] sm:$0xff]
      %v2580 = vld [vmem:[%s2573 + $0x30] sm:$0xff]
      %v2581 = vld [vmem:[%s2573 + $0x38] sm:$0xff]
      %v2582 = vld [vmem:[%s2573 + $0x40] sm:$0xff]
      %v2583 = vld [vmem:[%s2573 + $0x48] sm:$0xff]
      %v2584 = vld [vmem:[%s2573 + $0x50] sm:$0xff]
      %v2585 = vld [vmem:[%s2573 + $0x58] sm:$0xff]
      %v2586 = vld [vmem:[%s2573 + $0x60] sm:$0xff]
      %v2587 = vld [vmem:[%s2573 + $0x68] sm:$0xff]
      %v2588 = vld [vmem:[%s2573 + $0x70] sm:$0xff]
      %v2589 = vld [vmem:[%s2573 + $0x78] sm:$0xff]
      %v2590 = vld [vmem:[%s2573 + $0x80] sm:$0xff]
      %v2591 = vld [vmem:[%s2573 + $0x88] sm:$0xff]
      %v2592 = vld [vmem:[%s2573 + $0x90] sm:$0xff]
      %v2593 = vld [vmem:[%s2573 + $0x98] sm:$0xff]
      %v2594 = vld [vmem:[%s2573 + $0xa0] sm:$0xff]
      %v2595 = vld [vmem:[%s2573 + $0xa8] sm:$0xff]
      %v2596 = vld [vmem:[%s2573 + $0xb0] sm:$0xff]
      %v2597 = vld [vmem:[%s2573 + $0xb8] sm:$0xff]
      %v2608 = vrot.slane %v2569, 1
      %v2609 = vrot.slane %v2537, 1
      %v2610 = vsel %vm1594, %v2608, %v2609
      %v2611 = vrot.slane %v2570, 1
      %v2612 = vrot.slane %v2538, 1
      %v2613 = vsel %vm1594, %v2611, %v2612
      %v2614 = vrot.slane %v2539, 1
      %v2615 = vsel %vm1594, %v2609, %v2614
      %v2616 = vrot.slane %v2540, 1
      %v2617 = vsel %vm1594, %v2612, %v2616
      %v2618 = vrot.slane %v2541, 1
      %v2619 = vsel %vm1594, %v2614, %v2618
      %v2620 = vrot.slane %v2542, 1
      %v2621 = vsel %vm1594, %v2616, %v2620
      %v2622 = vrot.slane %v2571, 1
      %v2623 = vsel %vm1594, %v2618, %v2622
      %v2624 = vrot.slane %v2572, 1
      %v2625 = vsel %vm1594, %v2620, %v2624
      %v2631 = vsel %vm1309, %v2613, 0
      %v2633 = vsel %vm1309, %v2617, 0
      %v2635 = vsel %vm1309, %v2621, 0
      %v2637 = vsel %vm1309, %v2625, 0
      %v2639 = vsel %vm1309, %v2624, 0
      %2641 = vmatprep.subr.mxu0 0.0
      %2642 = vmatpush1.msra.mxu0 %v2574
      %2643 = vmatprep.subr.mxu0 0.0
      %2644 = vmatpush1.msra.mxu0 %v2575
      %2645 = vmatprep.subr.mxu0 0.0
      %2646 = vmatpush1.msra.mxu0 %v2576
      %2647 = vmatprep.subr.mxu0 0.0
      %2648 = vmatpush1.msra.mxu0 %v2577
      %2649 = vmatprep.subr.mxu0 0.0
      %2650 = vmatpush1.msra.mxu0 %v2578
      %2651 = vmatprep.subr.mxu0 0.0
      %2652 = vmatpush1.msra.mxu0 %v2579
      %2653 = vmatprep.subr.mxu0 0.0
      %2654 = vmatpush1.msra.mxu0 %v2580
      %2655 = vmatprep.subr.mxu0 0.0
      %2656 = vmatpush1.msra.mxu0 %v2581
      %2657 = vmatprep.subr.mxu0 0.0
      %2658 = vmatpush1.msra.mxu0 %v2582
      %2659 = vmatprep.subr.mxu0 0.0
      %2660 = vmatpush1.msra.mxu0 %v2583
      %2661 = vmatprep.subr.mxu0 0.0
      %2662 = vmatpush1.msra.mxu0 %v2584
      %2663 = vmatprep.subr.mxu0 0.0
      %2664 = vmatpush1.msra.mxu0 %v2585
      %2665 = vmatprep.subr.mxu0 0.0
      %2666 = vmatpush1.msra.mxu0 %v2586
      %2667 = vmatprep.subr.mxu0 0.0
      %2668 = vmatpush1.msra.mxu0 %v2587
      %2669 = vmatprep.subr.mxu0 0.0
      %2670 = vmatpush1.msra.mxu0 %v2588
      %2671 = vmatprep.subr.mxu0 0.0
      %2672 = vmatpush1.msra.mxu0 %v2589
      %2673 = vmatprep.subr.mxu0 0.0
      %2674 = vmatpush1.msra.mxu0 %v2590
      %2675 = vmatprep.subr.mxu0 0.0
      %2676 = vmatpush1.msra.mxu0 %v2591
      %2677 = vmatprep.subr.mxu0 0.0
      %2678 = vmatpush1.msra.mxu0 %v2592
      %2679 = vmatprep.subr.mxu0 0.0
      %2680 = vmatpush1.msra.mxu0 %v2593
      %2681 = vmatprep.subr.mxu0 0.0
      %2682 = vmatpush1.msra.mxu0 %v2594
      %2683 = vmatprep.subr.mxu0 0.0
      %2684 = vmatpush1.msra.mxu0 %v2595
      %2685 = vmatprep.subr.mxu0 0.0
      %2686 = vmatpush1.msra.mxu0 %v2596
      %2687 = vmatprep.subr.mxu0 0.0
      %2688 = vmatpush1.msra.mxu0 %v2597
      %2689 = vmatprep.subr.mxu0 0.0
      %2690 = vmatpush1.msra.mxu0 0.0
      %2691 = vmatprep.subr.mxu0 0.0
      %2692 = vmatpush1.msra.mxu0 0.0
      %2693 = vmatprep.subr.mxu0 0.0
      %2694 = vmatpush1.msra.mxu0 0.0
      %2695 = vmatprep.subr.mxu0 0.0
      %2696 = vmatpush1.msra.mxu0 0.0
      %2697 = vmatprep.subr.mxu0 0.0
      %2698 = vmatpush1.msra.mxu0 0.0
      %2699 = vmatprep.subr.mxu0 0.0
      %2700 = vmatpush1.msra.mxu0 0.0
      %2701 = vmatprep.subr.mxu0 0.0
      %2702 = vmatpush1.msra.mxu0 0.0
      %2703 = vmatprep.subr.mxu0 0.0
      %2704 = vmatpush1.msra.mxu0 0.0
      %2705 = vmatprep.mubr.f32.mxu0 %v2631
      %2706 = vmatmul.mubr.f32.gmra.mrb[0].mxu0 %v2610
      %v2707 = vpop.f32.mrb[0].mxu0
      %v2708 = vadd.f32 0.0, %v2707
      %v2709 = vpop.f32.mrb[0].mxu0
      %2710 = vmatprep.mubr.f32.mxu0 %v2633
      %2711 = vmatmul.mubr.f32.gmra.mrb[0].mxu0 %v2615
      %v2712 = vpop.f32.mrb[0].mxu0
      %v2713 = vadd.f32 0.0, %v2712
      %v2714 = vpop.f32.mrb[0].mxu0
      %2715 = vmatprep.mubr.f32.mxu0 %v2635
      %2716 = vmatmul.mubr.f32.gmra.mrb[0].mxu0 %v2619
      %v2717 = vpop.f32.mrb[0].mxu0
      %v2718 = vpop.f32.mrb[0].mxu0
      %2719 = vmatprep.mubr.f32.mxu0 %v2637
      %2720 = vmatmul.mubr.f32.gmra.mrb[0].mxu0 %v2623
      %v2721 = vpop.f32.mrb[0].mxu0
      %v2722 = vadd.f32 0.0, %v2721
      %v2723 = vpop.f32.mrb[0].mxu0
      %2724 = vmatprep.mubr.f32.mxu0 %v2639
      %2725 = vmatmul.mubr.f32.gmra.mrb[0].mxu0 %v2622
      %v2726 = vpop.f32.mrb[0].mxu0
      %v2727 = vadd.f32 0.0, %v2726
      %v2728 = vpop.f32.mrb[0].mxu0
      %2729 = vdwg.mxu0
      %v2731 = vsel %vm1309, %v2536, 0
      %v2733 = vsel %vm1309, %v2538, 0
      %v2735 = vsel %vm1309, %v2540, 0
      %v2737 = vsel %vm1309, %v2542, 0
      %v2740 = vsel %vm1309, %v2544, 0
      %2742 = vmatprep.subr.mxu0 0.0
      %2743 = vmatpush1.msra.mxu0 %v2545
      %2744 = vmatprep.subr.mxu0 0.0
      %2745 = vmatpush1.msra.mxu0 %v2546
      %2746 = vmatprep.subr.mxu0 0.0
      %2747 = vmatpush1.msra.mxu0 %v2547
      %2748 = vmatprep.subr.mxu0 0.0
      %2749 = vmatpush1.msra.mxu0 %v2548
      %2750 = vmatprep.subr.mxu0 0.0
      %2751 = vmatpush1.msra.mxu0 %v2549
      %2752 = vmatprep.subr.mxu0 0.0
      %2753 = vmatpush1.msra.mxu0 %v2550
      %2754 = vmatprep.subr.mxu0 0.0
      %2755 = vmatpush1.msra.mxu0 %v2551
      %2756 = vmatprep.subr.mxu0 0.0
      %2757 = vmatpush1.msra.mxu0 %v2552
      %2758 = vmatprep.subr.mxu0 0.0
      %2759 = vmatpush1.msra.mxu0 %v2553
      %2760 = vmatprep.subr.mxu0 0.0
      %2761 = vmatpush1.msra.mxu0 %v2554
      %2762 = vmatprep.subr.mxu0 0.0
      %2763 = vmatpush1.msra.mxu0 %v2555
      %2764 = vmatprep.subr.mxu0 0.0
      %2765 = vmatpush1.msra.mxu0 %v2556
      %2766 = vmatprep.subr.mxu0 0.0
      %2767 = vmatpush1.msra.mxu0 %v2557
      %2768 = vmatprep.subr.mxu0 0.0
      %2769 = vmatpush1.msra.mxu0 %v2558
      %2770 = vmatprep.subr.mxu0 0.0
      %2771 = vmatpush1.msra.mxu0 %v2559
      %2772 = vmatprep.subr.mxu0 0.0
      %2773 = vmatpush1.msra.mxu0 %v2560
      %2774 = vmatprep.subr.mxu0 0.0
      %2775 = vmatpush1.msra.mxu0 %v2561
      %2776 = vmatprep.subr.mxu0 0.0
      %2777 = vmatpush1.msra.mxu0 %v2562
      %2778 = vmatprep.subr.mxu0 0.0
      %2779 = vmatpush1.msra.mxu0 %v2563
      %2780 = vmatprep.subr.mxu0 0.0
      %2781 = vmatpush1.msra.mxu0 %v2564
      %2782 = vmatprep.subr.mxu0 0.0
      %2783 = vmatpush1.msra.mxu0 %v2565
      %2784 = vmatprep.subr.mxu0 0.0
      %2785 = vmatpush1.msra.mxu0 %v2566
      %2786 = vmatprep.subr.mxu0 0.0
      %2787 = vmatpush1.msra.mxu0 %v2567
      %2788 = vmatprep.subr.mxu0 0.0
      %2789 = vmatpush1.msra.mxu0 %v2568
      %2790 = vmatprep.subr.mxu0 0.0
      %2791 = vmatpush1.msra.mxu0 0.0
      %2792 = vmatprep.subr.mxu0 0.0
      %2793 = vmatpush1.msra.mxu0 0.0
      %2794 = vmatprep.subr.mxu0 0.0
      %2795 = vmatpush1.msra.mxu0 0.0
      %2796 = vmatprep.subr.mxu0 0.0
      %2797 = vmatpush1.msra.mxu0 0.0
      %2798 = vmatprep.subr.mxu0 0.0
      %2799 = vmatpush1.msra.mxu0 0.0
      %2800 = vmatprep.subr.mxu0 0.0
      %2801 = vmatpush1.msra.mxu0 0.0
      %2802 = vmatprep.subr.mxu0 0.0
      %2803 = vmatpush1.msra.mxu0 0.0
      %2804 = vmatprep.subr.mxu0 0.0
      %2805 = vmatpush1.msra.mxu0 0.0
      %2806 = vmatprep.mubr.f32.mxu0 %v2731
      %2807 = vmatmul.mubr.f32.gmra.mrb[0].mxu0 %v2535
      %v2808 = vpop.f32.mrb[0].mxu0
      %v2809 = vadd.f32 %v2708, %v2808
      %v2810 = vpop.f32.mrb[0].mxu0
      %2811 = vmatprep.mubr.f32.mxu0 %v2733
      %2812 = vmatmul.mubr.f32.gmra.mrb[0].mxu0 %v2537
      %v2813 = vpop.f32.mrb[0].mxu0
      %v2814 = vadd.f32 %v2713, %v2813
      %v2815 = vpop.f32.mrb[0].mxu0
      %2816 = vmatprep.mubr.f32.mxu0 %v2735
      %2817 = vmatmul.mubr.f32.gmra.mrb[0].mxu0 %v2539
      %v2818 = vpop.f32.mrb[0].mxu0
      %v2819 = vpop.f32.mrb[0].mxu0
      %2820 = vmatprep.mubr.f32.mxu0 %v2737
      %2821 = vmatmul.mubr.f32.gmra.mrb[0].mxu0 %v2541
      %v2822 = vpop.f32.mrb[0].mxu0
      %v2823 = vadd.f32 %v2722, %v2822
      %v2824 = vpop.f32.mrb[0].mxu0
      %2825 = vmatprep.mubr.f32.mxu0 %v2740
      %2826 = vmatmul.mubr.f32.gmra.mrb[0].mxu0 %v2543
      %v2827 = vpop.f32.mrb[0].mxu0
      %v2828 = vadd.f32 %v2727, %v2827
      %v2829 = vpop.f32.mrb[0].mxu0
      %2830 = vdwg.mxu0
      %v2831 = vld [vmem:[#allocation2] sm:$0xfc]
      %v2832 = vld [vmem:[#allocation2 + $0x8] sm:$0xfc]
      %v2833 = vld [vmem:[#allocation2 + $0x40] sm:$0x7f]
      %v2834 = vld [vmem:[#allocation2 + $0x48] sm:$0x7f]
      %s2835 = scalar_lea.vmem %s11, 384
      %v2836 = vld [vmem:[%s2835] sm:$0xff]
      %v2837 = vld [vmem:[%s2835 + $0x8] sm:$0xff]
      %v2838 = vld [vmem:[%s2835 + $0x10] sm:$0xff]
      %v2839 = vld [vmem:[%s2835 + $0x18] sm:$0xff]
      %v2840 = vld [vmem:[%s2835 + $0x20] sm:$0xff]
      %v2841 = vld [vmem:[%s2835 + $0x28] sm:$0xff]
      %v2842 = vld [vmem:[%s2835 + $0x30] sm:$0xff]
      %v2843 = vld [vmem:[%s2835 + $0x38] sm:$0xff]
      %v2844 = vld [vmem:[%s2835 + $0x40] sm:$0xff]
      %v2845 = vld [vmem:[%s2835 + $0x48] sm:$0xff]
      %v2846 = vld [vmem:[%s2835 + $0x50] sm:$0xff]
      %v2847 = vld [vmem:[%s2835 + $0x58] sm:$0xff]
      %v2848 = vld [vmem:[%s2835 + $0x60] sm:$0xff]
      %v2849 = vld [vmem:[%s2835 + $0x68] sm:$0xff]
      %v2850 = vld [vmem:[%s2835 + $0x70] sm:$0xff]
      %v2851 = vld [vmem:[%s2835 + $0x78] sm:$0xff]
      %v2852 = vld [vmem:[%s2835 + $0x80] sm:$0xff]
      %v2853 = vld [vmem:[%s2835 + $0x88] sm:$0xff]
      %v2854 = vld [vmem:[%s2835 + $0x90] sm:$0xff]
      %v2855 = vld [vmem:[%s2835 + $0x98] sm:$0xff]
      %v2856 = vld [vmem:[%s2835 + $0xa0] sm:$0xff]
      %v2857 = vld [vmem:[%s2835 + $0xa8] sm:$0xff]
      %v2858 = vld [vmem:[%s2835 + $0xb0] sm:$0xff]
      %v2859 = vld [vmem:[%s2835 + $0xb8] sm:$0xff]
      %v2864 = vrot.slane %v2831, 2
      %v2865 = vrot.slane %v2537, 2
      %v2866 = vsel %vm616, %v2864, %v2865
      %v2867 = vrot.slane %v2832, 2
      %v2868 = vrot.slane %v2538, 2
      %v2869 = vsel %vm616, %v2867, %v2868
      %v2870 = vrot.slane %v2539, 2
      %v2871 = vsel %vm616, %v2865, %v2870
      %v2872 = vrot.slane %v2540, 2
      %v2873 = vsel %vm616, %v2868, %v2872
      %v2874 = vrot.slane %v2541, 2
      %v2875 = vsel %vm616, %v2870, %v2874
      %v2876 = vrot.slane %v2542, 2
      %v2877 = vsel %vm616, %v2872, %v2876
      %v2878 = vrot.slane %v2833, 2
      %v2879 = vsel %vm616, %v2874, %v2878
      %v2880 = vrot.slane %v2834, 2
      %v2881 = vsel %vm616, %v2876, %v2880
      %v2887 = vsel %vm1309, %v2869, 0
      %v2889 = vsel %vm1309, %v2873, 0
      %v2891 = vsel %vm1309, %v2877, 0
      %v2893 = vsel %vm1309, %v2881, 0
      %v2895 = vsel %vm1309, %v2880, 0
      %2897 = vmatprep.subr.mxu0 0.0
      %2898 = vmatpush1.msra.mxu0 %v2836
      %2899 = vmatprep.subr.mxu0 0.0
      %2900 = vmatpush1.msra.mxu0 %v2837
      %2901 = vmatprep.subr.mxu0 0.0
      %2902 = vmatpush1.msra.mxu0 %v2838
      %2903 = vmatprep.subr.mxu0 0.0
      %2904 = vmatpush1.msra.mxu0 %v2839
      %2905 = vmatprep.subr.mxu0 0.0
      %2906 = vmatpush1.msra.mxu0 %v2840
      %2907 = vmatprep.subr.mxu0 0.0
      %2908 = vmatpush1.msra.mxu0 %v2841
      %2909 = vmatprep.subr.mxu0 0.0
      %2910 = vmatpush1.msra.mxu0 %v2842
      %2911 = vmatprep.subr.mxu0 0.0
      %2912 = vmatpush1.msra.mxu0 %v2843
      %2913 = vmatprep.subr.mxu0 0.0
      %2914 = vmatpush1.msra.mxu0 %v2844
      %2915 = vmatprep.subr.mxu0 0.0
      %2916 = vmatpush1.msra.mxu0 %v2845
      %2917 = vmatprep.subr.mxu0 0.0
      %2918 = vmatpush1.msra.mxu0 %v2846
      %2919 = vmatprep.subr.mxu0 0.0
      %2920 = vmatpush1.msra.mxu0 %v2847
      %2921 = vmatprep.subr.mxu0 0.0
      %2922 = vmatpush1.msra.mxu0 %v2848
      %2923 = vmatprep.subr.mxu0 0.0
      %2924 = vmatpush1.msra.mxu0 %v2849
      %2925 = vmatprep.subr.mxu0 0.0
      %2926 = vmatpush1.msra.mxu0 %v2850
      %2927 = vmatprep.subr.mxu0 0.0
      %2928 = vmatpush1.msra.mxu0 %v2851
      %2929 = vmatprep.subr.mxu0 0.0
      %2930 = vmatpush1.msra.mxu0 %v2852
      %2931 = vmatprep.subr.mxu0 0.0
      %2932 = vmatpush1.msra.mxu0 %v2853
      %2933 = vmatprep.subr.mxu0 0.0
      %2934 = vmatpush1.msra.mxu0 %v2854
      %2935 = vmatprep.subr.mxu0 0.0
      %2936 = vmatpush1.msra.mxu0 %v2855
      %2937 = vmatprep.subr.mxu0 0.0
      %2938 = vmatpush1.msra.mxu0 %v2856
      %2939 = vmatprep.subr.mxu0 0.0
      %2940 = vmatpush1.msra.mxu0 %v2857
      %2941 = vmatprep.subr.mxu0 0.0
      %2942 = vmatpush1.msra.mxu0 %v2858
      %2943 = vmatprep.subr.mxu0 0.0
      %2944 = vmatpush1.msra.mxu0 %v2859
      %2945 = vmatprep.subr.mxu0 0.0
      %2946 = vmatpush1.msra.mxu0 0.0
      %2947 = vmatprep.subr.mxu0 0.0
      %2948 = vmatpush1.msra.mxu0 0.0
      %2949 = vmatprep.subr.mxu0 0.0
      %2950 = vmatpush1.msra.mxu0 0.0
      %2951 = vmatprep.subr.mxu0 0.0
      %2952 = vmatpush1.msra.mxu0 0.0
      %2953 = vmatprep.subr.mxu0 0.0
      %2954 = vmatpush1.msra.mxu0 0.0
      %2955 = vmatprep.subr.mxu0 0.0
      %2956 = vmatpush1.msra.mxu0 0.0
      %2957 = vmatprep.subr.mxu0 0.0
      %2958 = vmatpush1.msra.mxu0 0.0
      %2959 = vmatprep.subr.mxu0 0.0
      %2960 = vmatpush1.msra.mxu0 0.0
      %2961 = vmatprep.mubr.f32.mxu0 %v2887
      %2962 = vmatmul.mubr.f32.gmra.mrb[0].mxu0 %v2866
      %v2963 = vpop.f32.mrb[0].mxu0
      %v2964 = vadd.f32 0.0, %v2963
      %v2965 = vpop.f32.mrb[0].mxu0
      %2966 = vmatprep.mubr.f32.mxu0 %v2889
      %2967 = vmatmul.mubr.f32.gmra.mrb[0].mxu0 %v2871
      %v2968 = vpop.f32.mrb[0].mxu0
      %v2969 = vadd.f32 0.0, %v2968
      %v2970 = vpop.f32.mrb[0].mxu0
      %2971 = vmatprep.mubr.f32.mxu0 %v2891
      %2972 = vmatmul.mubr.f32.gmra.mrb[0].mxu0 %v2875
      %v2973 = vpop.f32.mrb[0].mxu0
      %v2974 = vpop.f32.mrb[0].mxu0
      %2975 = vmatprep.mubr.f32.mxu0 %v2893
      %2976 = vmatmul.mubr.f32.gmra.mrb[0].mxu0 %v2879
      %v2977 = vpop.f32.mrb[0].mxu0
      %v2978 = vadd.f32 0.0, %v2977
      %v2979 = vpop.f32.mrb[0].mxu0
      %2980 = vmatprep.mubr.f32.mxu0 %v2895
      %2981 = vmatmul.mubr.f32.gmra.mrb[0].mxu0 %v2878
      %v2982 = vpop.f32.mrb[0].mxu0
      %v2983 = vadd.f32 0.0, %v2982
      %v2984 = vpop.f32.mrb[0].mxu0
      %2985 = vdwg.mxu0
      %v2986 = vadd.f32 %v2809, %v2964
      %v2987 = vadd.f32 %v2814, %v2969
      %v2988 = vadd.f32 %v2823, %v2978
      %v2989 = vadd.f32 %v2828, %v2983
      %v2990 = vld [vmem:[#allocation2] sm:$0xf8]
      %v2991 = vld [vmem:[#allocation2 + $0x8] sm:$0xf8]
      %v2992 = vld [vmem:[#allocation2 + $0x40] sm:$0xff]
      %v2993 = vld [vmem:[#allocation2 + $0x48] sm:$0xff]
      %s2994 = scalar_lea.vmem %s11, 576
      %v2995 = vld [vmem:[%s2994] sm:$0xff]
      %v2996 = vld [vmem:[%s2994 + $0x8] sm:$0xff]
      %v2997 = vld [vmem:[%s2994 + $0x10] sm:$0xff]
      %v2998 = vld [vmem:[%s2994 + $0x18] sm:$0xff]
      %v2999 = vld [vmem:[%s2994 + $0x20] sm:$0xff]
      %v3000 = vld [vmem:[%s2994 + $0x28] sm:$0xff]
      %v3001 = vld [vmem:[%s2994 + $0x30] sm:$0xff]
      %v3002 = vld [vmem:[%s2994 + $0x38] sm:$0xff]
      %v3003 = vld [vmem:[%s2994 + $0x40] sm:$0xff]
      %v3004 = vld [vmem:[%s2994 + $0x48] sm:$0xff]
      %v3005 = vld [vmem:[%s2994 + $0x50] sm:$0xff]
      %v3006 = vld [vmem:[%s2994 + $0x58] sm:$0xff]
      %v3007 = vld [vmem:[%s2994 + $0x60] sm:$0xff]
      %v3008 = vld [vmem:[%s2994 + $0x68] sm:$0xff]
      %v3009 = vld [vmem:[%s2994 + $0x70] sm:$0xff]
      %v3010 = vld [vmem:[%s2994 + $0x78] sm:$0xff]
      %v3011 = vld [vmem:[%s2994 + $0x80] sm:$0xff]
      %v3012 = vld [vmem:[%s2994 + $0x88] sm:$0xff]
      %v3013 = vld [vmem:[%s2994 + $0x90] sm:$0xff]
      %v3014 = vld [vmem:[%s2994 + $0x98] sm:$0xff]
      %v3015 = vld [vmem:[%s2994 + $0xa0] sm:$0xff]
      %v3016 = vld [vmem:[%s2994 + $0xa8] sm:$0xff]
      %v3017 = vld [vmem:[%s2994 + $0xb0] sm:$0xff]
      %v3018 = vld [vmem:[%s2994 + $0xb8] sm:$0xff]
      %v3023 = vrot.slane %v2990, 3
      %v3024 = vrot.slane %v2537, 3
      %v3025 = vsel %vm501, %v3023, %v3024
      %v3026 = vrot.slane %v2991, 3
      %v3027 = vrot.slane %v2538, 3
      %v3028 = vsel %vm501, %v3026, %v3027
      %v3029 = vrot.slane %v2539, 3
      %v3030 = vsel %vm501, %v3024, %v3029
      %v3031 = vrot.slane %v2540, 3
      %v3032 = vsel %vm501, %v3027, %v3031
      %v3033 = vrot.slane %v2541, 3
      %v3034 = vsel %vm501, %v3029, %v3033
      %v3035 = vrot.slane %v2542, 3
      %v3036 = vsel %vm501, %v3031, %v3035
      %v3037 = vrot.slane %v2992, 3
      %v3038 = vsel %vm501, %v3033, %v3037
      %v3039 = vrot.slane %v2993, 3
      %v3040 = vsel %vm501, %v3035, %v3039
      %v3046 = vsel %vm1309, %v3028, 0
      %v3048 = vsel %vm1309, %v3032, 0
      %v3050 = vsel %vm1309, %v3036, 0
      %v3052 = vsel %vm1309, %v3040, 0
      %v3054 = vsel %vm1309, %v3039, 0
      %3056 = vmatprep.subr.mxu0 0.0
      %3057 = vmatpush1.msra.mxu0 %v2995
      %3058 = vmatprep.subr.mxu0 0.0
      %3059 = vmatpush1.msra.mxu0 %v2996
      %3060 = vmatprep.subr.mxu0 0.0
      %3061 = vmatpush1.msra.mxu0 %v2997
      %3062 = vmatprep.subr.mxu0 0.0
      %3063 = vmatpush1.msra.mxu0 %v2998
      %3064 = vmatprep.subr.mxu0 0.0
      %3065 = vmatpush1.msra.mxu0 %v2999
      %3066 = vmatprep.subr.mxu0 0.0
      %3067 = vmatpush1.msra.mxu0 %v3000
      %3068 = vmatprep.subr.mxu0 0.0
      %3069 = vmatpush1.msra.mxu0 %v3001
      %3070 = vmatprep.subr.mxu0 0.0
      %3071 = vmatpush1.msra.mxu0 %v3002
      %3072 = vmatprep.subr.mxu0 0.0
      %3073 = vmatpush1.msra.mxu0 %v3003
      %3074 = vmatprep.subr.mxu0 0.0
      %3075 = vmatpush1.msra.mxu0 %v3004
      %3076 = vmatprep.subr.mxu0 0.0
      %3077 = vmatpush1.msra.mxu0 %v3005
      %3078 = vmatprep.subr.mxu0 0.0
      %3079 = vmatpush1.msra.mxu0 %v3006
      %3080 = vmatprep.subr.mxu0 0.0
      %3081 = vmatpush1.msra.mxu0 %v3007
      %3082 = vmatprep.subr.mxu0 0.0
      %3083 = vmatpush1.msra.mxu0 %v3008
      %3084 = vmatprep.subr.mxu0 0.0
      %3085 = vmatpush1.msra.mxu0 %v3009
      %3086 = vmatprep.subr.mxu0 0.0
      %3087 = vmatpush1.msra.mxu0 %v3010
      %3088 = vmatprep.subr.mxu0 0.0
      %3089 = vmatpush1.msra.mxu0 %v3011
      %3090 = vmatprep.subr.mxu0 0.0
      %3091 = vmatpush1.msra.mxu0 %v3012
      %3092 = vmatprep.subr.mxu0 0.0
      %3093 = vmatpush1.msra.mxu0 %v3013
      %3094 = vmatprep.subr.mxu0 0.0
      %3095 = vmatpush1.msra.mxu0 %v3014
      %3096 = vmatprep.subr.mxu0 0.0
      %3097 = vmatpush1.msra.mxu0 %v3015
      %3098 = vmatprep.subr.mxu0 0.0
      %3099 = vmatpush1.msra.mxu0 %v3016
      %3100 = vmatprep.subr.mxu0 0.0
      %3101 = vmatpush1.msra.mxu0 %v3017
      %3102 = vmatprep.subr.mxu0 0.0
      %3103 = vmatpush1.msra.mxu0 %v3018
      %3104 = vmatprep.subr.mxu0 0.0
      %3105 = vmatpush1.msra.mxu0 0.0
      %3106 = vmatprep.subr.mxu0 0.0
      %3107 = vmatpush1.msra.mxu0 0.0
      %3108 = vmatprep.subr.mxu0 0.0
      %3109 = vmatpush1.msra.mxu0 0.0
      %3110 = vmatprep.subr.mxu0 0.0
      %3111 = vmatpush1.msra.mxu0 0.0
      %3112 = vmatprep.subr.mxu0 0.0
      %3113 = vmatpush1.msra.mxu0 0.0
      %3114 = vmatprep.subr.mxu0 0.0
      %3115 = vmatpush1.msra.mxu0 0.0
      %3116 = vmatprep.subr.mxu0 0.0
      %3117 = vmatpush1.msra.mxu0 0.0
      %3118 = vmatprep.subr.mxu0 0.0
      %3119 = vmatpush1.msra.mxu0 0.0
      %3120 = vmatprep.mubr.f32.mxu0 %v3046
      %3121 = vmatmul.mubr.f32.gmra.mrb[0].mxu0 %v3025
      %v3122 = vpop.f32.mrb[0].mxu0
      %v3123 = vadd.f32 0.0, %v3122
      %v3124 = vpop.f32.mrb[0].mxu0
      %3125 = vmatprep.mubr.f32.mxu0 %v3048
      %3126 = vmatmul.mubr.f32.gmra.mrb[0].mxu0 %v3030
      %v3127 = vpop.f32.mrb[0].mxu0
      %v3128 = vadd.f32 0.0, %v3127
      %v3129 = vpop.f32.mrb[0].mxu0
      %3130 = vmatprep.mubr.f32.mxu0 %v3050
      %3131 = vmatmul.mubr.f32.gmra.mrb[0].mxu0 %v3034
      %v3132 = vpop.f32.mrb[0].mxu0
      %v3133 = vpop.f32.mrb[0].mxu0
      %3134 = vmatprep.mubr.f32.mxu0 %v3052
      %3135 = vmatmul.mubr.f32.gmra.mrb[0].mxu0 %v3038
      %v3136 = vpop.f32.mrb[0].mxu0
      %v3137 = vadd.f32 0.0, %v3136
      %v3138 = vpop.f32.mrb[0].mxu0
      %3139 = vmatprep.mubr.f32.mxu0 %v3054
      %3140 = vmatmul.mubr.f32.gmra.mrb[0].mxu0 %v3037
      %v3141 = vpop.f32.mrb[0].mxu0
      %v3142 = vadd.f32 0.0, %v3141
      %v3143 = vpop.f32.mrb[0].mxu0
      %3144 = vdwg.mxu0
      %v3145 = vadd.f32 %v2986, %v3123
      %v3146 = vadd.f32 %v2987, %v3128
      %v3147 = vadd.f32 %v2988, %v3137
      %v3148 = vadd.f32 %v2989, %v3142
      %v3149 = vld [vmem:[#allocation2] sm:$0xf0]
      %v3150 = vld [vmem:[#allocation2 + $0x8] sm:$0xf0]
      %v3151 = vld [vmem:[#allocation2 + $0x10] sm:$0xff]
      %v3152 = vld [vmem:[#allocation2 + $0x18] sm:$0xff]
      %v3153 = vld [vmem:[#allocation2 + $0x20] sm:$0xff]
      %v3154 = vld [vmem:[#allocation2 + $0x28] sm:$0xff]
      %v3155 = vld [vmem:[#allocation2 + $0x30] sm:$0xff]
      %v3156 = vld [vmem:[#allocation2 + $0x38] sm:$0xff]
      %v3157 = vld [vmem:[#allocation2 + $0x40] sm:$0xff]
      %v3158 = vld [vmem:[#allocation2 + $0x48] sm:$0xff]
      %v3159 = vld [vmem:[#allocation2 + $0x50] sm:$0x1]
      %v3160 = vld [vmem:[#allocation2 + $0x58] sm:$0x1]
      %s3161 = scalar_lea.vmem %s11, 768
      %v3162 = vld [vmem:[%s3161] sm:$0xff]
      %v3163 = vld [vmem:[%s3161 + $0x8] sm:$0xff]
      %v3164 = vld [vmem:[%s3161 + $0x10] sm:$0xff]
      %v3165 = vld [vmem:[%s3161 + $0x18] sm:$0xff]
      %v3166 = vld [vmem:[%s3161 + $0x20] sm:$0xff]
      %v3167 = vld [vmem:[%s3161 + $0x28] sm:$0xff]
      %v3168 = vld [vmem:[%s3161 + $0x30] sm:$0xff]
      %v3169 = vld [vmem:[%s3161 + $0x38] sm:$0xff]
      %v3170 = vld [vmem:[%s3161 + $0x40] sm:$0xff]
      %v3171 = vld [vmem:[%s3161 + $0x48] sm:$0xff]
      %v3172 = vld [vmem:[%s3161 + $0x50] sm:$0xff]
      %v3173 = vld [vmem:[%s3161 + $0x58] sm:$0xff]
      %v3174 = vld [vmem:[%s3161 + $0x60] sm:$0xff]
      %v3175 = vld [vmem:[%s3161 + $0x68] sm:$0xff]
      %v3176 = vld [vmem:[%s3161 + $0x70] sm:$0xff]
      %v3177 = vld [vmem:[%s3161 + $0x78] sm:$0xff]
      %v3178 = vld [vmem:[%s3161 + $0x80] sm:$0xff]
      %v3179 = vld [vmem:[%s3161 + $0x88] sm:$0xff]
      %v3180 = vld [vmem:[%s3161 + $0x90] sm:$0xff]
      %v3181 = vld [vmem:[%s3161 + $0x98] sm:$0xff]
      %v3182 = vld [vmem:[%s3161 + $0xa0] sm:$0xff]
      %v3183 = vld [vmem:[%s3161 + $0xa8] sm:$0xff]
      %v3184 = vld [vmem:[%s3161 + $0xb0] sm:$0xff]
      %v3185 = vld [vmem:[%s3161 + $0xb8] sm:$0xff]
      %v3198 = vrot.slane %v3149, 4
      %v3199 = vrot.slane %v3151, 4
      %v3200 = vsel %vm738, %v3198, %v3199
      %v3201 = vrot.slane %v3150, 4
      %v3202 = vrot.slane %v3152, 4
      %v3203 = vsel %vm738, %v3201, %v3202
      %v3204 = vrot.slane %v3153, 4
      %v3205 = vsel %vm738, %v3199, %v3204
      %v3206 = vrot.slane %v3154, 4
      %v3207 = vsel %vm738, %v3202, %v3206
      %v3208 = vrot.slane %v3155, 4
      %v3209 = vsel %vm738, %v3204, %v3208
      %v3210 = vrot.slane %v3156, 4
      %v3211 = vsel %vm738, %v3206, %v3210
      %v3212 = vrot.slane %v3157, 4
      %v3213 = vsel %vm738, %v3208, %v3212
      %v3214 = vrot.slane %v3158, 4
      %v3215 = vsel %vm738, %v3210, %v3214
      %v3216 = vrot.slane %v3159, 4
      %v3217 = vsel %vm738, %v3212, %v3216
      %v3218 = vrot.slane %v3160, 4
      %v3219 = vsel %vm738, %v3214, %v3218
      %v3225 = vsel %vm1309, %v3203, 0
      %v3227 = vsel %vm1309, %v3207, 0
      %v3229 = vsel %vm1309, %v3211, 0
      %v3231 = vsel %vm1309, %v3215, 0
      %v3233 = vsel %vm1309, %v3219, 0
      %3235 = vmatprep.subr.mxu0 0.0
      %3236 = vmatpush1.msra.mxu0 %v3162
      %3237 = vmatprep.subr.mxu0 0.0
      %3238 = vmatpush1.msra.mxu0 %v3163
      %3239 = vmatprep.subr.mxu0 0.0
      %3240 = vmatpush1.msra.mxu0 %v3164
      %3241 = vmatprep.subr.mxu0 0.0
      %3242 = vmatpush1.msra.mxu0 %v3165
      %3243 = vmatprep.subr.mxu0 0.0
      %3244 = vmatpush1.msra.mxu0 %v3166
      %3245 = vmatprep.subr.mxu0 0.0
      %3246 = vmatpush1.msra.mxu0 %v3167
      %3247 = vmatprep.subr.mxu0 0.0
      %3248 = vmatpush1.msra.mxu0 %v3168
      %3249 = vmatprep.subr.mxu0 0.0
      %3250 = vmatpush1.msra.mxu0 %v3169
      %3251 = vmatprep.subr.mxu0 0.0
      %3252 = vmatpush1.msra.mxu0 %v3170
      %3253 = vmatprep.subr.mxu0 0.0
      %3254 = vmatpush1.msra.mxu0 %v3171
      %3255 = vmatprep.subr.mxu0 0.0
      %3256 = vmatpush1.msra.mxu0 %v3172
      %3257 = vmatprep.subr.mxu0 0.0
      %3258 = vmatpush1.msra.mxu0 %v3173
      %3259 = vmatprep.subr.mxu0 0.0
      %3260 = vmatpush1.msra.mxu0 %v3174
      %3261 = vmatprep.subr.mxu0 0.0
      %3262 = vmatpush1.msra.mxu0 %v3175
      %3263 = vmatprep.subr.mxu0 0.0
      %3264 = vmatpush1.msra.mxu0 %v3176
      %3265 = vmatprep.subr.mxu0 0.0
      %3266 = vmatpush1.msra.mxu0 %v3177
      %3267 = vmatprep.subr.mxu0 0.0
      %3268 = vmatpush1.msra.mxu0 %v3178
      %3269 = vmatprep.subr.mxu0 0.0
      %3270 = vmatpush1.msra.mxu0 %v3179
      %3271 = vmatprep.subr.mxu0 0.0
      %3272 = vmatpush1.msra.mxu0 %v3180
      %3273 = vmatprep.subr.mxu0 0.0
      %3274 = vmatpush1.msra.mxu0 %v3181
      %3275 = vmatprep.subr.mxu0 0.0
      %3276 = vmatpush1.msra.mxu0 %v3182
      %3277 = vmatprep.subr.mxu0 0.0
      %3278 = vmatpush1.msra.mxu0 %v3183
      %3279 = vmatprep.subr.mxu0 0.0
      %3280 = vmatpush1.msra.mxu0 %v3184
      %3281 = vmatprep.subr.mxu0 0.0
      %3282 = vmatpush1.msra.mxu0 %v3185
      %3283 = vmatprep.subr.mxu0 0.0
      %3284 = vmatpush1.msra.mxu0 0.0
      %3285 = vmatprep.subr.mxu0 0.0
      %3286 = vmatpush1.msra.mxu0 0.0
      %3287 = vmatprep.subr.mxu0 0.0
      %3288 = vmatpush1.msra.mxu0 0.0
      %3289 = vmatprep.subr.mxu0 0.0
      %3290 = vmatpush1.msra.mxu0 0.0
      %3291 = vmatprep.subr.mxu0 0.0
      %3292 = vmatpush1.msra.mxu0 0.0
      %3293 = vmatprep.subr.mxu0 0.0
      %3294 = vmatpush1.msra.mxu0 0.0
      %3295 = vmatprep.subr.mxu0 0.0
      %3296 = vmatpush1.msra.mxu0 0.0
      %3297 = vmatprep.subr.mxu0 0.0
      %3298 = vmatpush1.msra.mxu0 0.0
      %3299 = vmatprep.mubr.f32.mxu0 %v3225
      %3300 = vmatmul.mubr.f32.gmra.mrb[0].mxu0 %v3200
      %v3301 = vpop.f32.mrb[0].mxu0
      %v3302 = vadd.f32 0.0, %v3301
      %v3303 = vpop.f32.mrb[0].mxu0
      %3304 = vmatprep.mubr.f32.mxu0 %v3227
      %3305 = vmatmul.mubr.f32.gmra.mrb[0].mxu0 %v3205
      %v3306 = vpop.f32.mrb[0].mxu0
      %v3307 = vadd.f32 0.0, %v3306
      %v3308 = vpop.f32.mrb[0].mxu0
      %3309 = vmatprep.mubr.f32.mxu0 %v3229
      %3310 = vmatmul.mubr.f32.gmra.mrb[0].mxu0 %v3209
      %v3311 = vpop.f32.mrb[0].mxu0
      %v3312 = vpop.f32.mrb[0].mxu0
      %3313 = vmatprep.mubr.f32.mxu0 %v3231
      %3314 = vmatmul.mubr.f32.gmra.mrb[0].mxu0 %v3213
      %v3315 = vpop.f32.mrb[0].mxu0
      %v3316 = vadd.f32 0.0, %v3315
      %v3317 = vpop.f32.mrb[0].mxu0
      %3318 = vmatprep.mubr.f32.mxu0 %v3233
      %3319 = vmatmul.mubr.f32.gmra.mrb[0].mxu0 %v3217
      %v3320 = vpop.f32.mrb[0].mxu0
      %v3321 = vadd.f32 0.0, %v3320
      %v3322 = vpop.f32.mrb[0].mxu0
      %3323 = vdwg.mxu0
      %v3324 = vadd.f32 %v3145, %v3302
      %v3325 = vadd.f32 %v3146, %v3307
      %v3326 = vadd.f32 %v3147, %v3316
      %v3327 = vadd.f32 %v3148, %v3321
      %v3328 = vld [vmem:[%s12] sm:$0x1]
      %v3330 = vlaneseq
      %v3331 = vshrl.u32 %v3330, 7
      %v3332 = vsub.s32 0, %v3331
      %v3333 = vrot.slane %v3328, %v3332
      %v3335 = vadd.f32 %v3324, %v3333
      %v3336 = vadd.f32 %v3325, %v3333
      %v3337 = vadd.f32 %v3326, %v3333
      %v3338 = vadd.f32 %v3327, %v3333
      %3339 = vst [vmem:[%s447] sm:$0xff] %v3335
      %3340 = vst [vmem:[%s447 + $0x8] sm:$0x1f] %v3336
      %s3341 = scalar_lea.vmem %s447, 16
      %3342 = vst [vmem:[%s3341] sm:$0xff] %v3337
      %3343 = vst [vmem:[%s3341 + $0x8] sm:$0x1f] %v3338
      %s3344 = smul.u32 2, %s24
      %p3345 = scmp.lt.s32.totalorder %s3344, 3
      %s3346 = scalar_select %p3345, %s3344, 3
      %s3347 = smul.addr %s3346, 2
      %s3348 = smul.addr %s3347, 8
      %s3349 = scalar_lea.vmem %s13, %s3348
      // Predicated region
      $region73: #{net_new4_forward.1} parent=71 // pred_check
        %p3350 = pneg %p320
      $region74: #{net_new4_forward.1} parent=71 // pred_check_branch
        %3352 = sbr.rel (%p3350) target = $region76
      $region75: #{net_new4_forward.1} parent=71 // pred_region
        %s3353 = smul.u32 2, %s24
      $region76: #{net_new4_forward.1} parent=71 // pred_fallthru
        _
    $region72: #{net_new4_forward.1} parent=5 // pred_fallthru
      _
    %p3354 = scmp.le.s32.totalorder 2, %s19
    // Predicated region
    $region77: #{net_new4_forward.1} parent=5 // pred_check
      %p3355 = pneg %p3354
    $region78: #{net_new4_forward.1} parent=5 // pred_check_branch
      %3357 = sbr.rel (%p3355) target = $region80
    $region79: #{net_new4_forward.1} parent=5 // pred_region
      %s3358 = ssub.s32 %s19, 2
      // Predicated region
      $region81: #{net_new4_forward.1} parent=79 // pred_check
        %p3359 = pneg %p326
      $region82: #{net_new4_forward.1} parent=79 // pred_check_branch
        %3361 = sbr.rel (%p3359) target = $region84
      $region83: #{net_new4_forward.1} parent=79 // pred_region
        %s3362 = smul.u32 2, %s25
        %p3363 = scmp.lt.s32.totalorder %s3362, 3
        %s3364 = scalar_select %p3363, %s3362, 3
        %s3365 = smul.addr %s3364, 2
        %s3366 = smul.addr %s3365, 8
        %s3367 = scalar_lea.vmem %s13, %s3366
      $region84: #{net_new4_forward.1} parent=79 // pred_fallthru
        _
    $region80: #{net_new4_forward.1} parent=5 // pred_fallthru
      _
  $region6: #{net_new4_forward.1} parent=0 // loop_footer
    %s23 = sadd.s32 1, %s19
  $region7: #{net_new4_forward.1} parent=0 // loop_footer_branch
    %18 = sbr.rel target = $region3
  $region8: #{net_new4_forward.1} parent=0 // loop_exit
    _

</llo_original>
